<compile_context>
chip_gen: v6e
topology: v6e:2x2x1
jax: 0.10.0
libtpu: 0.0.40
codegen_flags: <defaults>
</compile_context>

<pallas_src>
import functools

import jax
import jax.numpy as jnp
from jax.experimental import pallas as pl
from jax.experimental.pallas import tpu as pltpu
import numpy as np

DIM = 32
NUM_HEADS = 4
HEAD_DIM = DIM // NUM_HEADS
N_NODES = 8
BATCH = 8
GRAPHS_PER_BLOCK = 4
assert DIM % NUM_HEADS == 0  # _check_dim_and_num_heads_consistency


def _attention_kernel(x_ref, adj_ref, wqkv_ref, bqkv_ref, wo_ref, bo_ref, out_ref):
    G, N, _ = adj_ref.shape          # graphs per block, nodes per graph
    D = x_ref.shape[-1]
    H = NUM_HEADS
    hd = D // H
    GN = G * N

    x = x_ref[...]                   # (G*N, D) bf16 node features for G graphs
    adj = adj_ref[...]               # (G, N, N) f32, adj[g, v, u] = 1 iff edge u -> v

    # --- fused Q/K/V projection: one MXU pass, bf16 operands, f32 accumulation ---
    # (1/sqrt(head_dim) is pre-folded into the wq / bq columns by the wrapper.)
    qkv = jnp.dot(x, wqkv_ref[...].astype(jnp.bfloat16),
                  preferred_element_type=jnp.float32) + bqkv_ref[...]        # (GN, 3D) f32

    # One reshape + one transpose gives head-major batches for q, k and v at once;
    # q/k/v are then separated with cheap leading-axis slices (no lane-offset slicing).
    qkv_h = jnp.transpose(qkv.reshape(GN, 3 * H, hd), (1, 0, 2))             # (3H, GN, hd)
    qh = qkv_h[0 * H:1 * H].reshape(H * G, N, hd)                            # (HG, N, hd)
    kh = qkv_h[1 * H:2 * H].reshape(H * G, N, hd)
    vh = qkv_h[2 * H:3 * H].reshape(H * G, N, hd)

    # --- ops.u_dot_v: s[hg, v, u] = dot(q_u, k_v) (already scaled) ---
    s = jax.lax.dot_general(kh.astype(jnp.bfloat16), qh.astype(jnp.bfloat16),
                            (((2,), (2,)), ((0,), (0,))),
                            preferred_element_type=jnp.float32)              # (HG, N, N)

    # --- edge_softmax over incoming edges u of each destination v (f32, exact divide) ---
    adj_b = jnp.broadcast_to(adj[None], (H, G, N, N)).reshape(H * G, N, N)   # head broadcast
    mask = adj_b > 0.0
    s = jnp.where(mask, s, -1e30)
    m = jnp.max(s, axis=-1, keepdims=True)
    p = jnp.exp(s - m) * mask.astype(jnp.float32)        # isolated nodes -> zero message
    denom = jnp.maximum(jnp.sum(p, axis=-1, keepdims=True), 1e-30)
    probs = p / denom                                    # exact (fixes prior approx-recip error)

    # --- ops.u_mul_e_sum: msg[hg, v, :] = sum_u probs[hg, v, u] * values[hg, u, :] ---
    msg = jax.lax.dot_general(probs.astype(jnp.bfloat16), vh.astype(jnp.bfloat16),
                              (((2,), (1,)), ((0,), (0,))),
                              preferred_element_type=jnp.float32)            # (HG, N, hd)

    # --- output_linear(cat([x, message])) without any lane concatenation:
    #     out = x @ wo[:D] + sum_h msg_h @ wo[D:].reshape(H, hd, D)[h] + bo
    wo_x = wo_ref[:D, :].astype(jnp.bfloat16)                                # (D, D)
    wo_m = wo_ref[D:, :].reshape(H, hd, D).astype(jnp.bfloat16)              # (H, hd, D)
    msg_h = msg.reshape(H, GN, hd).astype(jnp.bfloat16)                      # (H, GN, hd)
    msg_out = jax.lax.dot_general(msg_h, wo_m, (((2,), (1,)), ((0,), (0,))),
                                  preferred_element_type=jnp.float32)        # (H, GN, D)
    out = (jnp.dot(x, wo_x, preferred_element_type=jnp.float32)
           + jnp.sum(msg_out, axis=0)
           + bo_ref[...])

    # nn.Dropout in eval mode is the identity.
    # TODO(synk): training-mode dropout (stochastic masking) not implemented.
    out_ref[...] = out.astype(out_ref.dtype)


@functools.partial(jax.jit, static_argnames=("graphs_per_block",))
def transformer_attention_sep(x, adj, params, *, graphs_per_block=GRAPHS_PER_BLOCK):
    """x: (B, N, D) node features; adj: (B, N, N) with adj[b, v, u] = 1 iff edge u -> v."""
    B, N, D = x.shape
    hd = HEAD_DIM
    G = min(graphs_per_block, B)
    if B % G != 0:
        raise ValueError("batch must be divisible by graphs_per_block")

    # Wrapper-side packing (plain XLA ops, fused under jit).
    scale = 1.0 / float(np.sqrt(hd))                    # fold 1/sqrt(head_dim) into wq / bq
    wqkv = jnp.concatenate([params["wq"] * scale, params["wk"], params["wv"]], axis=1)  # (D, 3D)
    bqkv = jnp.concatenate([params["bq"] * scale, params["bk"], params["bv"]], axis=1)  # (1, 3D)
    wo = params["wo"]                                   # (2D, D): rows [:D] act on x, [D:] on msg
    bo = params["bo"]                                   # (1, D)
    x2 = x.reshape(B * N, D).astype(jnp.bfloat16)       # bf16 MXU operands; halves x DMA bytes

    const2 = lambda b: (0, 0)
    out = pl.pallas_call(
        _attention_kernel,
        out_shape=jax.ShapeDtypeStruct((B * N, D), jnp.float32),
        grid=(B // G,),                                 # >=2 steps keeps both v7x TCs busy
        in_specs=[
            pl.BlockSpec((G * N, D), lambda b: (b, 0)),       # x   (G graphs per step)
            pl.BlockSpec((G, N, N), lambda b: (b, 0, 0)),     # adj (G graphs per step)
            pl.BlockSpec((D, 3 * D), const2),                 # fused QKV weight (VMEM-resident)
            pl.BlockSpec((1, 3 * D), const2),                 # fused QKV bias
            pl.BlockSpec((2 * D, D), const2),                 # fused output weight
            pl.BlockSpec((1, D), const2),                     # output bias
        ],
        out_specs=pl.BlockSpec((G * N, D), lambda b: (b, 0)),
        compiler_params=pltpu.CompilerParams(dimension_semantics=("parallel",)),
    )(x2, adj, wqkv, bqkv, wo, bo)
    return out.reshape(B, N, D)


def _reference(x, adj, params):
    """Pure-JAX f32 reference of the PyTorch forward (eval mode), batched over graphs."""
    B, N, D = x.shape
    q = (x @ params["wq"] + params["bq"]).reshape(B, N, NUM_HEADS, HEAD_DIM)
    k = (x @ params["wk"] + params["bk"]).reshape(B, N, NUM_HEADS, HEAD_DIM)
    v = (x @ params["wv"] + params["bv"]).reshape(B, N, NUM_HEADS, HEAD_DIM)
    # s[b, h, v, u] = dot(q[u], k[v]) / sqrt(hd)
    s = jnp.einsum("buhd,bvhd->bhvu", q, k) / (HEAD_DIM ** 0.5)
    mask = (adj > 0.0)[:, None, :, :]
    s = jnp.where(mask, s, -1e30)
    p = jnp.exp(s - jnp.max(s, axis=-1, keepdims=True)) * mask.astype(jnp.float32)
    probs = p / jnp.maximum(jnp.sum(p, axis=-1, keepdims=True), 1e-30)
    msg = jnp.einsum("bhvu,buhd->bvhd", probs, v).reshape(B, N, D)
    cat = jnp.concatenate([x, msg], axis=-1)
    return cat @ params["wo"] + params["bo"]


if __name__ == "__main__":
    key = jax.random.PRNGKey(0)
    kx, kadj, kq, kk, kv, ko, kbq, kbk, kbv, kbo = jax.random.split(key, 10)

    B, N, D = BATCH, N_NODES, DIM
    x = jax.random.normal(kx, (B, N, D), dtype=jnp.float32)

    # Deterministic random digraphs + self-loops (every node has >= 1 incoming edge).
    adj = (jax.random.uniform(kadj, (B, N, N)) < 0.4).astype(jnp.float32)
    adj = jnp.maximum(adj, jnp.eye(N, dtype=jnp.float32)[None])   # adj[b, v, u]: edge u -> v

    scale = 1.0 / np.sqrt(D)
    params = {
        "wq": jax.random.normal(kq, (D, D), jnp.float32) * scale,
        "bq": jax.random.normal(kbq, (1, D), jnp.float32) * 0.1,
        "wk": jax.random.normal(kk, (D, D), jnp.float32) * scale,
        "bk": jax.random.normal(kbk, (1, D), jnp.float32) * 0.1,
        "wv": jax.random.normal(kv, (D, D), jnp.float32) * scale,
        "bv": jax.random.normal(kbv, (1, D), jnp.float32) * 0.1,
        "wo": jax.random.normal(ko, (2 * D, D), jnp.float32) * (1.0 / np.sqrt(2 * D)),
        "bo": jax.random.normal(kbo, (1, D), jnp.float32) * 0.1,
    }

    out = transformer_attention_sep(x, adj, params, graphs_per_block=GRAPHS_PER_BLOCK)
    out = jax.block_until_ready(out)

    ref = _reference(x, adj, params)
    # Softmax is an exact f32 divide now (previous approx-reciprocal failure fixed); the
    # remaining (documented) difference vs. the f32 reference comes from bf16 MXU operands
    # with f32 accumulation (typical |err| ~1e-2 for O(1) outputs), hence the 5e-2 tolerance.
    np.testing.assert_allclose(np.asarray(out), np.asarray(ref), atol=5e-2, rtol=5e-2)

    print("KERNEL_OK")
</pallas_src>

<mosaic_0001>
module attributes {stable_mosaic.version = 11 : i64} {
  func.func @_attention_kernel(%arg0: i32, %arg1: memref<32x32xbf16, #tpu.memory_space<vmem>>, %arg2: memref<4x8x8xf32, #tpu.memory_space<vmem>>, %arg3: memref<32x96xf32, #tpu.memory_space<vmem>>, %arg4: memref<1x96xf32, #tpu.memory_space<vmem>>, %arg5: memref<64x32xf32, #tpu.memory_space<vmem>>, %arg6: memref<1x32xf32, #tpu.memory_space<vmem>>, %arg7: memref<32x32xf32, #tpu.memory_space<vmem>>) attributes {dimension_semantics = [#tpu.dimension_semantics<parallel>], iteration_bounds = array<i64: 2>, scalar_prefetch = 0 : i64, scratch_operands = 0 : i64, tpu.core_type = #tpu.core_type<tc>, window_params = [{transform_indices = @transform_0, window_bounds = array<i64: 32, 32>}, {transform_indices = @transform_1, window_bounds = array<i64: 4, 8, 8>}, {pipeline_mode = #tpu.pipeline_mode<synchronous>, transform_indices = @transform_2, window_bounds = array<i64: 32, 96>}, {pipeline_mode = #tpu.pipeline_mode<synchronous>, transform_indices = @transform_3, window_bounds = array<i64: 1, 96>}, {pipeline_mode = #tpu.pipeline_mode<synchronous>, transform_indices = @transform_4, window_bounds = array<i64: 64, 32>}, {pipeline_mode = #tpu.pipeline_mode<synchronous>, transform_indices = @transform_5, window_bounds = array<i64: 1, 32>}, {transform_indices = @transform_6, window_bounds = array<i64: 32, 32>}]} {
    %c0 = arith.constant 0 : index
    %c0_0 = arith.constant 0 : index
    %0 = vector.load %arg1[%c0, %c0_0] : memref<32x32xbf16, #tpu.memory_space<vmem>>, vector<32x32xbf16>
    %c0_1 = arith.constant 0 : index
    %c0_2 = arith.constant 0 : index
    %c0_3 = arith.constant 0 : index
    %1 = vector.load %arg2[%c0_1, %c0_2, %c0_3] : memref<4x8x8xf32, #tpu.memory_space<vmem>>, vector<4x8x8xf32>
    %c0_4 = arith.constant 0 : index
    %c0_5 = arith.constant 0 : index
    %2 = vector.load %arg3[%c0_4, %c0_5] : memref<32x96xf32, #tpu.memory_space<vmem>>, vector<32x96xf32>
    %3 = arith.truncf %2 : vector<32x96xf32> to vector<32x96xbf16>
    %cst = arith.constant dense<0.000000e+00> : vector<32x96xf32>
    %4 = tpu.matmul %0, %3, %cst {dimension_numbers = #tpu.dot_dimension_numbers<[1], [0], [0], [1], [0, 0, 1, 1], [], []>} : vector<32x32xbf16>, vector<32x96xbf16>, vector<32x96xf32> -> vector<32x96xf32>
    %c0_6 = arith.constant 0 : index
    %c0_7 = arith.constant 0 : index
    %5 = vector.load %arg4[%c0_6, %c0_7] : memref<1x96xf32, #tpu.memory_space<vmem>>, vector<1x96xf32>
    %6 = vector.broadcast %5 : vector<1x96xf32> to vector<32x96xf32>
    %7 = arith.addf %4, %6 : vector<32x96xf32>
    %8 = vector.shape_cast %7 : vector<32x96xf32> to vector<32x12x8xf32>
    %9 = tpu.transpose %8, [1, 0, 2] : vector<32x12x8xf32> -> vector<12x32x8xf32>
    %10 = vector.extract_strided_slice %9 {offsets = [0, 0, 0], sizes = [4, 32, 8], strides = [1, 1, 1]} : vector<12x32x8xf32> to vector<4x32x8xf32>
    %11 = vector.shape_cast %10 : vector<4x32x8xf32> to vector<16x8x8xf32>
    %12 = vector.extract_strided_slice %9 {offsets = [4, 0, 0], sizes = [4, 32, 8], strides = [1, 1, 1]} : vector<12x32x8xf32> to vector<4x32x8xf32>
    %13 = vector.shape_cast %12 : vector<4x32x8xf32> to vector<16x8x8xf32>
    %14 = vector.extract_strided_slice %9 {offsets = [8, 0, 0], sizes = [4, 32, 8], strides = [1, 1, 1]} : vector<12x32x8xf32> to vector<4x32x8xf32>
    %15 = vector.shape_cast %14 : vector<4x32x8xf32> to vector<16x8x8xf32>
    %16 = arith.truncf %13 : vector<16x8x8xf32> to vector<16x8x8xbf16>
    %17 = arith.truncf %11 : vector<16x8x8xf32> to vector<16x8x8xbf16>
    %cst_8 = arith.constant dense<0.000000e+00> : vector<16x8x8xf32>
    %18 = tpu.matmul %16, %17, %cst_8 {dimension_numbers = #tpu.dot_dimension_numbers<[2], [2], [1], [1], [0, 0, 0, 1, 1, 1], [0], [0]>} : vector<16x8x8xbf16>, vector<16x8x8xbf16>, vector<16x8x8xf32> -> vector<16x8x8xf32>
    %19 = vector.shape_cast %1 : vector<4x8x8xf32> to vector<1x4x8x8xf32>
    %20 = vector.shape_cast %19 : vector<1x4x8x8xf32> to vector<1x4x8x8xf32>
    %21 = vector.broadcast %20 : vector<1x4x8x8xf32> to vector<4x4x8x8xf32>
    %22 = vector.shape_cast %21 : vector<4x4x8x8xf32> to vector<16x8x8xf32>
    %cst_9 = arith.constant 0.000000e+00 : f32
    %23 = vector.broadcast %cst_9 : f32 to vector<16x8x8xf32>
    %24 = arith.cmpf ogt, %22, %23 : vector<16x8x8xf32>
    %cst_10 = arith.constant -1.000000e+30 : f32
    %25 = vector.broadcast %cst_10 : f32 to vector<16x8x8xf32>
    %26 = arith.select %24, %18, %25 : vector<16x8x8xi1>, vector<16x8x8xf32>
    %cst_11 = arith.constant dense<0xFF800000> : vector<16x8xf32>
    %27 = vector.multi_reduction <maximumf>, %26, %cst_11 [2] : vector<16x8x8xf32> to vector<16x8xf32>
    %28 = vector.shape_cast %27 : vector<16x8xf32> to vector<16x8x1xf32>
    %29 = vector.broadcast %28 : vector<16x8x1xf32> to vector<16x8x8xf32>
    %30 = arith.subf %26, %29 : vector<16x8x8xf32>
    %31 = math.exp %30 : vector<16x8x8xf32>
    %32 = arith.extui %24 : vector<16x8x8xi1> to vector<16x8x8xi32>
    %33 = arith.sitofp %32 : vector<16x8x8xi32> to vector<16x8x8xf32>
    %34 = arith.mulf %31, %33 : vector<16x8x8xf32>
    %cst_12 = arith.constant dense<0.000000e+00> : vector<16x8xf32>
    %35 = vector.multi_reduction <add>, %34, %cst_12 [2] : vector<16x8x8xf32> to vector<16x8xf32>
    %36 = vector.shape_cast %35 : vector<16x8xf32> to vector<16x8x1xf32>
    %cst_13 = arith.constant 1.000000e-30 : f32
    %37 = vector.broadcast %cst_13 : f32 to vector<16x8x1xf32>
    %38 = arith.maximumf %36, %37 : vector<16x8x1xf32>
    %39 = vector.broadcast %38 : vector<16x8x1xf32> to vector<16x8x8xf32>
    %40 = arith.divf %34, %39 : vector<16x8x8xf32>
    %41 = arith.truncf %40 : vector<16x8x8xf32> to vector<16x8x8xbf16>
    %42 = arith.truncf %15 : vector<16x8x8xf32> to vector<16x8x8xbf16>
    %cst_14 = arith.constant dense<0.000000e+00> : vector<16x8x8xf32>
    %43 = tpu.matmul %41, %42, %cst_14 {dimension_numbers = #tpu.dot_dimension_numbers<[2], [1], [1], [2], [0, 0, 0, 1, 1, 2], [0], [0]>} : vector<16x8x8xbf16>, vector<16x8x8xbf16>, vector<16x8x8xf32> -> vector<16x8x8xf32>
    %c0_15 = arith.constant 0 : index
    %c0_16 = arith.constant 0 : index
    %44 = vector.load %arg5[%c0_15, %c0_16] : memref<64x32xf32, #tpu.memory_space<vmem>>, vector<32x32xf32>
    %45 = arith.truncf %44 : vector<32x32xf32> to vector<32x32xbf16>
    %c32 = arith.constant 32 : index
    %c0_17 = arith.constant 0 : index
    %46 = vector.load %arg5[%c32, %c0_17] : memref<64x32xf32, #tpu.memory_space<vmem>>, vector<32x32xf32>
    %47 = vector.shape_cast %46 : vector<32x32xf32> to vector<4x8x32xf32>
    %48 = arith.truncf %47 : vector<4x8x32xf32> to vector<4x8x32xbf16>
    %49 = vector.shape_cast %43 : vector<16x8x8xf32> to vector<4x32x8xf32>
    %50 = arith.truncf %49 : vector<4x32x8xf32> to vector<4x32x8xbf16>
    %cst_18 = arith.constant dense<0.000000e+00> : vector<4x32x32xf32>
    %51 = tpu.matmul %50, %48, %cst_18 {dimension_numbers = #tpu.dot_dimension_numbers<[2], [1], [1], [2], [0, 0, 0, 1, 1, 2], [0], [0]>} : vector<4x32x8xbf16>, vector<4x8x32xbf16>, vector<4x32x32xf32> -> vector<4x32x32xf32>
    %cst_19 = arith.constant dense<0.000000e+00> : vector<32x32xf32>
    %52 = tpu.matmul %0, %45, %cst_19 {dimension_numbers = #tpu.dot_dimension_numbers<[1], [0], [0], [1], [0, 0, 1, 1], [], []>} : vector<32x32xbf16>, vector<32x32xbf16>, vector<32x32xf32> -> vector<32x32xf32>
    %cst_20 = arith.constant dense<0.000000e+00> : vector<32x32xf32>
    %53 = vector.multi_reduction <add>, %51, %cst_20 [0] : vector<4x32x32xf32> to vector<32x32xf32>
    %54 = arith.addf %52, %53 : vector<32x32xf32>
    %c0_21 = arith.constant 0 : index
    %c0_22 = arith.constant 0 : index
    %55 = vector.load %arg6[%c0_21, %c0_22] : memref<1x32xf32, #tpu.memory_space<vmem>>, vector<1x32xf32>
    %56 = vector.broadcast %55 : vector<1x32xf32> to vector<32x32xf32>
    %57 = arith.addf %54, %56 : vector<32x32xf32>
    %c0_23 = arith.constant 0 : index
    %c0_24 = arith.constant 0 : index
    %58 = vector.load %arg7[%c0_23, %c0_24] : memref<32x32xf32, #tpu.memory_space<vmem>>, vector<32x32xf32>
    tpu.vector_store %arg7[%c0_23, %c0_24], %57 {strides = array<i32>} : memref<32x32xf32, #tpu.memory_space<vmem>>, vector<32x32xf32>,
    return
  }
  func.func @transform_0(%arg0: i32) -> (i32, i32) {
    %c0_i32 = arith.constant 0 : i32
    %c0_i32_0 = arith.constant 0 : i32
    return %arg0, %c0_i32 : i32, i32
  }
  func.func @transform_1(%arg0: i32) -> (i32, i32, i32) {
    %c0_i32 = arith.constant 0 : i32
    %c0_i32_0 = arith.constant 0 : i32
    %c0_i32_1 = arith.constant 0 : i32
    return %arg0, %c0_i32, %c0_i32_0 : i32, i32, i32
  }
  func.func @transform_2(%arg0: i32) -> (i32, i32) {
    %c0_i32 = arith.constant 0 : i32
    %c0_i32_0 = arith.constant 0 : i32
    %c0_i32_1 = arith.constant 0 : i32
    return %c0_i32, %c0_i32_0 : i32, i32
  }
  func.func @transform_3(%arg0: i32) -> (i32, i32) {
    %c0_i32 = arith.constant 0 : i32
    %c0_i32_0 = arith.constant 0 : i32
    %c0_i32_1 = arith.constant 0 : i32
    return %c0_i32, %c0_i32_0 : i32, i32
  }
  func.func @transform_4(%arg0: i32) -> (i32, i32) {
    %c0_i32 = arith.constant 0 : i32
    %c0_i32_0 = arith.constant 0 : i32
    %c0_i32_1 = arith.constant 0 : i32
    return %c0_i32, %c0_i32_0 : i32, i32
  }
  func.func @transform_5(%arg0: i32) -> (i32, i32) {
    %c0_i32 = arith.constant 0 : i32
    %c0_i32_0 = arith.constant 0 : i32
    %c0_i32_1 = arith.constant 0 : i32
    return %c0_i32, %c0_i32_0 : i32, i32
  }
  func.func @transform_6(%arg0: i32) -> (i32, i32) {
    %c0_i32 = arith.constant 0 : i32
    %c0_i32_0 = arith.constant 0 : i32
    return %arg0, %c0_i32 : i32, i32
  }
}

</mosaic_0001>

<llo_original>
// kernel: transformer_attention_sep.1
$region0: #{transformer_attention_sep.1}
  #allocation0 [shape = 'u32[]', space=smem, size = 0x4, offset = 0x4, fixed_abs, tag = 'smem constant byte address 0x4 - core index']
  #allocation1 [shape = 'u32[144,128]{1,0:T(1,128)}', space=vmem, size = 0x12000, scoped, tag = 'internal scratch']
  %s0 = inlined_call_operand.vmem [shape: bf16[64,32], index: 0, kind: input, shape index: {}]
  %s1 = inlined_call_operand.vmem [shape: f32[8,8,8], index: 1, kind: input, shape index: {}]
  %s2 = inlined_call_operand.vmem [shape: f32[32,96], index: 2, kind: input, shape index: {}]
  %s3 = inlined_call_operand.vmem [shape: f32[1,96], index: 3, kind: input, shape index: {}]
  %s4 = inlined_call_operand.vmem [shape: f32[64,32], index: 4, kind: input, shape index: {}]
  %s5 = inlined_call_operand.vmem [shape: f32[1,32], index: 5, kind: input, shape index: {}]
  %s6 = inlined_call_operand.hbm [shape: f32[64,32], index: 6, kind: output, shape index: {}]
  %s7 = sld [smem:[#allocation0]]
  $region57: #{transformer_attention_sep.1} parent=0
    _
  %s9 = ssub.s32 1, %s7
  %s10 = scalar_select 0, %s9, %s7
  $region1: #{transformer_attention_sep.1} parent=0
    #allocation2 [shape = 'u8[32768]{0}', space=vmem, size = 0x8000, scoped, tag = 'output window, operand 0']
    #allocation3 [shape = 's32[2]{0}', space=sflag, size = 0x8, scoped, tag = 'scoped memory for transformer_attention_sep.1']
    %11 = vsyncpa [#allocation3], 0
    %s12 = scalar_lea.sflag [#allocation3], 1
    %13 = vsyncpa %s12, 0
    loop: start=0, step=1, limit=4
    $region2: #{transformer_attention_sep.1} parent=1 // loop_pre_header
      _
    $region3: #{transformer_attention_sep.1} parent=1 // loop_header
      %s15 = sphi 0, %s19
      %p16 = scmp.ge.s32.totalorder %s15, 4
      %s25 = sphi 0, %s27
      %s28 = sphi 0, %s25
      %s29 = sphi 0, %s28
      %s45 = sphi 0, %s29
      %s51 = sphi 0, %s53
      %s54 = sphi 0, %s51
      %s55 = sphi 0, %s54
      %s71 = sphi 0, %s55
      %s75 = sphi 0, %s75
      %s77 = sphi 0, %s75
      %s78 = sphi 0, %s77
      %s92 = sphi 0, %s78
      %s96 = sphi 0, %s96
      %s98 = sphi 0, %s96
      %s99 = sphi 0, %s98
      %s113 = sphi 0, %s99
      %s117 = sphi 0, %s117
      %s119 = sphi 0, %s117
      %s120 = sphi 0, %s119
      %s134 = sphi 0, %s120
      %s138 = sphi 0, %s138
      %s140 = sphi 0, %s138
      %s141 = sphi 0, %s140
      %s155 = sphi 0, %s141
      %s161 = sphi 0, %s163
      %s164 = sphi 0, %s161
      %s165 = sphi 0, %s164
      %s181 = sphi 0, %s165
    $region4: #{transformer_attention_sep.1} parent=1 // loop_header_branch
      %18 = sbr.rel (%p16) target = $region8
    $region5: #{transformer_attention_sep.1} parent=1 // loop_body
      %s20 = ssub.s32 %s15, 1
      %s21 = ssub.s32 %s15, 2
      %s22 = sadd.s32 %s15, 1
      %s23 = ssub.s32 %s15, %s22
      %p24 = scmp.eq.s32.totalorder %s23, 0
      %s26 = sadd.s32 %s25, 1
      %s27 = scalar_select %p24, %s25, %s26
      %p30 = pneg %p24
      %p31 = scmp.eq.s32.totalorder %s15, 1
      %p32 = por %p30, %p31
      %p33 = scmp.ne.s32.totalorder %s25, %s28
      %p34 = scmp.eq.s32.totalorder %s15, 0
      %p35 = por %p33, %p34
      %p36 = scmp.ne.s32.totalorder %s25, %s28
      %p37 = scmp.eq.s32.totalorder %s20, 1
      %p38 = por %p36, %p37
      %p39 = scmp.ne.s32.totalorder %s28, %s29
      %p40 = scmp.eq.s32.totalorder %s20, 0
      %p41 = por %p39, %p40
      %p42 = scmp.ne.s32.totalorder %s28, %s29
      %p43 = scmp.eq.s32.totalorder %s21, 1
      %p44 = por %p42, %p43
      %p46 = scmp.ne.s32.totalorder %s29, %s45
      %p47 = scmp.eq.s32.totalorder %s21, 0
      %p48 = por %p46, %p47
      %s49 = ssub.s32 %s15, %s22
      %p50 = scmp.eq.s32.totalorder %s49, 0
      %s52 = sadd.s32 %s51, 1
      %s53 = scalar_select %p50, %s51, %s52
      %p56 = pneg %p50
      %p57 = scmp.eq.s32.totalorder %s15, 1
      %p58 = por %p56, %p57
      %p59 = scmp.ne.s32.totalorder %s51, %s54
      %p60 = scmp.eq.s32.totalorder %s15, 0
      %p61 = por %p59, %p60
      %p62 = scmp.ne.s32.totalorder %s51, %s54
      %p63 = scmp.eq.s32.totalorder %s20, 1
      %p64 = por %p62, %p63
      %p65 = scmp.ne.s32.totalorder %s54, %s55
      %p66 = scmp.eq.s32.totalorder %s20, 0
      %p67 = por %p65, %p66
      %p68 = scmp.ne.s32.totalorder %s54, %s55
      %p69 = scmp.eq.s32.totalorder %s21, 1
      %p70 = por %p68, %p69
      %p72 = scmp.ne.s32.totalorder %s55, %s71
      %p73 = scmp.eq.s32.totalorder %s21, 0
      %p74 = por %p72, %p73
      %s76 = sadd.s32 %s75, 1
      %p79 = scmp.eq.s32.totalorder %s15, 1
      %p80 = scmp.ne.s32.totalorder %s75, %s77
      %p81 = scmp.eq.s32.totalorder %s15, 0
      %p82 = por %p80, %p81
      %p83 = scmp.ne.s32.totalorder %s75, %s77
      %p84 = scmp.eq.s32.totalorder %s20, 1
      %p85 = por %p83, %p84
      %p86 = scmp.ne.s32.totalorder %s77, %s78
      %p87 = scmp.eq.s32.totalorder %s20, 0
      %p88 = por %p86, %p87
      %p89 = scmp.ne.s32.totalorder %s77, %s78
      %p90 = scmp.eq.s32.totalorder %s21, 1
      %p91 = por %p89, %p90
      %p93 = scmp.ne.s32.totalorder %s78, %s92
      %p94 = scmp.eq.s32.totalorder %s21, 0
      %p95 = por %p93, %p94
      %s97 = sadd.s32 %s96, 1
      %p100 = scmp.eq.s32.totalorder %s15, 1
      %p101 = scmp.ne.s32.totalorder %s96, %s98
      %p102 = scmp.eq.s32.totalorder %s15, 0
      %p103 = por %p101, %p102
      %p104 = scmp.ne.s32.totalorder %s96, %s98
      %p105 = scmp.eq.s32.totalorder %s20, 1
      %p106 = por %p104, %p105
      %p107 = scmp.ne.s32.totalorder %s98, %s99
      %p108 = scmp.eq.s32.totalorder %s20, 0
      %p109 = por %p107, %p108
      %p110 = scmp.ne.s32.totalorder %s98, %s99
      %p111 = scmp.eq.s32.totalorder %s21, 1
      %p112 = por %p110, %p111
      %p114 = scmp.ne.s32.totalorder %s99, %s113
      %p115 = scmp.eq.s32.totalorder %s21, 0
      %p116 = por %p114, %p115
      %s118 = sadd.s32 %s117, 1
      %p121 = scmp.eq.s32.totalorder %s15, 1
      %p122 = scmp.ne.s32.totalorder %s117, %s119
      %p123 = scmp.eq.s32.totalorder %s15, 0
      %p124 = por %p122, %p123
      %p125 = scmp.ne.s32.totalorder %s117, %s119
      %p126 = scmp.eq.s32.totalorder %s20, 1
      %p127 = por %p125, %p126
      %p128 = scmp.ne.s32.totalorder %s119, %s120
      %p129 = scmp.eq.s32.totalorder %s20, 0
      %p130 = por %p128, %p129
      %p131 = scmp.ne.s32.totalorder %s119, %s120
      %p132 = scmp.eq.s32.totalorder %s21, 1
      %p133 = por %p131, %p132
      %p135 = scmp.ne.s32.totalorder %s120, %s134
      %p136 = scmp.eq.s32.totalorder %s21, 0
      %p137 = por %p135, %p136
      %s139 = sadd.s32 %s138, 1
      %p142 = scmp.eq.s32.totalorder %s15, 1
      %p143 = scmp.ne.s32.totalorder %s138, %s140
      %p144 = scmp.eq.s32.totalorder %s15, 0
      %p145 = por %p143, %p144
      %p146 = scmp.ne.s32.totalorder %s138, %s140
      %p147 = scmp.eq.s32.totalorder %s20, 1
      %p148 = por %p146, %p147
      %p149 = scmp.ne.s32.totalorder %s140, %s141
      %p150 = scmp.eq.s32.totalorder %s20, 0
      %p151 = por %p149, %p150
      %p152 = scmp.ne.s32.totalorder %s140, %s141
      %p153 = scmp.eq.s32.totalorder %s21, 1
      %p154 = por %p152, %p153
      %p156 = scmp.ne.s32.totalorder %s141, %s155
      %p157 = scmp.eq.s32.totalorder %s21, 0
      %p158 = por %p156, %p157
      %s159 = ssub.s32 %s15, %s22
      %p160 = scmp.eq.s32.totalorder %s159, 0
      %s162 = sadd.s32 %s161, 1
      %s163 = scalar_select %p160, %s161, %s162
      %p166 = pneg %p160
      %p167 = scmp.eq.s32.totalorder %s15, 1
      %p168 = por %p166, %p167
      %p169 = scmp.ne.s32.totalorder %s161, %s164
      %p170 = scmp.eq.s32.totalorder %s15, 0
      %p171 = por %p169, %p170
      %p172 = scmp.ne.s32.totalorder %s161, %s164
      %p173 = scmp.eq.s32.totalorder %s20, 1
      %p174 = por %p172, %p173
      %p175 = scmp.ne.s32.totalorder %s164, %s165
      %p176 = scmp.eq.s32.totalorder %s20, 0
      %p177 = por %p175, %p176
      %p178 = scmp.ne.s32.totalorder %s164, %s165
      %p179 = scmp.eq.s32.totalorder %s21, 1
      %p180 = por %p178, %p179
      %p182 = scmp.ne.s32.totalorder %s165, %s181
      %p183 = scmp.eq.s32.totalorder %s21, 0
      %p184 = por %p182, %p183
      %p185 = scmp.le.s32.totalorder 1, %s15
      %p186 = scmp.lt.s32.totalorder %s15, 3
      %p187 = pnand %p185, %p186
      %p188 = pneg %p187
      // Predicated region
      $region9: #{transformer_attention_sep.1} parent=5 // pred_check
        _
      $region10: #{transformer_attention_sep.1} parent=5 // pred_check_branch
        %190 = sbr.rel (%p187) target = $region12
      $region11: #{transformer_attention_sep.1} parent=5 // pred_region
        %s191 = ssub.s32 %s15, 1
        // Predicated region
        $region13: #{transformer_attention_sep.1} parent=11 // pred_check
          %p192 = pneg %p88
        $region14: #{transformer_attention_sep.1} parent=11 // pred_check_branch
          %194 = sbr.rel (%p192) target = $region16
        $region15: #{transformer_attention_sep.1} parent=11 // pred_region
          _
        $region16: #{transformer_attention_sep.1} parent=11 // pred_fallthru
          _
        // Predicated region
        $region17: #{transformer_attention_sep.1} parent=11 // pred_check
          %p195 = pneg %p109
        $region18: #{transformer_attention_sep.1} parent=11 // pred_check_branch
          %197 = sbr.rel (%p195) target = $region20
        $region19: #{transformer_attention_sep.1} parent=11 // pred_region
          _
        $region20: #{transformer_attention_sep.1} parent=11 // pred_fallthru
          _
        // Predicated region
        $region21: #{transformer_attention_sep.1} parent=11 // pred_check
          %p198 = pneg %p130
        $region22: #{transformer_attention_sep.1} parent=11 // pred_check_branch
          %200 = sbr.rel (%p198) target = $region24
        $region23: #{transformer_attention_sep.1} parent=11 // pred_region
          _
        $region24: #{transformer_attention_sep.1} parent=11 // pred_fallthru
          _
        // Predicated region
        $region25: #{transformer_attention_sep.1} parent=11 // pred_check
          %p201 = pneg %p151
        $region26: #{transformer_attention_sep.1} parent=11 // pred_check_branch
          %203 = sbr.rel (%p201) target = $region28
        $region27: #{transformer_attention_sep.1} parent=11 // pred_region
          _
        $region28: #{transformer_attention_sep.1} parent=11 // pred_fallthru
          _
      $region12: #{transformer_attention_sep.1} parent=5 // pred_fallthru
        _
      %p204 = scmp.lt.s32.totalorder %s15, 2
      // Predicated region
      $region29: #{transformer_attention_sep.1} parent=5 // pred_check
        %p205 = pneg %p204
      $region30: #{transformer_attention_sep.1} parent=5 // pred_check_branch
        %207 = sbr.rel (%p205) target = $region32
      $region31: #{transformer_attention_sep.1} parent=5 // pred_region
        // Predicated region
        $region33: #{transformer_attention_sep.1} parent=31 // pred_check
          %p208 = pneg %p35
        $region34: #{transformer_attention_sep.1} parent=31 // pred_check_branch
          %210 = sbr.rel (%p208) target = $region36
        $region35: #{transformer_attention_sep.1} parent=31 // pred_region
          %s211 = smul.u32 4, %s15
          %p212 = scmp.lt.s32.totalorder %s211, 7
          %s213 = scalar_select %p212, %s211, 7
          %s214 = smul.addr %s213, 4
          %s215 = scalar_lea.vmem %s0, %s214
          %s216 = smul.u32 4, %s15
        $region36: #{transformer_attention_sep.1} parent=31 // pred_fallthru
          _
        // Predicated region
        $region37: #{transformer_attention_sep.1} parent=31 // pred_check
          %p217 = pneg %p61
        $region38: #{transformer_attention_sep.1} parent=31 // pred_check_branch
          %219 = sbr.rel (%p217) target = $region40
        $region39: #{transformer_attention_sep.1} parent=31 // pred_region
          %s220 = smul.u32 4, %s15
          %p221 = scmp.lt.s32.totalorder %s220, 7
          %s222 = scalar_select %p221, %s220, 7
          %s223 = smul.addr %s222, 8
          %s224 = scalar_lea.vmem %s1, %s223
          %s225 = smul.u32 4, %s15
        $region40: #{transformer_attention_sep.1} parent=31 // pred_fallthru
          _
      $region32: #{transformer_attention_sep.1} parent=5 // pred_fallthru
        _
      %p226 = scmp.le.s32.totalorder 1, %s15
      %p227 = scmp.lt.s32.totalorder %s15, 3
      %p228 = pnand %p226, %p227
      %p229 = pneg %p228
      // Predicated region
      $region41: #{transformer_attention_sep.1} parent=5 // pred_check
        _
      $region42: #{transformer_attention_sep.1} parent=5 // pred_check_branch
        %231 = sbr.rel (%p228) target = $region44
      $region43: #{transformer_attention_sep.1} parent=5 // pred_region
        %s232 = ssub.s32 %s15, 1
        %s233 = smul.u32 4, %s20
        %p234 = scmp.lt.s32.totalorder %s233, 7
        %s235 = scalar_select %p234, %s233, 7
        %s236 = smul.addr %s235, 4
        %s237 = scalar_lea.vmem %s0, %s236
        %p238 = pneg %p41
        %p239 = pneg %p38
        %s240 = smul.u32 4, %s20
        %p241 = scmp.lt.s32.totalorder %s240, 7
        %s242 = scalar_select %p241, %s240, 7
        %s243 = smul.addr %s242, 8
        %s244 = scalar_lea.vmem %s1, %s243
        %p245 = pneg %p67
        %p246 = pneg %p64
        %p247 = pneg %p88
        %p248 = pneg %p85
        %p249 = pneg %p109
        %p250 = pneg %p106
        %p251 = pneg %p130
        %p252 = pneg %p127
        %p253 = pneg %p151
        %p254 = pneg %p148
        %p255 = pneg %p177
        %p256 = pneg %p174
        %s257 = sand.u32 %s164, 1
        %s258 = scalar_lea.sflag [#allocation3], %s257
        %s259 = sand.u32 %s164, 1
        %s260 = smul.addr %s259, 32
        %s261 = scalar_lea.vmem [#allocation2], %s260
        %s262 = smul.u32 4, %s20
        %p263 = scmp.lt.s32.totalorder %s262, 7
        %s264 = scalar_select %p263, %s262, 7
        %s265 = smul.addr %s264, 4
        %s266 = scalar_lea.vmem %s0, %s265
        %s267 = smul.u32 4, %s20
        %s268 = smul.u32 4, %s20
        %p269 = scmp.lt.s32.totalorder %s268, 7
        %s270 = scalar_select %p269, %s268, 7
        %s271 = smul.addr %s270, 8
        %s272 = scalar_lea.vmem %s1, %s271
        %s273 = smul.u32 4, %s20
        %s274 = smul.u32 4, %s20
        %v276 = vld [vmem:[%s266] sm:$0xf]
        %v277 = vld [vmem:[%s266 + $0x4] sm:$0xf]
        %v278 = vld [vmem:[%s266 + $0x8] sm:$0xf]
        %v279 = vld [vmem:[%s266 + $0xc] sm:$0xf]
        %v280 = vld [vmem:[%s272] sm:$0xff]
        %v281 = vld [vmem:[%s272 + $0x8] sm:$0xff]
        %v282 = vld [vmem:[%s272 + $0x10] sm:$0xff]
        %v283 = vld [vmem:[%s272 + $0x18] sm:$0xff]
        %v284 = vld [vmem:[%s2] sm:$0xff]
        %v285 = vld [vmem:[%s2 + $0x8] sm:$0xff]
        %v286 = vld [vmem:[%s2 + $0x10] sm:$0xff]
        %v287 = vld [vmem:[%s2 + $0x18] sm:$0xff]
        %v288 = vpack.c.bf16 %v285, %v284
        %v289 = vpack.c.bf16 %v287, %v286
        %v290 = vld [vmem:[%s3] sm:$0x1]
        %v292 = vlaneseq
        %v293 = vshrl.u32 %v292, 7
        %v294 = vsub.s32 0, %v293
        %v295 = vrot.slane %v290, %v294
        %v301 = vunpack.c.l.b16 %v276
        %v302 = vunpack.c.l.b16 %v277
        %v303 = vunpack.c.l.b16 %v278
        %v304 = vunpack.c.l.b16 %v279
        %v305 = vpack.c.b16 %v302, %v301
        %v306 = vpack.c.b16 %v304, %v303
        %vm307 = vcmask 261120
        %v309 = vsel %vm307, %v305, 0
        %v312 = vsel %vm307, %v306, 0
        %314 = vmatprep.subr.bf16.mxu0 0
        %315 = vmatpush1.bf16.msra.mxu0 0
        %316 = vmatprep.subr.bf16.mxu0 0
        %317 = vmatpush1.bf16.msra.mxu0 0
        %318 = vmatprep.subr.bf16.mxu0 0
        %319 = vmatpush1.bf16.msra.mxu0 0
        %320 = vmatprep.subr.bf16.mxu0 0
        %321 = vmatpush1.bf16.msra.mxu0 0
        %322 = vmatprep.subr.bf16.mxu0 0
        %323 = vmatpush1.bf16.msra.mxu0 0
        %324 = vmatprep.subr.bf16.mxu0 0
        %325 = vmatpush1.bf16.msra.mxu0 0
        %326 = vmatprep.subr.bf16.mxu0 0
        %327 = vmatpush1.bf16.msra.mxu0 %v289
        %328 = vmatprep.subr.bf16.mxu0 0
        %329 = vmatpush1.bf16.msra.mxu0 %v288
        %330 = vmatprep.subr.bf16.mxu0 0
        %331 = vmatpush2.bf16.msra.mxu0 0
        %332 = vmatprep.subr.bf16.mxu0 0
        %333 = vmatpush2.bf16.msra.mxu0 0
        %334 = vmatprep.subr.bf16.mxu0 0
        %335 = vmatpush2.bf16.msra.mxu0 0
        %336 = vmatprep.subr.bf16.mxu0 0
        %337 = vmatpush2.bf16.msra.mxu0 0
        %338 = vmatprep.subr.bf16.mxu0 0
        %339 = vmatpush2.bf16.msra.mxu0 0
        %340 = vmatprep.subr.bf16.mxu0 0
        %341 = vmatpush2.bf16.msra.mxu0 0
        %342 = vmatprep.subr.bf16.mxu0 0
        %343 = vmatpush2.bf16.msra.mxu0 0
        %344 = vmatprep.subr.bf16.mxu0 0
        %345 = vmatpush2.bf16.msra.mxu0 0
        %346 = vmatprep.mubr.bf16.mxu0 0
        %347 = vmatmul.mubr.bf16.gmra.mxu0 %v309
        %v348 = vpop.f32.mrf.mxu0
        %v349 = vadd.f32 %v295, %v348
        %v350 = vpop.f32.mrf.mxu0
        %v351 = vpop.f32.mrf.mxu0
        %v352 = vadd.f32 %v295, %v351
        %v353 = vpop.f32.mrf.mxu0
        %354 = vmatprep.mubr.bf16.mxu0 0
        %355 = vmatmul.mubr.bf16.gmra.mxu0 %v312
        %v356 = vpop.f32.mrf.mxu0
        %v357 = vadd.f32 %v295, %v356
        %v358 = vpop.f32.mrf.mxu0
        %v359 = vpop.f32.mrf.mxu0
        %v360 = vadd.f32 %v295, %v359
        %v361 = vpop.f32.mrf.mxu0
        %362 = vdwg.mxu0
        %367 = vrot.lane.b32.xlu0 %v349, 120
        %v368 = vpop.permute.xlu0 %367
        %369 = vrot.lane.b32.xlu0 %v352, 120
        %v370 = vpop.permute.xlu0 %369
        %371 = vrot.lane.b32.xlu0 %v357, 120
        %v372 = vpop.permute.xlu0 %371
        %373 = vrot.lane.b32.xlu0 %v360, 120
        %v374 = vpop.permute.xlu0 %373
        %379 = vrot.lane.b32.xlu0 %v349, 112
        %v380 = vpop.permute.xlu0 %379
        %381 = vrot.lane.b32.xlu0 %v352, 112
        %v382 = vpop.permute.xlu0 %381
        %383 = vrot.lane.b32.xlu0 %v357, 112
        %v384 = vpop.permute.xlu0 %383
        %385 = vrot.lane.b32.xlu0 %v360, 112
        %v386 = vpop.permute.xlu0 %385
        %391 = vrot.lane.b32.xlu0 %v349, 104
        %v392 = vpop.permute.xlu0 %391
        %393 = vrot.lane.b32.xlu0 %v352, 104
        %v394 = vpop.permute.xlu0 %393
        %395 = vrot.lane.b32.xlu0 %v357, 104
        %v396 = vpop.permute.xlu0 %395
        %397 = vrot.lane.b32.xlu0 %v360, 104
        %v398 = vpop.permute.xlu0 %397
        %403 = vrot.lane.b32.xlu0 %v349, 96
        %v404 = vpop.permute.xlu0 %403
        %405 = vrot.lane.b32.xlu0 %v352, 96
        %v406 = vpop.permute.xlu0 %405
        %407 = vrot.lane.b32.xlu0 %v357, 96
        %v408 = vpop.permute.xlu0 %407
        %409 = vrot.lane.b32.xlu0 %v360, 96
        %v410 = vpop.permute.xlu0 %409
        %415 = vrot.lane.b32.xlu0 %v349, 88
        %v416 = vpop.permute.xlu0 %415
        %417 = vrot.lane.b32.xlu0 %v352, 88
        %v418 = vpop.permute.xlu0 %417
        %419 = vrot.lane.b32.xlu0 %v357, 88
        %v420 = vpop.permute.xlu0 %419
        %421 = vrot.lane.b32.xlu0 %v360, 88
        %v422 = vpop.permute.xlu0 %421
        %427 = vrot.lane.b32.xlu0 %v349, 80
        %v428 = vpop.permute.xlu0 %427
        %429 = vrot.lane.b32.xlu0 %v352, 80
        %v430 = vpop.permute.xlu0 %429
        %431 = vrot.lane.b32.xlu0 %v357, 80
        %v432 = vpop.permute.xlu0 %431
        %433 = vrot.lane.b32.xlu0 %v360, 80
        %v434 = vpop.permute.xlu0 %433
        %439 = vrot.lane.b32.xlu0 %v349, 72
        %v440 = vpop.permute.xlu0 %439
        %441 = vrot.lane.b32.xlu0 %v352, 72
        %v442 = vpop.permute.xlu0 %441
        %443 = vrot.lane.b32.xlu0 %v357, 72
        %v444 = vpop.permute.xlu0 %443
        %445 = vrot.lane.b32.xlu0 %v360, 72
        %v446 = vpop.permute.xlu0 %445
        %451 = vrot.lane.b32.xlu0 %v349, 64
        %v452 = vpop.permute.xlu0 %451
        %453 = vrot.lane.b32.xlu0 %v352, 64
        %v454 = vpop.permute.xlu0 %453
        %455 = vrot.lane.b32.xlu0 %v357, 64
        %v456 = vpop.permute.xlu0 %455
        %457 = vrot.lane.b32.xlu0 %v360, 64
        %v458 = vpop.permute.xlu0 %457
        %463 = vrot.lane.b32.xlu0 %v349, 56
        %v464 = vpop.permute.xlu0 %463
        %465 = vrot.lane.b32.xlu0 %v352, 56
        %v466 = vpop.permute.xlu0 %465
        %467 = vrot.lane.b32.xlu0 %v357, 56
        %v468 = vpop.permute.xlu0 %467
        %469 = vrot.lane.b32.xlu0 %v360, 56
        %v470 = vpop.permute.xlu0 %469
        %475 = vrot.lane.b32.xlu0 %v349, 48
        %v476 = vpop.permute.xlu0 %475
        %477 = vrot.lane.b32.xlu0 %v352, 48
        %v478 = vpop.permute.xlu0 %477
        %479 = vrot.lane.b32.xlu0 %v357, 48
        %v480 = vpop.permute.xlu0 %479
        %481 = vrot.lane.b32.xlu0 %v360, 48
        %v482 = vpop.permute.xlu0 %481
        %487 = vrot.lane.b32.xlu0 %v349, 40
        %v488 = vpop.permute.xlu0 %487
        %489 = vrot.lane.b32.xlu0 %v352, 40
        %v490 = vpop.permute.xlu0 %489
        %491 = vrot.lane.b32.xlu0 %v357, 40
        %v492 = vpop.permute.xlu0 %491
        %493 = vrot.lane.b32.xlu0 %v360, 40
        %v494 = vpop.permute.xlu0 %493
        %v499 = vcombine.low %v349, %v380
        %v500 = vcombine.high %v349, %v380
        %v502 = vunpack.c.l.s4 1983009808
        %v503 = vunpack.c.0.s8 %v502
        %v504 = vlaneseq
        %v505 = vshrl.u32 %v504, 7
        %v506 = vsub.s32 %v503, %v505
        %v507 = vrot.slane %v499, %v506
        %v509 = vunpack.c.l.s4 1983009808
        %v510 = vunpack.c.0.s8 %v509
        %v511 = vlaneseq
        %v512 = vshrl.u32 %v511, 7
        %v513 = vsub.s32 %v510, %v512
        %v514 = vrot.slane %v500, %v513
        %v515 = vcombine.low %v368, %v392
        %v516 = vcombine.high %v368, %v392
        %v518 = vunpack.c.l.s4 1983009808
        %v519 = vunpack.c.0.s8 %v518
        %v520 = vlaneseq
        %v521 = vshrl.u32 %v520, 7
        %v522 = vsub.s32 %v519, %v521
        %v523 = vrot.slane %v515, %v522
        %v525 = vunpack.c.l.s4 1983009808
        %v526 = vunpack.c.0.s8 %v525
        %v527 = vlaneseq
        %v528 = vshrl.u32 %v527, 7
        %v529 = vsub.s32 %v526, %v528
        %v530 = vrot.slane %v516, %v529
        %v531 = vcombine.low %v404, %v428
        %v532 = vcombine.high %v404, %v428
        %v534 = vunpack.c.l.s4 1983009808
        %v535 = vunpack.c.0.s8 %v534
        %v536 = vlaneseq
        %v537 = vshrl.u32 %v536, 7
        %v538 = vsub.s32 %v535, %v537
        %v539 = vrot.slane %v531, %v538
        %v541 = vunpack.c.l.s4 1983009808
        %v542 = vunpack.c.0.s8 %v541
        %v543 = vlaneseq
        %v544 = vshrl.u32 %v543, 7
        %v545 = vsub.s32 %v542, %v544
        %v546 = vrot.slane %v532, %v545
        %v547 = vcombine.low %v416, %v440
        %v548 = vcombine.high %v416, %v440
        %v550 = vunpack.c.l.s4 1983009808
        %v551 = vunpack.c.0.s8 %v550
        %v552 = vlaneseq
        %v553 = vshrl.u32 %v552, 7
        %v554 = vsub.s32 %v551, %v553
        %v555 = vrot.slane %v547, %v554
        %v557 = vunpack.c.l.s4 1983009808
        %v558 = vunpack.c.0.s8 %v557
        %v559 = vlaneseq
        %v560 = vshrl.u32 %v559, 7
        %v561 = vsub.s32 %v558, %v560
        %v562 = vrot.slane %v548, %v561
        %v563 = vcombine.low %v507, %v523
        %v564 = vcombine.high %v507, %v523
        %v566 = vunpack.c.l.s4 1934713408
        %v567 = vunpack.c.0.s8 %v566
        %v568 = vlaneseq
        %v569 = vshrl.u32 %v568, 7
        %v570 = vsub.s32 %v567, %v569
        %v571 = vrot.slane %v563, %v570
        %v573 = vunpack.c.l.s4 1934713408
        %v574 = vunpack.c.0.s8 %v573
        %v575 = vlaneseq
        %v576 = vshrl.u32 %v575, 7
        %v577 = vsub.s32 %v574, %v576
        %v578 = vrot.slane %v564, %v577
        %v579 = vcombine.low %v514, %v530
        %v580 = vcombine.high %v514, %v530
        %v582 = vunpack.c.l.s4 1934713408
        %v583 = vunpack.c.0.s8 %v582
        %v584 = vlaneseq
        %v585 = vshrl.u32 %v584, 7
        %v586 = vsub.s32 %v583, %v585
        %v587 = vrot.slane %v579, %v586
        %v589 = vunpack.c.l.s4 1934713408
        %v590 = vunpack.c.0.s8 %v589
        %v591 = vlaneseq
        %v592 = vshrl.u32 %v591, 7
        %v593 = vsub.s32 %v590, %v592
        %v594 = vrot.slane %v580, %v593
        %v595 = vcombine.low %v539, %v555
        %v596 = vcombine.high %v539, %v555
        %v598 = vunpack.c.l.s4 1934713408
        %v599 = vunpack.c.0.s8 %v598
        %v600 = vlaneseq
        %v601 = vshrl.u32 %v600, 7
        %v602 = vsub.s32 %v599, %v601
        %v603 = vrot.slane %v595, %v602
        %v605 = vunpack.c.l.s4 1934713408
        %v606 = vunpack.c.0.s8 %v605
        %v607 = vlaneseq
        %v608 = vshrl.u32 %v607, 7
        %v609 = vsub.s32 %v606, %v608
        %v610 = vrot.slane %v596, %v609
        %v611 = vcombine.low %v546, %v562
        %v612 = vcombine.high %v546, %v562
        %v614 = vunpack.c.l.s4 1934713408
        %v615 = vunpack.c.0.s8 %v614
        %v616 = vlaneseq
        %v617 = vshrl.u32 %v616, 7
        %v618 = vsub.s32 %v615, %v617
        %v619 = vrot.slane %v611, %v618
        %v621 = vunpack.c.l.s4 1934713408
        %v622 = vunpack.c.0.s8 %v621
        %v623 = vlaneseq
        %v624 = vshrl.u32 %v623, 7
        %v625 = vsub.s32 %v622, %v624
        %v626 = vrot.slane %v612, %v625
        %v627 = vcombine.low %v571, %v603
        %v628 = vcombine.high %v571, %v603
        %v629 = vcombine.low %v578, %v610
        %v630 = vcombine.high %v578, %v610
        %v631 = vcombine.low %v587, %v619
        %v632 = vcombine.high %v587, %v619
        %v633 = vcombine.low %v594, %v626
        %v634 = vcombine.high %v594, %v626
        %v635 = vcombine.low %v452, %v476
        %v636 = vcombine.high %v452, %v476
        %v638 = vunpack.c.l.s4 1983009808
        %v639 = vunpack.c.0.s8 %v638
        %v640 = vlaneseq
        %v641 = vshrl.u32 %v640, 7
        %v642 = vsub.s32 %v639, %v641
        %v643 = vrot.slane %v635, %v642
        %v645 = vunpack.c.l.s4 1983009808
        %v646 = vunpack.c.0.s8 %v645
        %v647 = vlaneseq
        %v648 = vshrl.u32 %v647, 7
        %v649 = vsub.s32 %v646, %v648
        %v650 = vrot.slane %v636, %v649
        %v651 = vcombine.low %v464, %v488
        %v652 = vcombine.high %v464, %v488
        %v654 = vunpack.c.l.s4 1983009808
        %v655 = vunpack.c.0.s8 %v654
        %v656 = vlaneseq
        %v657 = vshrl.u32 %v656, 7
        %v658 = vsub.s32 %v655, %v657
        %v659 = vrot.slane %v651, %v658
        %v661 = vunpack.c.l.s4 1983009808
        %v662 = vunpack.c.0.s8 %v661
        %v663 = vlaneseq
        %v664 = vshrl.u32 %v663, 7
        %v665 = vsub.s32 %v662, %v664
        %v666 = vrot.slane %v652, %v665
        %v667 = vcombine.low %v643, %v659
        %v668 = vcombine.high %v643, %v659
        %v670 = vunpack.c.l.s4 1934713408
        %v671 = vunpack.c.0.s8 %v670
        %v672 = vlaneseq
        %v673 = vshrl.u32 %v672, 7
        %v674 = vsub.s32 %v671, %v673
        %v675 = vrot.slane %v667, %v674
        %v677 = vunpack.c.l.s4 1934713408
        %v678 = vunpack.c.0.s8 %v677
        %v679 = vlaneseq
        %v680 = vshrl.u32 %v679, 7
        %v681 = vsub.s32 %v678, %v680
        %v682 = vrot.slane %v668, %v681
        %v683 = vcombine.low %v650, %v666
        %v684 = vcombine.high %v650, %v666
        %v686 = vunpack.c.l.s4 1934713408
        %v687 = vunpack.c.0.s8 %v686
        %v688 = vlaneseq
        %v689 = vshrl.u32 %v688, 7
        %v690 = vsub.s32 %v687, %v689
        %v691 = vrot.slane %v683, %v690
        %v693 = vunpack.c.l.s4 1934713408
        %v694 = vunpack.c.0.s8 %v693
        %v695 = vlaneseq
        %v696 = vshrl.u32 %v695, 7
        %v697 = vsub.s32 %v694, %v696
        %v698 = vrot.slane %v684, %v697
        %v699 = vcombine.high %v675, 0.0
        %v700 = vcombine.high %v682, 0.0
        %v701 = vcombine.high %v691, 0.0
        %v702 = vcombine.high %v698, 0.0
        %v703 = vcombine.low %v352, %v382
        %v704 = vcombine.high %v352, %v382
        %v706 = vunpack.c.l.s4 1983009808
        %v707 = vunpack.c.0.s8 %v706
        %v708 = vlaneseq
        %v709 = vshrl.u32 %v708, 7
        %v710 = vsub.s32 %v707, %v709
        %v711 = vrot.slane %v703, %v710
        %v713 = vunpack.c.l.s4 1983009808
        %v714 = vunpack.c.0.s8 %v713
        %v715 = vlaneseq
        %v716 = vshrl.u32 %v715, 7
        %v717 = vsub.s32 %v714, %v716
        %v718 = vrot.slane %v704, %v717
        %v719 = vcombine.low %v370, %v394
        %v720 = vcombine.high %v370, %v394
        %v722 = vunpack.c.l.s4 1983009808
        %v723 = vunpack.c.0.s8 %v722
        %v724 = vlaneseq
        %v725 = vshrl.u32 %v724, 7
        %v726 = vsub.s32 %v723, %v725
        %v727 = vrot.slane %v719, %v726
        %v729 = vunpack.c.l.s4 1983009808
        %v730 = vunpack.c.0.s8 %v729
        %v731 = vlaneseq
        %v732 = vshrl.u32 %v731, 7
        %v733 = vsub.s32 %v730, %v732
        %v734 = vrot.slane %v720, %v733
        %v735 = vcombine.low %v406, %v430
        %v736 = vcombine.high %v406, %v430
        %v738 = vunpack.c.l.s4 1983009808
        %v739 = vunpack.c.0.s8 %v738
        %v740 = vlaneseq
        %v741 = vshrl.u32 %v740, 7
        %v742 = vsub.s32 %v739, %v741
        %v743 = vrot.slane %v735, %v742
        %v745 = vunpack.c.l.s4 1983009808
        %v746 = vunpack.c.0.s8 %v745
        %v747 = vlaneseq
        %v748 = vshrl.u32 %v747, 7
        %v749 = vsub.s32 %v746, %v748
        %v750 = vrot.slane %v736, %v749
        %v751 = vcombine.low %v418, %v442
        %v752 = vcombine.high %v418, %v442
        %v754 = vunpack.c.l.s4 1983009808
        %v755 = vunpack.c.0.s8 %v754
        %v756 = vlaneseq
        %v757 = vshrl.u32 %v756, 7
        %v758 = vsub.s32 %v755, %v757
        %v759 = vrot.slane %v751, %v758
        %v761 = vunpack.c.l.s4 1983009808
        %v762 = vunpack.c.0.s8 %v761
        %v763 = vlaneseq
        %v764 = vshrl.u32 %v763, 7
        %v765 = vsub.s32 %v762, %v764
        %v766 = vrot.slane %v752, %v765
        %v767 = vcombine.low %v711, %v727
        %v768 = vcombine.high %v711, %v727
        %v770 = vunpack.c.l.s4 1934713408
        %v771 = vunpack.c.0.s8 %v770
        %v772 = vlaneseq
        %v773 = vshrl.u32 %v772, 7
        %v774 = vsub.s32 %v771, %v773
        %v775 = vrot.slane %v767, %v774
        %v777 = vunpack.c.l.s4 1934713408
        %v778 = vunpack.c.0.s8 %v777
        %v779 = vlaneseq
        %v780 = vshrl.u32 %v779, 7
        %v781 = vsub.s32 %v778, %v780
        %v782 = vrot.slane %v768, %v781
        %v783 = vcombine.low %v718, %v734
        %v784 = vcombine.high %v718, %v734
        %v786 = vunpack.c.l.s4 1934713408
        %v787 = vunpack.c.0.s8 %v786
        %v788 = vlaneseq
        %v789 = vshrl.u32 %v788, 7
        %v790 = vsub.s32 %v787, %v789
        %v791 = vrot.slane %v783, %v790
        %v793 = vunpack.c.l.s4 1934713408
        %v794 = vunpack.c.0.s8 %v793
        %v795 = vlaneseq
        %v796 = vshrl.u32 %v795, 7
        %v797 = vsub.s32 %v794, %v796
        %v798 = vrot.slane %v784, %v797
        %v799 = vcombine.low %v743, %v759
        %v800 = vcombine.high %v743, %v759
        %v802 = vunpack.c.l.s4 1934713408
        %v803 = vunpack.c.0.s8 %v802
        %v804 = vlaneseq
        %v805 = vshrl.u32 %v804, 7
        %v806 = vsub.s32 %v803, %v805
        %v807 = vrot.slane %v799, %v806
        %v809 = vunpack.c.l.s4 1934713408
        %v810 = vunpack.c.0.s8 %v809
        %v811 = vlaneseq
        %v812 = vshrl.u32 %v811, 7
        %v813 = vsub.s32 %v810, %v812
        %v814 = vrot.slane %v800, %v813
        %v815 = vcombine.low %v750, %v766
        %v816 = vcombine.high %v750, %v766
        %v818 = vunpack.c.l.s4 1934713408
        %v819 = vunpack.c.0.s8 %v818
        %v820 = vlaneseq
        %v821 = vshrl.u32 %v820, 7
        %v822 = vsub.s32 %v819, %v821
        %v823 = vrot.slane %v815, %v822
        %v825 = vunpack.c.l.s4 1934713408
        %v826 = vunpack.c.0.s8 %v825
        %v827 = vlaneseq
        %v828 = vshrl.u32 %v827, 7
        %v829 = vsub.s32 %v826, %v828
        %v830 = vrot.slane %v816, %v829
        %v831 = vcombine.low %v775, %v807
        %v832 = vcombine.high %v775, %v807
        %v833 = vcombine.low %v782, %v814
        %v834 = vcombine.high %v782, %v814
        %v835 = vcombine.low %v791, %v823
        %v836 = vcombine.high %v791, %v823
        %v837 = vcombine.low %v798, %v830
        %v838 = vcombine.high %v798, %v830
        %v839 = vcombine.low %v454, %v478
        %v840 = vcombine.high %v454, %v478
        %v842 = vunpack.c.l.s4 1983009808
        %v843 = vunpack.c.0.s8 %v842
        %v844 = vlaneseq
        %v845 = vshrl.u32 %v844, 7
        %v846 = vsub.s32 %v843, %v845
        %v847 = vrot.slane %v839, %v846
        %v849 = vunpack.c.l.s4 1983009808
        %v850 = vunpack.c.0.s8 %v849
        %v851 = vlaneseq
        %v852 = vshrl.u32 %v851, 7
        %v853 = vsub.s32 %v850, %v852
        %v854 = vrot.slane %v840, %v853
        %v855 = vcombine.low %v466, %v490
        %v856 = vcombine.high %v466, %v490
        %v858 = vunpack.c.l.s4 1983009808
        %v859 = vunpack.c.0.s8 %v858
        %v860 = vlaneseq
        %v861 = vshrl.u32 %v860, 7
        %v862 = vsub.s32 %v859, %v861
        %v863 = vrot.slane %v855, %v862
        %v865 = vunpack.c.l.s4 1983009808
        %v866 = vunpack.c.0.s8 %v865
        %v867 = vlaneseq
        %v868 = vshrl.u32 %v867, 7
        %v869 = vsub.s32 %v866, %v868
        %v870 = vrot.slane %v856, %v869
        %v871 = vcombine.low %v847, %v863
        %v872 = vcombine.high %v847, %v863
        %v874 = vunpack.c.l.s4 1934713408
        %v875 = vunpack.c.0.s8 %v874
        %v876 = vlaneseq
        %v877 = vshrl.u32 %v876, 7
        %v878 = vsub.s32 %v875, %v877
        %v879 = vrot.slane %v871, %v878
        %v881 = vunpack.c.l.s4 1934713408
        %v882 = vunpack.c.0.s8 %v881
        %v883 = vlaneseq
        %v884 = vshrl.u32 %v883, 7
        %v885 = vsub.s32 %v882, %v884
        %v886 = vrot.slane %v872, %v885
        %v887 = vcombine.low %v854, %v870
        %v888 = vcombine.high %v854, %v870
        %v890 = vunpack.c.l.s4 1934713408
        %v891 = vunpack.c.0.s8 %v890
        %v892 = vlaneseq
        %v893 = vshrl.u32 %v892, 7
        %v894 = vsub.s32 %v891, %v893
        %v895 = vrot.slane %v887, %v894
        %v897 = vunpack.c.l.s4 1934713408
        %v898 = vunpack.c.0.s8 %v897
        %v899 = vlaneseq
        %v900 = vshrl.u32 %v899, 7
        %v901 = vsub.s32 %v898, %v900
        %v902 = vrot.slane %v888, %v901
        %v903 = vcombine.high %v879, 0.0
        %v904 = vcombine.high %v886, 0.0
        %v905 = vcombine.high %v895, 0.0
        %v906 = vcombine.high %v902, 0.0
        %v907 = vcombine.low %v357, %v384
        %v908 = vcombine.high %v357, %v384
        %v910 = vunpack.c.l.s4 1983009808
        %v911 = vunpack.c.0.s8 %v910
        %v912 = vlaneseq
        %v913 = vshrl.u32 %v912, 7
        %v914 = vsub.s32 %v911, %v913
        %v915 = vrot.slane %v907, %v914
        %v917 = vunpack.c.l.s4 1983009808
        %v918 = vunpack.c.0.s8 %v917
        %v919 = vlaneseq
        %v920 = vshrl.u32 %v919, 7
        %v921 = vsub.s32 %v918, %v920
        %v922 = vrot.slane %v908, %v921
        %v923 = vcombine.low %v372, %v396
        %v924 = vcombine.high %v372, %v396
        %v926 = vunpack.c.l.s4 1983009808
        %v927 = vunpack.c.0.s8 %v926
        %v928 = vlaneseq
        %v929 = vshrl.u32 %v928, 7
        %v930 = vsub.s32 %v927, %v929
        %v931 = vrot.slane %v923, %v930
        %v933 = vunpack.c.l.s4 1983009808
        %v934 = vunpack.c.0.s8 %v933
        %v935 = vlaneseq
        %v936 = vshrl.u32 %v935, 7
        %v937 = vsub.s32 %v934, %v936
        %v938 = vrot.slane %v924, %v937
        %v939 = vcombine.low %v408, %v432
        %v940 = vcombine.high %v408, %v432
        %v942 = vunpack.c.l.s4 1983009808
        %v943 = vunpack.c.0.s8 %v942
        %v944 = vlaneseq
        %v945 = vshrl.u32 %v944, 7
        %v946 = vsub.s32 %v943, %v945
        %v947 = vrot.slane %v939, %v946
        %v949 = vunpack.c.l.s4 1983009808
        %v950 = vunpack.c.0.s8 %v949
        %v951 = vlaneseq
        %v952 = vshrl.u32 %v951, 7
        %v953 = vsub.s32 %v950, %v952
        %v954 = vrot.slane %v940, %v953
        %v955 = vcombine.low %v420, %v444
        %v956 = vcombine.high %v420, %v444
        %v958 = vunpack.c.l.s4 1983009808
        %v959 = vunpack.c.0.s8 %v958
        %v960 = vlaneseq
        %v961 = vshrl.u32 %v960, 7
        %v962 = vsub.s32 %v959, %v961
        %v963 = vrot.slane %v955, %v962
        %v965 = vunpack.c.l.s4 1983009808
        %v966 = vunpack.c.0.s8 %v965
        %v967 = vlaneseq
        %v968 = vshrl.u32 %v967, 7
        %v969 = vsub.s32 %v966, %v968
        %v970 = vrot.slane %v956, %v969
        %v971 = vcombine.low %v915, %v931
        %v972 = vcombine.high %v915, %v931
        %v974 = vunpack.c.l.s4 1934713408
        %v975 = vunpack.c.0.s8 %v974
        %v976 = vlaneseq
        %v977 = vshrl.u32 %v976, 7
        %v978 = vsub.s32 %v975, %v977
        %v979 = vrot.slane %v971, %v978
        %v981 = vunpack.c.l.s4 1934713408
        %v982 = vunpack.c.0.s8 %v981
        %v983 = vlaneseq
        %v984 = vshrl.u32 %v983, 7
        %v985 = vsub.s32 %v982, %v984
        %v986 = vrot.slane %v972, %v985
        %v987 = vcombine.low %v922, %v938
        %v988 = vcombine.high %v922, %v938
        %v990 = vunpack.c.l.s4 1934713408
        %v991 = vunpack.c.0.s8 %v990
        %v992 = vlaneseq
        %v993 = vshrl.u32 %v992, 7
        %v994 = vsub.s32 %v991, %v993
        %v995 = vrot.slane %v987, %v994
        %v997 = vunpack.c.l.s4 1934713408
        %v998 = vunpack.c.0.s8 %v997
        %v999 = vlaneseq
        %v1000 = vshrl.u32 %v999, 7
        %v1001 = vsub.s32 %v998, %v1000
        %v1002 = vrot.slane %v988, %v1001
        %v1003 = vcombine.low %v947, %v963
        %v1004 = vcombine.high %v947, %v963
        %v1006 = vunpack.c.l.s4 1934713408
        %v1007 = vunpack.c.0.s8 %v1006
        %v1008 = vlaneseq
        %v1009 = vshrl.u32 %v1008, 7
        %v1010 = vsub.s32 %v1007, %v1009
        %v1011 = vrot.slane %v1003, %v1010
        %v1013 = vunpack.c.l.s4 1934713408
        %v1014 = vunpack.c.0.s8 %v1013
        %v1015 = vlaneseq
        %v1016 = vshrl.u32 %v1015, 7
        %v1017 = vsub.s32 %v1014, %v1016
        %v1018 = vrot.slane %v1004, %v1017
        %v1019 = vcombine.low %v954, %v970
        %v1020 = vcombine.high %v954, %v970
        %v1022 = vunpack.c.l.s4 1934713408
        %v1023 = vunpack.c.0.s8 %v1022
        %v1024 = vlaneseq
        %v1025 = vshrl.u32 %v1024, 7
        %v1026 = vsub.s32 %v1023, %v1025
        %v1027 = vrot.slane %v1019, %v1026
        %v1029 = vunpack.c.l.s4 1934713408
        %v1030 = vunpack.c.0.s8 %v1029
        %v1031 = vlaneseq
        %v1032 = vshrl.u32 %v1031, 7
        %v1033 = vsub.s32 %v1030, %v1032
        %v1034 = vrot.slane %v1020, %v1033
        %v1035 = vcombine.low %v979, %v1011
        %v1036 = vcombine.high %v979, %v1011
        %v1037 = vcombine.low %v986, %v1018
        %v1038 = vcombine.high %v986, %v1018
        %v1039 = vcombine.low %v995, %v1027
        %v1040 = vcombine.high %v995, %v1027
        %v1041 = vcombine.low %v1002, %v1034
        %v1042 = vcombine.high %v1002, %v1034
        %v1043 = vcombine.low %v456, %v480
        %v1044 = vcombine.high %v456, %v480
        %v1046 = vunpack.c.l.s4 1983009808
        %v1047 = vunpack.c.0.s8 %v1046
        %v1048 = vlaneseq
        %v1049 = vshrl.u32 %v1048, 7
        %v1050 = vsub.s32 %v1047, %v1049
        %v1051 = vrot.slane %v1043, %v1050
        %v1053 = vunpack.c.l.s4 1983009808
        %v1054 = vunpack.c.0.s8 %v1053
        %v1055 = vlaneseq
        %v1056 = vshrl.u32 %v1055, 7
        %v1057 = vsub.s32 %v1054, %v1056
        %v1058 = vrot.slane %v1044, %v1057
        %v1059 = vcombine.low %v468, %v492
        %v1060 = vcombine.high %v468, %v492
        %v1062 = vunpack.c.l.s4 1983009808
        %v1063 = vunpack.c.0.s8 %v1062
        %v1064 = vlaneseq
        %v1065 = vshrl.u32 %v1064, 7
        %v1066 = vsub.s32 %v1063, %v1065
        %v1067 = vrot.slane %v1059, %v1066
        %v1069 = vunpack.c.l.s4 1983009808
        %v1070 = vunpack.c.0.s8 %v1069
        %v1071 = vlaneseq
        %v1072 = vshrl.u32 %v1071, 7
        %v1073 = vsub.s32 %v1070, %v1072
        %v1074 = vrot.slane %v1060, %v1073
        %v1075 = vcombine.low %v1051, %v1067
        %v1076 = vcombine.high %v1051, %v1067
        %v1078 = vunpack.c.l.s4 1934713408
        %v1079 = vunpack.c.0.s8 %v1078
        %v1080 = vlaneseq
        %v1081 = vshrl.u32 %v1080, 7
        %v1082 = vsub.s32 %v1079, %v1081
        %v1083 = vrot.slane %v1075, %v1082
        %v1085 = vunpack.c.l.s4 1934713408
        %v1086 = vunpack.c.0.s8 %v1085
        %v1087 = vlaneseq
        %v1088 = vshrl.u32 %v1087, 7
        %v1089 = vsub.s32 %v1086, %v1088
        %v1090 = vrot.slane %v1076, %v1089
        %v1091 = vcombine.low %v1058, %v1074
        %v1092 = vcombine.high %v1058, %v1074
        %v1094 = vunpack.c.l.s4 1934713408
        %v1095 = vunpack.c.0.s8 %v1094
        %v1096 = vlaneseq
        %v1097 = vshrl.u32 %v1096, 7
        %v1098 = vsub.s32 %v1095, %v1097
        %v1099 = vrot.slane %v1091, %v1098
        %v1101 = vunpack.c.l.s4 1934713408
        %v1102 = vunpack.c.0.s8 %v1101
        %v1103 = vlaneseq
        %v1104 = vshrl.u32 %v1103, 7
        %v1105 = vsub.s32 %v1102, %v1104
        %v1106 = vrot.slane %v1092, %v1105
        %v1107 = vcombine.high %v1083, 0.0
        %v1108 = vcombine.high %v1090, 0.0
        %v1109 = vcombine.high %v1099, 0.0
        %v1110 = vcombine.high %v1106, 0.0
        %v1111 = vcombine.low %v360, %v386
        %v1112 = vcombine.high %v360, %v386
        %v1114 = vunpack.c.l.s4 1983009808
        %v1115 = vunpack.c.0.s8 %v1114
        %v1116 = vlaneseq
        %v1117 = vshrl.u32 %v1116, 7
        %v1118 = vsub.s32 %v1115, %v1117
        %v1119 = vrot.slane %v1111, %v1118
        %v1121 = vunpack.c.l.s4 1983009808
        %v1122 = vunpack.c.0.s8 %v1121
        %v1123 = vlaneseq
        %v1124 = vshrl.u32 %v1123, 7
        %v1125 = vsub.s32 %v1122, %v1124
        %v1126 = vrot.slane %v1112, %v1125
        %v1127 = vcombine.low %v374, %v398
        %v1128 = vcombine.high %v374, %v398
        %v1130 = vunpack.c.l.s4 1983009808
        %v1131 = vunpack.c.0.s8 %v1130
        %v1132 = vlaneseq
        %v1133 = vshrl.u32 %v1132, 7
        %v1134 = vsub.s32 %v1131, %v1133
        %v1135 = vrot.slane %v1127, %v1134
        %v1137 = vunpack.c.l.s4 1983009808
        %v1138 = vunpack.c.0.s8 %v1137
        %v1139 = vlaneseq
        %v1140 = vshrl.u32 %v1139, 7
        %v1141 = vsub.s32 %v1138, %v1140
        %v1142 = vrot.slane %v1128, %v1141
        %v1143 = vcombine.low %v410, %v434
        %v1144 = vcombine.high %v410, %v434
        %v1146 = vunpack.c.l.s4 1983009808
        %v1147 = vunpack.c.0.s8 %v1146
        %v1148 = vlaneseq
        %v1149 = vshrl.u32 %v1148, 7
        %v1150 = vsub.s32 %v1147, %v1149
        %v1151 = vrot.slane %v1143, %v1150
        %v1153 = vunpack.c.l.s4 1983009808
        %v1154 = vunpack.c.0.s8 %v1153
        %v1155 = vlaneseq
        %v1156 = vshrl.u32 %v1155, 7
        %v1157 = vsub.s32 %v1154, %v1156
        %v1158 = vrot.slane %v1144, %v1157
        %v1159 = vcombine.low %v422, %v446
        %v1160 = vcombine.high %v422, %v446
        %v1162 = vunpack.c.l.s4 1983009808
        %v1163 = vunpack.c.0.s8 %v1162
        %v1164 = vlaneseq
        %v1165 = vshrl.u32 %v1164, 7
        %v1166 = vsub.s32 %v1163, %v1165
        %v1167 = vrot.slane %v1159, %v1166
        %v1169 = vunpack.c.l.s4 1983009808
        %v1170 = vunpack.c.0.s8 %v1169
        %v1171 = vlaneseq
        %v1172 = vshrl.u32 %v1171, 7
        %v1173 = vsub.s32 %v1170, %v1172
        %v1174 = vrot.slane %v1160, %v1173
        %v1175 = vcombine.low %v1119, %v1135
        %v1176 = vcombine.high %v1119, %v1135
        %v1178 = vunpack.c.l.s4 1934713408
        %v1179 = vunpack.c.0.s8 %v1178
        %v1180 = vlaneseq
        %v1181 = vshrl.u32 %v1180, 7
        %v1182 = vsub.s32 %v1179, %v1181
        %v1183 = vrot.slane %v1175, %v1182
        %v1185 = vunpack.c.l.s4 1934713408
        %v1186 = vunpack.c.0.s8 %v1185
        %v1187 = vlaneseq
        %v1188 = vshrl.u32 %v1187, 7
        %v1189 = vsub.s32 %v1186, %v1188
        %v1190 = vrot.slane %v1176, %v1189
        %v1191 = vcombine.low %v1126, %v1142
        %v1192 = vcombine.high %v1126, %v1142
        %v1194 = vunpack.c.l.s4 1934713408
        %v1195 = vunpack.c.0.s8 %v1194
        %v1196 = vlaneseq
        %v1197 = vshrl.u32 %v1196, 7
        %v1198 = vsub.s32 %v1195, %v1197
        %v1199 = vrot.slane %v1191, %v1198
        %v1201 = vunpack.c.l.s4 1934713408
        %v1202 = vunpack.c.0.s8 %v1201
        %v1203 = vlaneseq
        %v1204 = vshrl.u32 %v1203, 7
        %v1205 = vsub.s32 %v1202, %v1204
        %v1206 = vrot.slane %v1192, %v1205
        %v1207 = vcombine.low %v1151, %v1167
        %v1208 = vcombine.high %v1151, %v1167
        %v1210 = vunpack.c.l.s4 1934713408
        %v1211 = vunpack.c.0.s8 %v1210
        %v1212 = vlaneseq
        %v1213 = vshrl.u32 %v1212, 7
        %v1214 = vsub.s32 %v1211, %v1213
        %v1215 = vrot.slane %v1207, %v1214
        %v1217 = vunpack.c.l.s4 1934713408
        %v1218 = vunpack.c.0.s8 %v1217
        %v1219 = vlaneseq
        %v1220 = vshrl.u32 %v1219, 7
        %v1221 = vsub.s32 %v1218, %v1220
        %v1222 = vrot.slane %v1208, %v1221
        %v1223 = vcombine.low %v1158, %v1174
        %v1224 = vcombine.high %v1158, %v1174
        %v1226 = vunpack.c.l.s4 1934713408
        %v1227 = vunpack.c.0.s8 %v1226
        %v1228 = vlaneseq
        %v1229 = vshrl.u32 %v1228, 7
        %v1230 = vsub.s32 %v1227, %v1229
        %v1231 = vrot.slane %v1223, %v1230
        %v1233 = vunpack.c.l.s4 1934713408
        %v1234 = vunpack.c.0.s8 %v1233
        %v1235 = vlaneseq
        %v1236 = vshrl.u32 %v1235, 7
        %v1237 = vsub.s32 %v1234, %v1236
        %v1238 = vrot.slane %v1224, %v1237
        %v1239 = vcombine.low %v1183, %v1215
        %v1240 = vcombine.high %v1183, %v1215
        %v1241 = vcombine.low %v1190, %v1222
        %v1242 = vcombine.high %v1190, %v1222
        %v1243 = vcombine.low %v1199, %v1231
        %v1244 = vcombine.high %v1199, %v1231
        %v1245 = vcombine.low %v1206, %v1238
        %v1246 = vcombine.high %v1206, %v1238
        %v1247 = vcombine.low %v458, %v482
        %v1248 = vcombine.high %v458, %v482
        %v1250 = vunpack.c.l.s4 1983009808
        %v1251 = vunpack.c.0.s8 %v1250
        %v1252 = vlaneseq
        %v1253 = vshrl.u32 %v1252, 7
        %v1254 = vsub.s32 %v1251, %v1253
        %v1255 = vrot.slane %v1247, %v1254
        %v1257 = vunpack.c.l.s4 1983009808
        %v1258 = vunpack.c.0.s8 %v1257
        %v1259 = vlaneseq
        %v1260 = vshrl.u32 %v1259, 7
        %v1261 = vsub.s32 %v1258, %v1260
        %v1262 = vrot.slane %v1248, %v1261
        %v1263 = vcombine.low %v470, %v494
        %v1264 = vcombine.high %v470, %v494
        %v1266 = vunpack.c.l.s4 1983009808
        %v1267 = vunpack.c.0.s8 %v1266
        %v1268 = vlaneseq
        %v1269 = vshrl.u32 %v1268, 7
        %v1270 = vsub.s32 %v1267, %v1269
        %v1271 = vrot.slane %v1263, %v1270
        %v1273 = vunpack.c.l.s4 1983009808
        %v1274 = vunpack.c.0.s8 %v1273
        %v1275 = vlaneseq
        %v1276 = vshrl.u32 %v1275, 7
        %v1277 = vsub.s32 %v1274, %v1276
        %v1278 = vrot.slane %v1264, %v1277
        %v1279 = vcombine.low %v1255, %v1271
        %v1280 = vcombine.high %v1255, %v1271
        %v1282 = vunpack.c.l.s4 1934713408
        %v1283 = vunpack.c.0.s8 %v1282
        %v1284 = vlaneseq
        %v1285 = vshrl.u32 %v1284, 7
        %v1286 = vsub.s32 %v1283, %v1285
        %v1287 = vrot.slane %v1279, %v1286
        %v1289 = vunpack.c.l.s4 1934713408
        %v1290 = vunpack.c.0.s8 %v1289
        %v1291 = vlaneseq
        %v1292 = vshrl.u32 %v1291, 7
        %v1293 = vsub.s32 %v1290, %v1292
        %v1294 = vrot.slane %v1280, %v1293
        %v1295 = vcombine.low %v1262, %v1278
        %v1296 = vcombine.high %v1262, %v1278
        %v1298 = vunpack.c.l.s4 1934713408
        %v1299 = vunpack.c.0.s8 %v1298
        %v1300 = vlaneseq
        %v1301 = vshrl.u32 %v1300, 7
        %v1302 = vsub.s32 %v1299, %v1301
        %v1303 = vrot.slane %v1295, %v1302
        %v1305 = vunpack.c.l.s4 1934713408
        %v1306 = vunpack.c.0.s8 %v1305
        %v1307 = vlaneseq
        %v1308 = vshrl.u32 %v1307, 7
        %v1309 = vsub.s32 %v1306, %v1308
        %v1310 = vrot.slane %v1296, %v1309
        %v1311 = vcombine.high %v1287, 0.0
        %v1312 = vcombine.high %v1294, 0.0
        %v1313 = vcombine.high %v1303, 0.0
        %v1314 = vcombine.high %v1310, 0.0
        %v1315 = vcombine.low %v627, %v629
        %v1316 = vcombine.high %v627, %v629
        %v1318 = vunpack.c.l.s4 1983009808
        %v1319 = vunpack.c.0.s8 %v1318
        %v1320 = vlaneseq
        %v1321 = vshrl.u32 %v1320, 7
        %v1322 = vsub.s32 %v1319, %v1321
        %v1323 = vrot.slane %v1315, %v1322
        %v1325 = vunpack.c.l.s4 1983009808
        %v1326 = vunpack.c.0.s8 %v1325
        %v1327 = vlaneseq
        %v1328 = vshrl.u32 %v1327, 7
        %v1329 = vsub.s32 %v1326, %v1328
        %v1330 = vrot.slane %v1316, %v1329
        %v1331 = vcombine.low %v628, %v630
        %v1332 = vcombine.high %v628, %v630
        %v1334 = vunpack.c.l.s4 1983009808
        %v1335 = vunpack.c.0.s8 %v1334
        %v1336 = vlaneseq
        %v1337 = vshrl.u32 %v1336, 7
        %v1338 = vsub.s32 %v1335, %v1337
        %v1339 = vrot.slane %v1331, %v1338
        %v1341 = vunpack.c.l.s4 1983009808
        %v1342 = vunpack.c.0.s8 %v1341
        %v1343 = vlaneseq
        %v1344 = vshrl.u32 %v1343, 7
        %v1345 = vsub.s32 %v1342, %v1344
        %v1346 = vrot.slane %v1332, %v1345
        %v1347 = vcombine.low %v631, %v633
        %v1348 = vcombine.high %v631, %v633
        %v1350 = vunpack.c.l.s4 1983009808
        %v1351 = vunpack.c.0.s8 %v1350
        %v1352 = vlaneseq
        %v1353 = vshrl.u32 %v1352, 7
        %v1354 = vsub.s32 %v1351, %v1353
        %v1355 = vrot.slane %v1347, %v1354
        %v1357 = vunpack.c.l.s4 1983009808
        %v1358 = vunpack.c.0.s8 %v1357
        %v1359 = vlaneseq
        %v1360 = vshrl.u32 %v1359, 7
        %v1361 = vsub.s32 %v1358, %v1360
        %v1362 = vrot.slane %v1348, %v1361
        %v1363 = vcombine.low %v632, %v634
        %v1364 = vcombine.high %v632, %v634
        %v1366 = vunpack.c.l.s4 1983009808
        %v1367 = vunpack.c.0.s8 %v1366
        %v1368 = vlaneseq
        %v1369 = vshrl.u32 %v1368, 7
        %v1370 = vsub.s32 %v1367, %v1369
        %v1371 = vrot.slane %v1363, %v1370
        %v1373 = vunpack.c.l.s4 1983009808
        %v1374 = vunpack.c.0.s8 %v1373
        %v1375 = vlaneseq
        %v1376 = vshrl.u32 %v1375, 7
        %v1377 = vsub.s32 %v1374, %v1376
        %v1378 = vrot.slane %v1364, %v1377
        %v1379 = vcombine.low %v1323, %v1339
        %v1380 = vcombine.high %v1323, %v1339
        %v1382 = vunpack.c.l.s4 1934713408
        %v1383 = vunpack.c.0.s8 %v1382
        %v1384 = vlaneseq
        %v1385 = vshrl.u32 %v1384, 7
        %v1386 = vsub.s32 %v1383, %v1385
        %v1387 = vrot.slane %v1379, %v1386
        %v1389 = vunpack.c.l.s4 1934713408
        %v1390 = vunpack.c.0.s8 %v1389
        %v1391 = vlaneseq
        %v1392 = vshrl.u32 %v1391, 7
        %v1393 = vsub.s32 %v1390, %v1392
        %v1394 = vrot.slane %v1380, %v1393
        %v1395 = vcombine.low %v1330, %v1346
        %v1396 = vcombine.high %v1330, %v1346
        %v1398 = vunpack.c.l.s4 1934713408
        %v1399 = vunpack.c.0.s8 %v1398
        %v1400 = vlaneseq
        %v1401 = vshrl.u32 %v1400, 7
        %v1402 = vsub.s32 %v1399, %v1401
        %v1403 = vrot.slane %v1395, %v1402
        %v1405 = vunpack.c.l.s4 1934713408
        %v1406 = vunpack.c.0.s8 %v1405
        %v1407 = vlaneseq
        %v1408 = vshrl.u32 %v1407, 7
        %v1409 = vsub.s32 %v1406, %v1408
        %v1410 = vrot.slane %v1396, %v1409
        %v1411 = vcombine.low %v1355, %v1371
        %v1412 = vcombine.high %v1355, %v1371
        %v1414 = vunpack.c.l.s4 1934713408
        %v1415 = vunpack.c.0.s8 %v1414
        %v1416 = vlaneseq
        %v1417 = vshrl.u32 %v1416, 7
        %v1418 = vsub.s32 %v1415, %v1417
        %v1419 = vrot.slane %v1411, %v1418
        %v1421 = vunpack.c.l.s4 1934713408
        %v1422 = vunpack.c.0.s8 %v1421
        %v1423 = vlaneseq
        %v1424 = vshrl.u32 %v1423, 7
        %v1425 = vsub.s32 %v1422, %v1424
        %v1426 = vrot.slane %v1412, %v1425
        %v1427 = vcombine.low %v1362, %v1378
        %v1428 = vcombine.high %v1362, %v1378
        %v1430 = vunpack.c.l.s4 1934713408
        %v1431 = vunpack.c.0.s8 %v1430
        %v1432 = vlaneseq
        %v1433 = vshrl.u32 %v1432, 7
        %v1434 = vsub.s32 %v1431, %v1433
        %v1435 = vrot.slane %v1427, %v1434
        %v1437 = vunpack.c.l.s4 1934713408
        %v1438 = vunpack.c.0.s8 %v1437
        %v1439 = vlaneseq
        %v1440 = vshrl.u32 %v1439, 7
        %v1441 = vsub.s32 %v1438, %v1440
        %v1442 = vrot.slane %v1428, %v1441
        %v1443 = vcombine.low %v1387, %v1419
        %v1444 = vcombine.high %v1387, %v1419
        %v1445 = vcombine.low %v1394, %v1426
        %v1446 = vcombine.high %v1394, %v1426
        %v1447 = vcombine.low %v1403, %v1435
        %v1448 = vcombine.high %v1403, %v1435
        %v1449 = vcombine.low %v1410, %v1442
        %v1450 = vcombine.high %v1410, %v1442
        %v1451 = vcombine.low %v831, %v833
        %v1452 = vcombine.high %v831, %v833
        %v1454 = vunpack.c.l.s4 1983009808
        %v1455 = vunpack.c.0.s8 %v1454
        %v1456 = vlaneseq
        %v1457 = vshrl.u32 %v1456, 7
        %v1458 = vsub.s32 %v1455, %v1457
        %v1459 = vrot.slane %v1451, %v1458
        %v1461 = vunpack.c.l.s4 1983009808
        %v1462 = vunpack.c.0.s8 %v1461
        %v1463 = vlaneseq
        %v1464 = vshrl.u32 %v1463, 7
        %v1465 = vsub.s32 %v1462, %v1464
        %v1466 = vrot.slane %v1452, %v1465
        %v1467 = vcombine.low %v832, %v834
        %v1468 = vcombine.high %v832, %v834
        %v1470 = vunpack.c.l.s4 1983009808
        %v1471 = vunpack.c.0.s8 %v1470
        %v1472 = vlaneseq
        %v1473 = vshrl.u32 %v1472, 7
        %v1474 = vsub.s32 %v1471, %v1473
        %v1475 = vrot.slane %v1467, %v1474
        %v1477 = vunpack.c.l.s4 1983009808
        %v1478 = vunpack.c.0.s8 %v1477
        %v1479 = vlaneseq
        %v1480 = vshrl.u32 %v1479, 7
        %v1481 = vsub.s32 %v1478, %v1480
        %v1482 = vrot.slane %v1468, %v1481
        %v1483 = vcombine.low %v835, %v837
        %v1484 = vcombine.high %v835, %v837
        %v1486 = vunpack.c.l.s4 1983009808
        %v1487 = vunpack.c.0.s8 %v1486
        %v1488 = vlaneseq
        %v1489 = vshrl.u32 %v1488, 7
        %v1490 = vsub.s32 %v1487, %v1489
        %v1491 = vrot.slane %v1483, %v1490
        %v1493 = vunpack.c.l.s4 1983009808
        %v1494 = vunpack.c.0.s8 %v1493
        %v1495 = vlaneseq
        %v1496 = vshrl.u32 %v1495, 7
        %v1497 = vsub.s32 %v1494, %v1496
        %v1498 = vrot.slane %v1484, %v1497
        %v1499 = vcombine.low %v836, %v838
        %v1500 = vcombine.high %v836, %v838
        %v1502 = vunpack.c.l.s4 1983009808
        %v1503 = vunpack.c.0.s8 %v1502
        %v1504 = vlaneseq
        %v1505 = vshrl.u32 %v1504, 7
        %v1506 = vsub.s32 %v1503, %v1505
        %v1507 = vrot.slane %v1499, %v1506
        %v1509 = vunpack.c.l.s4 1983009808
        %v1510 = vunpack.c.0.s8 %v1509
        %v1511 = vlaneseq
        %v1512 = vshrl.u32 %v1511, 7
        %v1513 = vsub.s32 %v1510, %v1512
        %v1514 = vrot.slane %v1500, %v1513
        %v1515 = vcombine.low %v1459, %v1475
        %v1516 = vcombine.high %v1459, %v1475
        %v1518 = vunpack.c.l.s4 1934713408
        %v1519 = vunpack.c.0.s8 %v1518
        %v1520 = vlaneseq
        %v1521 = vshrl.u32 %v1520, 7
        %v1522 = vsub.s32 %v1519, %v1521
        %v1523 = vrot.slane %v1515, %v1522
        %v1525 = vunpack.c.l.s4 1934713408
        %v1526 = vunpack.c.0.s8 %v1525
        %v1527 = vlaneseq
        %v1528 = vshrl.u32 %v1527, 7
        %v1529 = vsub.s32 %v1526, %v1528
        %v1530 = vrot.slane %v1516, %v1529
        %v1531 = vcombine.low %v1466, %v1482
        %v1532 = vcombine.high %v1466, %v1482
        %v1534 = vunpack.c.l.s4 1934713408
        %v1535 = vunpack.c.0.s8 %v1534
        %v1536 = vlaneseq
        %v1537 = vshrl.u32 %v1536, 7
        %v1538 = vsub.s32 %v1535, %v1537
        %v1539 = vrot.slane %v1531, %v1538
        %v1541 = vunpack.c.l.s4 1934713408
        %v1542 = vunpack.c.0.s8 %v1541
        %v1543 = vlaneseq
        %v1544 = vshrl.u32 %v1543, 7
        %v1545 = vsub.s32 %v1542, %v1544
        %v1546 = vrot.slane %v1532, %v1545
        %v1547 = vcombine.low %v1491, %v1507
        %v1548 = vcombine.high %v1491, %v1507
        %v1550 = vunpack.c.l.s4 1934713408
        %v1551 = vunpack.c.0.s8 %v1550
        %v1552 = vlaneseq
        %v1553 = vshrl.u32 %v1552, 7
        %v1554 = vsub.s32 %v1551, %v1553
        %v1555 = vrot.slane %v1547, %v1554
        %v1557 = vunpack.c.l.s4 1934713408
        %v1558 = vunpack.c.0.s8 %v1557
        %v1559 = vlaneseq
        %v1560 = vshrl.u32 %v1559, 7
        %v1561 = vsub.s32 %v1558, %v1560
        %v1562 = vrot.slane %v1548, %v1561
        %v1563 = vcombine.low %v1498, %v1514
        %v1564 = vcombine.high %v1498, %v1514
        %v1566 = vunpack.c.l.s4 1934713408
        %v1567 = vunpack.c.0.s8 %v1566
        %v1568 = vlaneseq
        %v1569 = vshrl.u32 %v1568, 7
        %v1570 = vsub.s32 %v1567, %v1569
        %v1571 = vrot.slane %v1563, %v1570
        %v1573 = vunpack.c.l.s4 1934713408
        %v1574 = vunpack.c.0.s8 %v1573
        %v1575 = vlaneseq
        %v1576 = vshrl.u32 %v1575, 7
        %v1577 = vsub.s32 %v1574, %v1576
        %v1578 = vrot.slane %v1564, %v1577
        %v1579 = vcombine.low %v1523, %v1555
        %v1580 = vcombine.high %v1523, %v1555
        %v1581 = vcombine.low %v1530, %v1562
        %v1582 = vcombine.high %v1530, %v1562
        %v1583 = vcombine.low %v1539, %v1571
        %v1584 = vcombine.high %v1539, %v1571
        %v1585 = vcombine.low %v1546, %v1578
        %v1586 = vcombine.high %v1546, %v1578
        %v1587 = vcombine.low %v1035, %v1037
        %v1588 = vcombine.high %v1035, %v1037
        %v1590 = vunpack.c.l.s4 1983009808
        %v1591 = vunpack.c.0.s8 %v1590
        %v1592 = vlaneseq
        %v1593 = vshrl.u32 %v1592, 7
        %v1594 = vsub.s32 %v1591, %v1593
        %v1595 = vrot.slane %v1587, %v1594
        %v1597 = vunpack.c.l.s4 1983009808
        %v1598 = vunpack.c.0.s8 %v1597
        %v1599 = vlaneseq
        %v1600 = vshrl.u32 %v1599, 7
        %v1601 = vsub.s32 %v1598, %v1600
        %v1602 = vrot.slane %v1588, %v1601
        %v1603 = vcombine.low %v1036, %v1038
        %v1604 = vcombine.high %v1036, %v1038
        %v1606 = vunpack.c.l.s4 1983009808
        %v1607 = vunpack.c.0.s8 %v1606
        %v1608 = vlaneseq
        %v1609 = vshrl.u32 %v1608, 7
        %v1610 = vsub.s32 %v1607, %v1609
        %v1611 = vrot.slane %v1603, %v1610
        %v1613 = vunpack.c.l.s4 1983009808
        %v1614 = vunpack.c.0.s8 %v1613
        %v1615 = vlaneseq
        %v1616 = vshrl.u32 %v1615, 7
        %v1617 = vsub.s32 %v1614, %v1616
        %v1618 = vrot.slane %v1604, %v1617
        %v1619 = vcombine.low %v1039, %v1041
        %v1620 = vcombine.high %v1039, %v1041
        %v1622 = vunpack.c.l.s4 1983009808
        %v1623 = vunpack.c.0.s8 %v1622
        %v1624 = vlaneseq
        %v1625 = vshrl.u32 %v1624, 7
        %v1626 = vsub.s32 %v1623, %v1625
        %v1627 = vrot.slane %v1619, %v1626
        %v1629 = vunpack.c.l.s4 1983009808
        %v1630 = vunpack.c.0.s8 %v1629
        %v1631 = vlaneseq
        %v1632 = vshrl.u32 %v1631, 7
        %v1633 = vsub.s32 %v1630, %v1632
        %v1634 = vrot.slane %v1620, %v1633
        %v1635 = vcombine.low %v1040, %v1042
        %v1636 = vcombine.high %v1040, %v1042
        %v1638 = vunpack.c.l.s4 1983009808
        %v1639 = vunpack.c.0.s8 %v1638
        %v1640 = vlaneseq
        %v1641 = vshrl.u32 %v1640, 7
        %v1642 = vsub.s32 %v1639, %v1641
        %v1643 = vrot.slane %v1635, %v1642
        %v1645 = vunpack.c.l.s4 1983009808
        %v1646 = vunpack.c.0.s8 %v1645
        %v1647 = vlaneseq
        %v1648 = vshrl.u32 %v1647, 7
        %v1649 = vsub.s32 %v1646, %v1648
        %v1650 = vrot.slane %v1636, %v1649
        %v1651 = vcombine.low %v1595, %v1611
        %v1652 = vcombine.high %v1595, %v1611
        %v1654 = vunpack.c.l.s4 1934713408
        %v1655 = vunpack.c.0.s8 %v1654
        %v1656 = vlaneseq
        %v1657 = vshrl.u32 %v1656, 7
        %v1658 = vsub.s32 %v1655, %v1657
        %v1659 = vrot.slane %v1651, %v1658
        %v1661 = vunpack.c.l.s4 1934713408
        %v1662 = vunpack.c.0.s8 %v1661
        %v1663 = vlaneseq
        %v1664 = vshrl.u32 %v1663, 7
        %v1665 = vsub.s32 %v1662, %v1664
        %v1666 = vrot.slane %v1652, %v1665
        %v1667 = vcombine.low %v1602, %v1618
        %v1668 = vcombine.high %v1602, %v1618
        %v1670 = vunpack.c.l.s4 1934713408
        %v1671 = vunpack.c.0.s8 %v1670
        %v1672 = vlaneseq
        %v1673 = vshrl.u32 %v1672, 7
        %v1674 = vsub.s32 %v1671, %v1673
        %v1675 = vrot.slane %v1667, %v1674
        %v1677 = vunpack.c.l.s4 1934713408
        %v1678 = vunpack.c.0.s8 %v1677
        %v1679 = vlaneseq
        %v1680 = vshrl.u32 %v1679, 7
        %v1681 = vsub.s32 %v1678, %v1680
        %v1682 = vrot.slane %v1668, %v1681
        %v1683 = vcombine.low %v1627, %v1643
        %v1684 = vcombine.high %v1627, %v1643
        %v1686 = vunpack.c.l.s4 1934713408
        %v1687 = vunpack.c.0.s8 %v1686
        %v1688 = vlaneseq
        %v1689 = vshrl.u32 %v1688, 7
        %v1690 = vsub.s32 %v1687, %v1689
        %v1691 = vrot.slane %v1683, %v1690
        %v1693 = vunpack.c.l.s4 1934713408
        %v1694 = vunpack.c.0.s8 %v1693
        %v1695 = vlaneseq
        %v1696 = vshrl.u32 %v1695, 7
        %v1697 = vsub.s32 %v1694, %v1696
        %v1698 = vrot.slane %v1684, %v1697
        %v1699 = vcombine.low %v1634, %v1650
        %v1700 = vcombine.high %v1634, %v1650
        %v1702 = vunpack.c.l.s4 1934713408
        %v1703 = vunpack.c.0.s8 %v1702
        %v1704 = vlaneseq
        %v1705 = vshrl.u32 %v1704, 7
        %v1706 = vsub.s32 %v1703, %v1705
        %v1707 = vrot.slane %v1699, %v1706
        %v1709 = vunpack.c.l.s4 1934713408
        %v1710 = vunpack.c.0.s8 %v1709
        %v1711 = vlaneseq
        %v1712 = vshrl.u32 %v1711, 7
        %v1713 = vsub.s32 %v1710, %v1712
        %v1714 = vrot.slane %v1700, %v1713
        %v1715 = vcombine.low %v1659, %v1691
        %v1716 = vcombine.high %v1659, %v1691
        %v1717 = vcombine.low %v1666, %v1698
        %v1718 = vcombine.high %v1666, %v1698
        %v1719 = vcombine.low %v1675, %v1707
        %v1720 = vcombine.high %v1675, %v1707
        %v1721 = vcombine.low %v1682, %v1714
        %v1722 = vcombine.high %v1682, %v1714
        %v1723 = vcombine.low %v1239, %v1241
        %v1724 = vcombine.high %v1239, %v1241
        %v1726 = vunpack.c.l.s4 1983009808
        %v1727 = vunpack.c.0.s8 %v1726
        %v1728 = vlaneseq
        %v1729 = vshrl.u32 %v1728, 7
        %v1730 = vsub.s32 %v1727, %v1729
        %v1731 = vrot.slane %v1723, %v1730
        %v1733 = vunpack.c.l.s4 1983009808
        %v1734 = vunpack.c.0.s8 %v1733
        %v1735 = vlaneseq
        %v1736 = vshrl.u32 %v1735, 7
        %v1737 = vsub.s32 %v1734, %v1736
        %v1738 = vrot.slane %v1724, %v1737
        %v1739 = vcombine.low %v1240, %v1242
        %v1740 = vcombine.high %v1240, %v1242
        %v1742 = vunpack.c.l.s4 1983009808
        %v1743 = vunpack.c.0.s8 %v1742
        %v1744 = vlaneseq
        %v1745 = vshrl.u32 %v1744, 7
        %v1746 = vsub.s32 %v1743, %v1745
        %v1747 = vrot.slane %v1739, %v1746
        %v1749 = vunpack.c.l.s4 1983009808
        %v1750 = vunpack.c.0.s8 %v1749
        %v1751 = vlaneseq
        %v1752 = vshrl.u32 %v1751, 7
        %v1753 = vsub.s32 %v1750, %v1752
        %v1754 = vrot.slane %v1740, %v1753
        %v1755 = vcombine.low %v1243, %v1245
        %v1756 = vcombine.high %v1243, %v1245
        %v1758 = vunpack.c.l.s4 1983009808
        %v1759 = vunpack.c.0.s8 %v1758
        %v1760 = vlaneseq
        %v1761 = vshrl.u32 %v1760, 7
        %v1762 = vsub.s32 %v1759, %v1761
        %v1763 = vrot.slane %v1755, %v1762
        %v1765 = vunpack.c.l.s4 1983009808
        %v1766 = vunpack.c.0.s8 %v1765
        %v1767 = vlaneseq
        %v1768 = vshrl.u32 %v1767, 7
        %v1769 = vsub.s32 %v1766, %v1768
        %v1770 = vrot.slane %v1756, %v1769
        %v1771 = vcombine.low %v1244, %v1246
        %v1772 = vcombine.high %v1244, %v1246
        %v1774 = vunpack.c.l.s4 1983009808
        %v1775 = vunpack.c.0.s8 %v1774
        %v1776 = vlaneseq
        %v1777 = vshrl.u32 %v1776, 7
        %v1778 = vsub.s32 %v1775, %v1777
        %v1779 = vrot.slane %v1771, %v1778
        %v1781 = vunpack.c.l.s4 1983009808
        %v1782 = vunpack.c.0.s8 %v1781
        %v1783 = vlaneseq
        %v1784 = vshrl.u32 %v1783, 7
        %v1785 = vsub.s32 %v1782, %v1784
        %v1786 = vrot.slane %v1772, %v1785
        %v1787 = vcombine.low %v1731, %v1747
        %v1788 = vcombine.high %v1731, %v1747
        %v1790 = vunpack.c.l.s4 1934713408
        %v1791 = vunpack.c.0.s8 %v1790
        %v1792 = vlaneseq
        %v1793 = vshrl.u32 %v1792, 7
        %v1794 = vsub.s32 %v1791, %v1793
        %v1795 = vrot.slane %v1787, %v1794
        %v1797 = vunpack.c.l.s4 1934713408
        %v1798 = vunpack.c.0.s8 %v1797
        %v1799 = vlaneseq
        %v1800 = vshrl.u32 %v1799, 7
        %v1801 = vsub.s32 %v1798, %v1800
        %v1802 = vrot.slane %v1788, %v1801
        %v1803 = vcombine.low %v1738, %v1754
        %v1804 = vcombine.high %v1738, %v1754
        %v1806 = vunpack.c.l.s4 1934713408
        %v1807 = vunpack.c.0.s8 %v1806
        %v1808 = vlaneseq
        %v1809 = vshrl.u32 %v1808, 7
        %v1810 = vsub.s32 %v1807, %v1809
        %v1811 = vrot.slane %v1803, %v1810
        %v1813 = vunpack.c.l.s4 1934713408
        %v1814 = vunpack.c.0.s8 %v1813
        %v1815 = vlaneseq
        %v1816 = vshrl.u32 %v1815, 7
        %v1817 = vsub.s32 %v1814, %v1816
        %v1818 = vrot.slane %v1804, %v1817
        %v1819 = vcombine.low %v1763, %v1779
        %v1820 = vcombine.high %v1763, %v1779
        %v1822 = vunpack.c.l.s4 1934713408
        %v1823 = vunpack.c.0.s8 %v1822
        %v1824 = vlaneseq
        %v1825 = vshrl.u32 %v1824, 7
        %v1826 = vsub.s32 %v1823, %v1825
        %v1827 = vrot.slane %v1819, %v1826
        %v1829 = vunpack.c.l.s4 1934713408
        %v1830 = vunpack.c.0.s8 %v1829
        %v1831 = vlaneseq
        %v1832 = vshrl.u32 %v1831, 7
        %v1833 = vsub.s32 %v1830, %v1832
        %v1834 = vrot.slane %v1820, %v1833
        %v1835 = vcombine.low %v1770, %v1786
        %v1836 = vcombine.high %v1770, %v1786
        %v1838 = vunpack.c.l.s4 1934713408
        %v1839 = vunpack.c.0.s8 %v1838
        %v1840 = vlaneseq
        %v1841 = vshrl.u32 %v1840, 7
        %v1842 = vsub.s32 %v1839, %v1841
        %v1843 = vrot.slane %v1835, %v1842
        %v1845 = vunpack.c.l.s4 1934713408
        %v1846 = vunpack.c.0.s8 %v1845
        %v1847 = vlaneseq
        %v1848 = vshrl.u32 %v1847, 7
        %v1849 = vsub.s32 %v1846, %v1848
        %v1850 = vrot.slane %v1836, %v1849
        %v1851 = vcombine.low %v1795, %v1827
        %v1852 = vcombine.high %v1795, %v1827
        %v1853 = vcombine.low %v1802, %v1834
        %v1854 = vcombine.high %v1802, %v1834
        %v1855 = vcombine.low %v1811, %v1843
        %v1856 = vcombine.high %v1811, %v1843
        %v1857 = vcombine.low %v1818, %v1850
        %v1858 = vcombine.high %v1818, %v1850
        %v1859 = vcombine.low %v675, %v682
        %v1861 = vunpack.c.l.s4 1983009808
        %v1862 = vunpack.c.0.s8 %v1861
        %v1863 = vlaneseq
        %v1864 = vshrl.u32 %v1863, 7
        %v1865 = vsub.s32 %v1862, %v1864
        %v1866 = vrot.slane %v1859, %v1865
        %v1867 = vcombine.low %v699, %v700
        %v1869 = vunpack.c.l.s4 1983009808
        %v1870 = vunpack.c.0.s8 %v1869
        %v1871 = vlaneseq
        %v1872 = vshrl.u32 %v1871, 7
        %v1873 = vsub.s32 %v1870, %v1872
        %v1874 = vrot.slane %v1867, %v1873
        %v1875 = vcombine.low %v691, %v698
        %v1877 = vunpack.c.l.s4 1983009808
        %v1878 = vunpack.c.0.s8 %v1877
        %v1879 = vlaneseq
        %v1880 = vshrl.u32 %v1879, 7
        %v1881 = vsub.s32 %v1878, %v1880
        %v1882 = vrot.slane %v1875, %v1881
        %v1883 = vcombine.low %v701, %v702
        %v1885 = vunpack.c.l.s4 1983009808
        %v1886 = vunpack.c.0.s8 %v1885
        %v1887 = vlaneseq
        %v1888 = vshrl.u32 %v1887, 7
        %v1889 = vsub.s32 %v1886, %v1888
        %v1890 = vrot.slane %v1883, %v1889
        %v1891 = vcombine.low %v1866, %v1874
        %v1892 = vcombine.high %v1866, %v1874
        %v1894 = vunpack.c.l.s4 1934713408
        %v1895 = vunpack.c.0.s8 %v1894
        %v1896 = vlaneseq
        %v1897 = vshrl.u32 %v1896, 7
        %v1898 = vsub.s32 %v1895, %v1897
        %v1899 = vrot.slane %v1891, %v1898
        %v1901 = vunpack.c.l.s4 1934713408
        %v1902 = vunpack.c.0.s8 %v1901
        %v1903 = vlaneseq
        %v1904 = vshrl.u32 %v1903, 7
        %v1905 = vsub.s32 %v1902, %v1904
        %v1906 = vrot.slane %v1892, %v1905
        %v1907 = vcombine.low %v1882, %v1890
        %v1908 = vcombine.high %v1882, %v1890
        %v1910 = vunpack.c.l.s4 1934713408
        %v1911 = vunpack.c.0.s8 %v1910
        %v1912 = vlaneseq
        %v1913 = vshrl.u32 %v1912, 7
        %v1914 = vsub.s32 %v1911, %v1913
        %v1915 = vrot.slane %v1907, %v1914
        %v1917 = vunpack.c.l.s4 1934713408
        %v1918 = vunpack.c.0.s8 %v1917
        %v1919 = vlaneseq
        %v1920 = vshrl.u32 %v1919, 7
        %v1921 = vsub.s32 %v1918, %v1920
        %v1922 = vrot.slane %v1908, %v1921
        %v1923 = vcombine.low %v1899, %v1915
        %v1924 = vcombine.high %v1899, %v1915
        %v1925 = vcombine.low %v1906, %v1922
        %v1926 = vcombine.high %v1906, %v1922
        %v1927 = vcombine.low %v879, %v886
        %v1929 = vunpack.c.l.s4 1983009808
        %v1930 = vunpack.c.0.s8 %v1929
        %v1931 = vlaneseq
        %v1932 = vshrl.u32 %v1931, 7
        %v1933 = vsub.s32 %v1930, %v1932
        %v1934 = vrot.slane %v1927, %v1933
        %v1935 = vcombine.low %v903, %v904
        %v1937 = vunpack.c.l.s4 1983009808
        %v1938 = vunpack.c.0.s8 %v1937
        %v1939 = vlaneseq
        %v1940 = vshrl.u32 %v1939, 7
        %v1941 = vsub.s32 %v1938, %v1940
        %v1942 = vrot.slane %v1935, %v1941
        %v1943 = vcombine.low %v895, %v902
        %v1945 = vunpack.c.l.s4 1983009808
        %v1946 = vunpack.c.0.s8 %v1945
        %v1947 = vlaneseq
        %v1948 = vshrl.u32 %v1947, 7
        %v1949 = vsub.s32 %v1946, %v1948
        %v1950 = vrot.slane %v1943, %v1949
        %v1951 = vcombine.low %v905, %v906
        %v1953 = vunpack.c.l.s4 1983009808
        %v1954 = vunpack.c.0.s8 %v1953
        %v1955 = vlaneseq
        %v1956 = vshrl.u32 %v1955, 7
        %v1957 = vsub.s32 %v1954, %v1956
        %v1958 = vrot.slane %v1951, %v1957
        %v1959 = vcombine.low %v1934, %v1942
        %v1960 = vcombine.high %v1934, %v1942
        %v1962 = vunpack.c.l.s4 1934713408
        %v1963 = vunpack.c.0.s8 %v1962
        %v1964 = vlaneseq
        %v1965 = vshrl.u32 %v1964, 7
        %v1966 = vsub.s32 %v1963, %v1965
        %v1967 = vrot.slane %v1959, %v1966
        %v1969 = vunpack.c.l.s4 1934713408
        %v1970 = vunpack.c.0.s8 %v1969
        %v1971 = vlaneseq
        %v1972 = vshrl.u32 %v1971, 7
        %v1973 = vsub.s32 %v1970, %v1972
        %v1974 = vrot.slane %v1960, %v1973
        %v1975 = vcombine.low %v1950, %v1958
        %v1976 = vcombine.high %v1950, %v1958
        %v1978 = vunpack.c.l.s4 1934713408
        %v1979 = vunpack.c.0.s8 %v1978
        %v1980 = vlaneseq
        %v1981 = vshrl.u32 %v1980, 7
        %v1982 = vsub.s32 %v1979, %v1981
        %v1983 = vrot.slane %v1975, %v1982
        %v1985 = vunpack.c.l.s4 1934713408
        %v1986 = vunpack.c.0.s8 %v1985
        %v1987 = vlaneseq
        %v1988 = vshrl.u32 %v1987, 7
        %v1989 = vsub.s32 %v1986, %v1988
        %v1990 = vrot.slane %v1976, %v1989
        %v1991 = vcombine.low %v1967, %v1983
        %v1992 = vcombine.high %v1967, %v1983
        %v1993 = vcombine.low %v1974, %v1990
        %v1994 = vcombine.high %v1974, %v1990
        %v1995 = vcombine.low %v1083, %v1090
        %v1997 = vunpack.c.l.s4 1983009808
        %v1998 = vunpack.c.0.s8 %v1997
        %v1999 = vlaneseq
        %v2000 = vshrl.u32 %v1999, 7
        %v2001 = vsub.s32 %v1998, %v2000
        %v2002 = vrot.slane %v1995, %v2001
        %v2003 = vcombine.low %v1107, %v1108
        %v2005 = vunpack.c.l.s4 1983009808
        %v2006 = vunpack.c.0.s8 %v2005
        %v2007 = vlaneseq
        %v2008 = vshrl.u32 %v2007, 7
        %v2009 = vsub.s32 %v2006, %v2008
        %v2010 = vrot.slane %v2003, %v2009
        %v2011 = vcombine.low %v1099, %v1106
        %v2013 = vunpack.c.l.s4 1983009808
        %v2014 = vunpack.c.0.s8 %v2013
        %v2015 = vlaneseq
        %v2016 = vshrl.u32 %v2015, 7
        %v2017 = vsub.s32 %v2014, %v2016
        %v2018 = vrot.slane %v2011, %v2017
        %v2019 = vcombine.low %v1109, %v1110
        %v2021 = vunpack.c.l.s4 1983009808
        %v2022 = vunpack.c.0.s8 %v2021
        %v2023 = vlaneseq
        %v2024 = vshrl.u32 %v2023, 7
        %v2025 = vsub.s32 %v2022, %v2024
        %v2026 = vrot.slane %v2019, %v2025
        %v2027 = vcombine.low %v2002, %v2010
        %v2028 = vcombine.high %v2002, %v2010
        %v2030 = vunpack.c.l.s4 1934713408
        %v2031 = vunpack.c.0.s8 %v2030
        %v2032 = vlaneseq
        %v2033 = vshrl.u32 %v2032, 7
        %v2034 = vsub.s32 %v2031, %v2033
        %v2035 = vrot.slane %v2027, %v2034
        %v2037 = vunpack.c.l.s4 1934713408
        %v2038 = vunpack.c.0.s8 %v2037
        %v2039 = vlaneseq
        %v2040 = vshrl.u32 %v2039, 7
        %v2041 = vsub.s32 %v2038, %v2040
        %v2042 = vrot.slane %v2028, %v2041
        %v2043 = vcombine.low %v2018, %v2026
        %v2044 = vcombine.high %v2018, %v2026
        %v2046 = vunpack.c.l.s4 1934713408
        %v2047 = vunpack.c.0.s8 %v2046
        %v2048 = vlaneseq
        %v2049 = vshrl.u32 %v2048, 7
        %v2050 = vsub.s32 %v2047, %v2049
        %v2051 = vrot.slane %v2043, %v2050
        %v2053 = vunpack.c.l.s4 1934713408
        %v2054 = vunpack.c.0.s8 %v2053
        %v2055 = vlaneseq
        %v2056 = vshrl.u32 %v2055, 7
        %v2057 = vsub.s32 %v2054, %v2056
        %v2058 = vrot.slane %v2044, %v2057
        %v2059 = vcombine.low %v2035, %v2051
        %v2060 = vcombine.high %v2035, %v2051
        %v2061 = vcombine.low %v2042, %v2058
        %v2062 = vcombine.high %v2042, %v2058
        %v2063 = vcombine.low %v1287, %v1294
        %v2065 = vunpack.c.l.s4 1983009808
        %v2066 = vunpack.c.0.s8 %v2065
        %v2067 = vlaneseq
        %v2068 = vshrl.u32 %v2067, 7
        %v2069 = vsub.s32 %v2066, %v2068
        %v2070 = vrot.slane %v2063, %v2069
        %v2071 = vcombine.low %v1311, %v1312
        %v2073 = vunpack.c.l.s4 1983009808
        %v2074 = vunpack.c.0.s8 %v2073
        %v2075 = vlaneseq
        %v2076 = vshrl.u32 %v2075, 7
        %v2077 = vsub.s32 %v2074, %v2076
        %v2078 = vrot.slane %v2071, %v2077
        %v2079 = vcombine.low %v1303, %v1310
        %v2081 = vunpack.c.l.s4 1983009808
        %v2082 = vunpack.c.0.s8 %v2081
        %v2083 = vlaneseq
        %v2084 = vshrl.u32 %v2083, 7
        %v2085 = vsub.s32 %v2082, %v2084
        %v2086 = vrot.slane %v2079, %v2085
        %v2087 = vcombine.low %v1313, %v1314
        %v2089 = vunpack.c.l.s4 1983009808
        %v2090 = vunpack.c.0.s8 %v2089
        %v2091 = vlaneseq
        %v2092 = vshrl.u32 %v2091, 7
        %v2093 = vsub.s32 %v2090, %v2092
        %v2094 = vrot.slane %v2087, %v2093
        %v2095 = vcombine.low %v2070, %v2078
        %v2096 = vcombine.high %v2070, %v2078
        %v2098 = vunpack.c.l.s4 1934713408
        %v2099 = vunpack.c.0.s8 %v2098
        %v2100 = vlaneseq
        %v2101 = vshrl.u32 %v2100, 7
        %v2102 = vsub.s32 %v2099, %v2101
        %v2103 = vrot.slane %v2095, %v2102
        %v2105 = vunpack.c.l.s4 1934713408
        %v2106 = vunpack.c.0.s8 %v2105
        %v2107 = vlaneseq
        %v2108 = vshrl.u32 %v2107, 7
        %v2109 = vsub.s32 %v2106, %v2108
        %v2110 = vrot.slane %v2096, %v2109
        %v2111 = vcombine.low %v2086, %v2094
        %v2112 = vcombine.high %v2086, %v2094
        %v2114 = vunpack.c.l.s4 1934713408
        %v2115 = vunpack.c.0.s8 %v2114
        %v2116 = vlaneseq
        %v2117 = vshrl.u32 %v2116, 7
        %v2118 = vsub.s32 %v2115, %v2117
        %v2119 = vrot.slane %v2111, %v2118
        %v2121 = vunpack.c.l.s4 1934713408
        %v2122 = vunpack.c.0.s8 %v2121
        %v2123 = vlaneseq
        %v2124 = vshrl.u32 %v2123, 7
        %v2125 = vsub.s32 %v2122, %v2124
        %v2126 = vrot.slane %v2112, %v2125
        %v2127 = vcombine.low %v2103, %v2119
        %v2128 = vcombine.high %v2103, %v2119
        %v2129 = vcombine.low %v2110, %v2126
        %v2130 = vcombine.high %v2110, %v2126
        %v2131 = vpack.c.bf16 %v1447, %v1447
        %v2132 = vpack.c.bf16 %v1583, %v1583
        %v2133 = vpack.c.bf16 %v1719, %v1719
        %v2134 = vpack.c.bf16 %v1855, %v1855
        %v2135 = vpack.c.bf16 %v1448, %v1448
        %v2136 = vpack.c.bf16 %v1584, %v1584
        %v2137 = vpack.c.bf16 %v1720, %v1720
        %v2138 = vpack.c.bf16 %v1856, %v1856
        %v2139 = vpack.c.bf16 %v1449, %v1449
        %v2140 = vpack.c.bf16 %v1585, %v1585
        %v2141 = vpack.c.bf16 %v1721, %v1721
        %v2142 = vpack.c.bf16 %v1857, %v1857
        %v2143 = vpack.c.bf16 %v1450, %v1450
        %v2144 = vpack.c.bf16 %v1586, %v1586
        %v2145 = vpack.c.bf16 %v1722, %v1722
        %v2146 = vpack.c.bf16 %v1858, %v1858
        %v2147 = vpack.c.bf16 %v1443, %v1443
        %v2148 = vpack.c.bf16 %v1579, %v1579
        %v2149 = vpack.c.bf16 %v1715, %v1715
        %v2150 = vpack.c.bf16 %v1851, %v1851
        %v2151 = vpack.c.bf16 %v1444, %v1444
        %v2152 = vpack.c.bf16 %v1580, %v1580
        %v2153 = vpack.c.bf16 %v1716, %v1716
        %v2154 = vpack.c.bf16 %v1852, %v1852
        %v2155 = vpack.c.bf16 %v1445, %v1445
        %v2156 = vpack.c.bf16 %v1581, %v1581
        %v2157 = vpack.c.bf16 %v1717, %v1717
        %v2158 = vpack.c.bf16 %v1853, %v1853
        %v2159 = vpack.c.bf16 %v1446, %v1446
        %v2160 = vpack.c.bf16 %v1582, %v1582
        %v2161 = vpack.c.bf16 %v1718, %v1718
        %v2162 = vpack.c.bf16 %v1854, %v1854
        %vm2163 = vcmask 64512
        %v2165 = vsel %vm2163, %v2131, 0
        %v2168 = vsel %vm2163, %v2147, 0
        %2170 = vmatprep.subr.bf16.mxu0 0
        %2171 = vmatpush1.bf16.xpose.msra.mxu0 0
        %2172 = vmatprep.subr.bf16.mxu0 0
        %2173 = vmatpush1.bf16.xpose.msra.mxu0 0
        %2174 = vmatprep.subr.bf16.mxu0 0
        %2175 = vmatpush1.bf16.xpose.msra.mxu0 0
        %2176 = vmatprep.subr.bf16.mxu0 0
        %2177 = vmatpush1.bf16.xpose.msra.mxu0 0
        %2178 = vmatprep.subr.bf16.mxu0 0
        %2179 = vmatpush1.bf16.xpose.msra.mxu0 0
        %2180 = vmatprep.subr.bf16.mxu0 0
        %2181 = vmatpush1.bf16.xpose.msra.mxu0 0
        %2182 = vmatprep.subr.bf16.mxu0 0
        %2183 = vmatpush1.bf16.xpose.msra.mxu0 0
        %2184 = vmatprep.subr.bf16.mxu0 0
        %2185 = vmatpush1.bf16.xpose.msra.mxu0 %v2168
        %2186 = vmatprep.subr.bf16.mxu0 0
        %2187 = vmatpush2.bf16.xpose.msra.mxu0 0
        %2188 = vmatprep.subr.bf16.mxu0 0
        %2189 = vmatpush2.bf16.xpose.msra.mxu0 0
        %2190 = vmatprep.subr.bf16.mxu0 0
        %2191 = vmatpush2.bf16.xpose.msra.mxu0 0
        %2192 = vmatprep.subr.bf16.mxu0 0
        %2193 = vmatpush2.bf16.xpose.msra.mxu0 0
        %2194 = vmatprep.subr.bf16.mxu0 0
        %2195 = vmatpush2.bf16.xpose.msra.mxu0 0
        %2196 = vmatprep.subr.bf16.mxu0 0
        %2197 = vmatpush2.bf16.xpose.msra.mxu0 0
        %2198 = vmatprep.subr.bf16.mxu0 0
        %2199 = vmatpush2.bf16.xpose.msra.mxu0 0
        %2200 = vmatprep.subr.bf16.mxu0 0
        %2201 = vmatpush2.bf16.xpose.msra.mxu0 0
        %2202 = vmatprep.mubr.bf16.mxu0 0
        %2203 = vmatmul.mubr.bf16.gmra.mxu0 %v2165
        %v2204 = vpop.f32.mrf.mxu0
        %v2205 = vadd.f32 0.0, %v2204
        %v2206 = vpop.f32.mrf.mxu0
        %v2207 = vpop.f32.mrf.mxu0
        %v2208 = vpop.f32.mrf.mxu0
        %2209 = vdwg.mxu0
        %v2211 = vsel %vm2163, %v2132, 0
        %v2214 = vsel %vm2163, %v2148, 0
        %2216 = vmatprep.subr.bf16.mxu0 0
        %2217 = vmatpush1.bf16.xpose.msra.mxu0 0
        %2218 = vmatprep.subr.bf16.mxu0 0
        %2219 = vmatpush1.bf16.xpose.msra.mxu0 0
        %2220 = vmatprep.subr.bf16.mxu0 0
        %2221 = vmatpush1.bf16.xpose.msra.mxu0 0
        %2222 = vmatprep.subr.bf16.mxu0 0
        %2223 = vmatpush1.bf16.xpose.msra.mxu0 0
        %2224 = vmatprep.subr.bf16.mxu0 0
        %2225 = vmatpush1.bf16.xpose.msra.mxu0 0
        %2226 = vmatprep.subr.bf16.mxu0 0
        %2227 = vmatpush1.bf16.xpose.msra.mxu0 0
        %2228 = vmatprep.subr.bf16.mxu0 0
        %2229 = vmatpush1.bf16.xpose.msra.mxu0 0
        %2230 = vmatprep.subr.bf16.mxu0 0
        %2231 = vmatpush1.bf16.xpose.msra.mxu0 %v2214
        %2232 = vmatprep.subr.bf16.mxu0 0
        %2233 = vmatpush2.bf16.xpose.msra.mxu0 0
        %2234 = vmatprep.subr.bf16.mxu0 0
        %2235 = vmatpush2.bf16.xpose.msra.mxu0 0
        %2236 = vmatprep.subr.bf16.mxu0 0
        %2237 = vmatpush2.bf16.xpose.msra.mxu0 0
        %2238 = vmatprep.subr.bf16.mxu0 0
        %2239 = vmatpush2.bf16.xpose.msra.mxu0 0
        %2240 = vmatprep.subr.bf16.mxu0 0
        %2241 = vmatpush2.bf16.xpose.msra.mxu0 0
        %2242 = vmatprep.subr.bf16.mxu0 0
        %2243 = vmatpush2.bf16.xpose.msra.mxu0 0
        %2244 = vmatprep.subr.bf16.mxu0 0
        %2245 = vmatpush2.bf16.xpose.msra.mxu0 0
        %2246 = vmatprep.subr.bf16.mxu0 0
        %2247 = vmatpush2.bf16.xpose.msra.mxu0 0
        %2248 = vmatprep.mubr.bf16.mxu0 0
        %2249 = vmatmul.mubr.bf16.gmra.mxu0 %v2211
        %v2250 = vpop.f32.mrf.mxu0
        %v2251 = vadd.f32 0.0, %v2250
        %v2252 = vpop.f32.mrf.mxu0
        %v2253 = vpop.f32.mrf.mxu0
        %v2254 = vpop.f32.mrf.mxu0
        %2255 = vdwg.mxu0
        %v2257 = vsel %vm2163, %v2133, 0
        %v2260 = vsel %vm2163, %v2149, 0
        %2262 = vmatprep.subr.bf16.mxu0 0
        %2263 = vmatpush1.bf16.xpose.msra.mxu0 0
        %2264 = vmatprep.subr.bf16.mxu0 0
        %2265 = vmatpush1.bf16.xpose.msra.mxu0 0
        %2266 = vmatprep.subr.bf16.mxu0 0
        %2267 = vmatpush1.bf16.xpose.msra.mxu0 0
        %2268 = vmatprep.subr.bf16.mxu0 0
        %2269 = vmatpush1.bf16.xpose.msra.mxu0 0
        %2270 = vmatprep.subr.bf16.mxu0 0
        %2271 = vmatpush1.bf16.xpose.msra.mxu0 0
        %2272 = vmatprep.subr.bf16.mxu0 0
        %2273 = vmatpush1.bf16.xpose.msra.mxu0 0
        %2274 = vmatprep.subr.bf16.mxu0 0
        %2275 = vmatpush1.bf16.xpose.msra.mxu0 0
        %2276 = vmatprep.subr.bf16.mxu0 0
        %2277 = vmatpush1.bf16.xpose.msra.mxu0 %v2260
        %2278 = vmatprep.subr.bf16.mxu0 0
        %2279 = vmatpush2.bf16.xpose.msra.mxu0 0
        %2280 = vmatprep.subr.bf16.mxu0 0
        %2281 = vmatpush2.bf16.xpose.msra.mxu0 0
        %2282 = vmatprep.subr.bf16.mxu0 0
        %2283 = vmatpush2.bf16.xpose.msra.mxu0 0
        %2284 = vmatprep.subr.bf16.mxu0 0
        %2285 = vmatpush2.bf16.xpose.msra.mxu0 0
        %2286 = vmatprep.subr.bf16.mxu0 0
        %2287 = vmatpush2.bf16.xpose.msra.mxu0 0
        %2288 = vmatprep.subr.bf16.mxu0 0
        %2289 = vmatpush2.bf16.xpose.msra.mxu0 0
        %2290 = vmatprep.subr.bf16.mxu0 0
        %2291 = vmatpush2.bf16.xpose.msra.mxu0 0
        %2292 = vmatprep.subr.bf16.mxu0 0
        %2293 = vmatpush2.bf16.xpose.msra.mxu0 0
        %2294 = vmatprep.mubr.bf16.mxu0 0
        %2295 = vmatmul.mubr.bf16.gmra.mxu0 %v2257
        %v2296 = vpop.f32.mrf.mxu0
        %v2297 = vadd.f32 0.0, %v2296
        %v2298 = vpop.f32.mrf.mxu0
        %v2299 = vpop.f32.mrf.mxu0
        %v2300 = vpop.f32.mrf.mxu0
        %2301 = vdwg.mxu0
        %v2303 = vsel %vm2163, %v2134, 0
        %v2306 = vsel %vm2163, %v2150, 0
        %2308 = vmatprep.subr.bf16.mxu0 0
        %2309 = vmatpush1.bf16.xpose.msra.mxu0 0
        %2310 = vmatprep.subr.bf16.mxu0 0
        %2311 = vmatpush1.bf16.xpose.msra.mxu0 0
        %2312 = vmatprep.subr.bf16.mxu0 0
        %2313 = vmatpush1.bf16.xpose.msra.mxu0 0
        %2314 = vmatprep.subr.bf16.mxu0 0
        %2315 = vmatpush1.bf16.xpose.msra.mxu0 0
        %2316 = vmatprep.subr.bf16.mxu0 0
        %2317 = vmatpush1.bf16.xpose.msra.mxu0 0
        %2318 = vmatprep.subr.bf16.mxu0 0
        %2319 = vmatpush1.bf16.xpose.msra.mxu0 0
        %2320 = vmatprep.subr.bf16.mxu0 0
        %2321 = vmatpush1.bf16.xpose.msra.mxu0 0
        %2322 = vmatprep.subr.bf16.mxu0 0
        %2323 = vmatpush1.bf16.xpose.msra.mxu0 %v2306
        %2324 = vmatprep.subr.bf16.mxu0 0
        %2325 = vmatpush2.bf16.xpose.msra.mxu0 0
        %2326 = vmatprep.subr.bf16.mxu0 0
        %2327 = vmatpush2.bf16.xpose.msra.mxu0 0
        %2328 = vmatprep.subr.bf16.mxu0 0
        %2329 = vmatpush2.bf16.xpose.msra.mxu0 0
        %2330 = vmatprep.subr.bf16.mxu0 0
        %2331 = vmatpush2.bf16.xpose.msra.mxu0 0
        %2332 = vmatprep.subr.bf16.mxu0 0
        %2333 = vmatpush2.bf16.xpose.msra.mxu0 0
        %2334 = vmatprep.subr.bf16.mxu0 0
        %2335 = vmatpush2.bf16.xpose.msra.mxu0 0
        %2336 = vmatprep.subr.bf16.mxu0 0
        %2337 = vmatpush2.bf16.xpose.msra.mxu0 0
        %2338 = vmatprep.subr.bf16.mxu0 0
        %2339 = vmatpush2.bf16.xpose.msra.mxu0 0
        %2340 = vmatprep.mubr.bf16.mxu0 0
        %2341 = vmatmul.mubr.bf16.gmra.mxu0 %v2303
        %v2342 = vpop.f32.mrf.mxu0
        %v2343 = vadd.f32 0.0, %v2342
        %v2344 = vpop.f32.mrf.mxu0
        %v2345 = vpop.f32.mrf.mxu0
        %v2346 = vpop.f32.mrf.mxu0
        %2347 = vdwg.mxu0
        %v2349 = vsel %vm2163, %v2135, 0
        %v2352 = vsel %vm2163, %v2151, 0
        %2354 = vmatprep.subr.bf16.mxu0 0
        %2355 = vmatpush1.bf16.xpose.msra.mxu0 0
        %2356 = vmatprep.subr.bf16.mxu0 0
        %2357 = vmatpush1.bf16.xpose.msra.mxu0 0
        %2358 = vmatprep.subr.bf16.mxu0 0
        %2359 = vmatpush1.bf16.xpose.msra.mxu0 0
        %2360 = vmatprep.subr.bf16.mxu0 0
        %2361 = vmatpush1.bf16.xpose.msra.mxu0 0
        %2362 = vmatprep.subr.bf16.mxu0 0
        %2363 = vmatpush1.bf16.xpose.msra.mxu0 0
        %2364 = vmatprep.subr.bf16.mxu0 0
        %2365 = vmatpush1.bf16.xpose.msra.mxu0 0
        %2366 = vmatprep.subr.bf16.mxu0 0
        %2367 = vmatpush1.bf16.xpose.msra.mxu0 0
        %2368 = vmatprep.subr.bf16.mxu0 0
        %2369 = vmatpush1.bf16.xpose.msra.mxu0 %v2352
        %2370 = vmatprep.subr.bf16.mxu0 0
        %2371 = vmatpush2.bf16.xpose.msra.mxu0 0
        %2372 = vmatprep.subr.bf16.mxu0 0
        %2373 = vmatpush2.bf16.xpose.msra.mxu0 0
        %2374 = vmatprep.subr.bf16.mxu0 0
        %2375 = vmatpush2.bf16.xpose.msra.mxu0 0
        %2376 = vmatprep.subr.bf16.mxu0 0
        %2377 = vmatpush2.bf16.xpose.msra.mxu0 0
        %2378 = vmatprep.subr.bf16.mxu0 0
        %2379 = vmatpush2.bf16.xpose.msra.mxu0 0
        %2380 = vmatprep.subr.bf16.mxu0 0
        %2381 = vmatpush2.bf16.xpose.msra.mxu0 0
        %2382 = vmatprep.subr.bf16.mxu0 0
        %2383 = vmatpush2.bf16.xpose.msra.mxu0 0
        %2384 = vmatprep.subr.bf16.mxu0 0
        %2385 = vmatpush2.bf16.xpose.msra.mxu0 0
        %2386 = vmatprep.mubr.bf16.mxu0 0
        %2387 = vmatmul.mubr.bf16.gmra.mxu0 %v2349
        %v2388 = vpop.f32.mrf.mxu0
        %v2389 = vadd.f32 0.0, %v2388
        %v2390 = vpop.f32.mrf.mxu0
        %v2391 = vpop.f32.mrf.mxu0
        %v2392 = vpop.f32.mrf.mxu0
        %2393 = vdwg.mxu0
        %v2395 = vsel %vm2163, %v2136, 0
        %v2398 = vsel %vm2163, %v2152, 0
        %2400 = vmatprep.subr.bf16.mxu0 0
        %2401 = vmatpush1.bf16.xpose.msra.mxu0 0
        %2402 = vmatprep.subr.bf16.mxu0 0
        %2403 = vmatpush1.bf16.xpose.msra.mxu0 0
        %2404 = vmatprep.subr.bf16.mxu0 0
        %2405 = vmatpush1.bf16.xpose.msra.mxu0 0
        %2406 = vmatprep.subr.bf16.mxu0 0
        %2407 = vmatpush1.bf16.xpose.msra.mxu0 0
        %2408 = vmatprep.subr.bf16.mxu0 0
        %2409 = vmatpush1.bf16.xpose.msra.mxu0 0
        %2410 = vmatprep.subr.bf16.mxu0 0
        %2411 = vmatpush1.bf16.xpose.msra.mxu0 0
        %2412 = vmatprep.subr.bf16.mxu0 0
        %2413 = vmatpush1.bf16.xpose.msra.mxu0 0
        %2414 = vmatprep.subr.bf16.mxu0 0
        %2415 = vmatpush1.bf16.xpose.msra.mxu0 %v2398
        %2416 = vmatprep.subr.bf16.mxu0 0
        %2417 = vmatpush2.bf16.xpose.msra.mxu0 0
        %2418 = vmatprep.subr.bf16.mxu0 0
        %2419 = vmatpush2.bf16.xpose.msra.mxu0 0
        %2420 = vmatprep.subr.bf16.mxu0 0
        %2421 = vmatpush2.bf16.xpose.msra.mxu0 0
        %2422 = vmatprep.subr.bf16.mxu0 0
        %2423 = vmatpush2.bf16.xpose.msra.mxu0 0
        %2424 = vmatprep.subr.bf16.mxu0 0
        %2425 = vmatpush2.bf16.xpose.msra.mxu0 0
        %2426 = vmatprep.subr.bf16.mxu0 0
        %2427 = vmatpush2.bf16.xpose.msra.mxu0 0
        %2428 = vmatprep.subr.bf16.mxu0 0
        %2429 = vmatpush2.bf16.xpose.msra.mxu0 0
        %2430 = vmatprep.subr.bf16.mxu0 0
        %2431 = vmatpush2.bf16.xpose.msra.mxu0 0
        %2432 = vmatprep.mubr.bf16.mxu0 0
        %2433 = vmatmul.mubr.bf16.gmra.mxu0 %v2395
        %v2434 = vpop.f32.mrf.mxu0
        %v2435 = vadd.f32 0.0, %v2434
        %v2436 = vpop.f32.mrf.mxu0
        %v2437 = vpop.f32.mrf.mxu0
        %v2438 = vpop.f32.mrf.mxu0
        %2439 = vdwg.mxu0
        %v2441 = vsel %vm2163, %v2137, 0
        %v2444 = vsel %vm2163, %v2153, 0
        %2446 = vmatprep.subr.bf16.mxu0 0
        %2447 = vmatpush1.bf16.xpose.msra.mxu0 0
        %2448 = vmatprep.subr.bf16.mxu0 0
        %2449 = vmatpush1.bf16.xpose.msra.mxu0 0
        %2450 = vmatprep.subr.bf16.mxu0 0
        %2451 = vmatpush1.bf16.xpose.msra.mxu0 0
        %2452 = vmatprep.subr.bf16.mxu0 0
        %2453 = vmatpush1.bf16.xpose.msra.mxu0 0
        %2454 = vmatprep.subr.bf16.mxu0 0
        %2455 = vmatpush1.bf16.xpose.msra.mxu0 0
        %2456 = vmatprep.subr.bf16.mxu0 0
        %2457 = vmatpush1.bf16.xpose.msra.mxu0 0
        %2458 = vmatprep.subr.bf16.mxu0 0
        %2459 = vmatpush1.bf16.xpose.msra.mxu0 0
        %2460 = vmatprep.subr.bf16.mxu0 0
        %2461 = vmatpush1.bf16.xpose.msra.mxu0 %v2444
        %2462 = vmatprep.subr.bf16.mxu0 0
        %2463 = vmatpush2.bf16.xpose.msra.mxu0 0
        %2464 = vmatprep.subr.bf16.mxu0 0
        %2465 = vmatpush2.bf16.xpose.msra.mxu0 0
        %2466 = vmatprep.subr.bf16.mxu0 0
        %2467 = vmatpush2.bf16.xpose.msra.mxu0 0
        %2468 = vmatprep.subr.bf16.mxu0 0
        %2469 = vmatpush2.bf16.xpose.msra.mxu0 0
        %2470 = vmatprep.subr.bf16.mxu0 0
        %2471 = vmatpush2.bf16.xpose.msra.mxu0 0
        %2472 = vmatprep.subr.bf16.mxu0 0
        %2473 = vmatpush2.bf16.xpose.msra.mxu0 0
        %2474 = vmatprep.subr.bf16.mxu0 0
        %2475 = vmatpush2.bf16.xpose.msra.mxu0 0
        %2476 = vmatprep.subr.bf16.mxu0 0
        %2477 = vmatpush2.bf16.xpose.msra.mxu0 0
        %2478 = vmatprep.mubr.bf16.mxu0 0
        %2479 = vmatmul.mubr.bf16.gmra.mxu0 %v2441
        %v2480 = vpop.f32.mrf.mxu0
        %v2481 = vadd.f32 0.0, %v2480
        %v2482 = vpop.f32.mrf.mxu0
        %v2483 = vpop.f32.mrf.mxu0
        %v2484 = vpop.f32.mrf.mxu0
        %2485 = vdwg.mxu0
        %v2487 = vsel %vm2163, %v2138, 0
        %v2490 = vsel %vm2163, %v2154, 0
        %2492 = vmatprep.subr.bf16.mxu0 0
        %2493 = vmatpush1.bf16.xpose.msra.mxu0 0
        %2494 = vmatprep.subr.bf16.mxu0 0
        %2495 = vmatpush1.bf16.xpose.msra.mxu0 0
        %2496 = vmatprep.subr.bf16.mxu0 0
        %2497 = vmatpush1.bf16.xpose.msra.mxu0 0
        %2498 = vmatprep.subr.bf16.mxu0 0
        %2499 = vmatpush1.bf16.xpose.msra.mxu0 0
        %2500 = vmatprep.subr.bf16.mxu0 0
        %2501 = vmatpush1.bf16.xpose.msra.mxu0 0
        %2502 = vmatprep.subr.bf16.mxu0 0
        %2503 = vmatpush1.bf16.xpose.msra.mxu0 0
        %2504 = vmatprep.subr.bf16.mxu0 0
        %2505 = vmatpush1.bf16.xpose.msra.mxu0 0
        %2506 = vmatprep.subr.bf16.mxu0 0
        %2507 = vmatpush1.bf16.xpose.msra.mxu0 %v2490
        %2508 = vmatprep.subr.bf16.mxu0 0
        %2509 = vmatpush2.bf16.xpose.msra.mxu0 0
        %2510 = vmatprep.subr.bf16.mxu0 0
        %2511 = vmatpush2.bf16.xpose.msra.mxu0 0
        %2512 = vmatprep.subr.bf16.mxu0 0
        %2513 = vmatpush2.bf16.xpose.msra.mxu0 0
        %2514 = vmatprep.subr.bf16.mxu0 0
        %2515 = vmatpush2.bf16.xpose.msra.mxu0 0
        %2516 = vmatprep.subr.bf16.mxu0 0
        %2517 = vmatpush2.bf16.xpose.msra.mxu0 0
        %2518 = vmatprep.subr.bf16.mxu0 0
        %2519 = vmatpush2.bf16.xpose.msra.mxu0 0
        %2520 = vmatprep.subr.bf16.mxu0 0
        %2521 = vmatpush2.bf16.xpose.msra.mxu0 0
        %2522 = vmatprep.subr.bf16.mxu0 0
        %2523 = vmatpush2.bf16.xpose.msra.mxu0 0
        %2524 = vmatprep.mubr.bf16.mxu0 0
        %2525 = vmatmul.mubr.bf16.gmra.mxu0 %v2487
        %v2526 = vpop.f32.mrf.mxu0
        %v2527 = vadd.f32 0.0, %v2526
        %v2528 = vpop.f32.mrf.mxu0
        %v2529 = vpop.f32.mrf.mxu0
        %v2530 = vpop.f32.mrf.mxu0
        %2531 = vdwg.mxu0
        %v2533 = vsel %vm2163, %v2139, 0
        %v2536 = vsel %vm2163, %v2155, 0
        %2538 = vmatprep.subr.bf16.mxu0 0
        %2539 = vmatpush1.bf16.xpose.msra.mxu0 0
        %2540 = vmatprep.subr.bf16.mxu0 0
        %2541 = vmatpush1.bf16.xpose.msra.mxu0 0
        %2542 = vmatprep.subr.bf16.mxu0 0
        %2543 = vmatpush1.bf16.xpose.msra.mxu0 0
        %2544 = vmatprep.subr.bf16.mxu0 0
        %2545 = vmatpush1.bf16.xpose.msra.mxu0 0
        %2546 = vmatprep.subr.bf16.mxu0 0
        %2547 = vmatpush1.bf16.xpose.msra.mxu0 0
        %2548 = vmatprep.subr.bf16.mxu0 0
        %2549 = vmatpush1.bf16.xpose.msra.mxu0 0
        %2550 = vmatprep.subr.bf16.mxu0 0
        %2551 = vmatpush1.bf16.xpose.msra.mxu0 0
        %2552 = vmatprep.subr.bf16.mxu0 0
        %2553 = vmatpush1.bf16.xpose.msra.mxu0 %v2536
        %2554 = vmatprep.subr.bf16.mxu0 0
        %2555 = vmatpush2.bf16.xpose.msra.mxu0 0
        %2556 = vmatprep.subr.bf16.mxu0 0
        %2557 = vmatpush2.bf16.xpose.msra.mxu0 0
        %2558 = vmatprep.subr.bf16.mxu0 0
        %2559 = vmatpush2.bf16.xpose.msra.mxu0 0
        %2560 = vmatprep.subr.bf16.mxu0 0
        %2561 = vmatpush2.bf16.xpose.msra.mxu0 0
        %2562 = vmatprep.subr.bf16.mxu0 0
        %2563 = vmatpush2.bf16.xpose.msra.mxu0 0
        %2564 = vmatprep.subr.bf16.mxu0 0
        %2565 = vmatpush2.bf16.xpose.msra.mxu0 0
        %2566 = vmatprep.subr.bf16.mxu0 0
        %2567 = vmatpush2.bf16.xpose.msra.mxu0 0
        %2568 = vmatprep.subr.bf16.mxu0 0
        %2569 = vmatpush2.bf16.xpose.msra.mxu0 0
        %2570 = vmatprep.mubr.bf16.mxu0 0
        %2571 = vmatmul.mubr.bf16.gmra.mxu0 %v2533
        %v2572 = vpop.f32.mrf.mxu0
        %v2573 = vadd.f32 0.0, %v2572
        %v2574 = vpop.f32.mrf.mxu0
        %v2575 = vpop.f32.mrf.mxu0
        %v2576 = vpop.f32.mrf.mxu0
        %2577 = vdwg.mxu0
        %v2579 = vsel %vm2163, %v2140, 0
        %v2582 = vsel %vm2163, %v2156, 0
        %2584 = vmatprep.subr.bf16.mxu0 0
        %2585 = vmatpush1.bf16.xpose.msra.mxu0 0
        %2586 = vmatprep.subr.bf16.mxu0 0
        %2587 = vmatpush1.bf16.xpose.msra.mxu0 0
        %2588 = vmatprep.subr.bf16.mxu0 0
        %2589 = vmatpush1.bf16.xpose.msra.mxu0 0
        %2590 = vmatprep.subr.bf16.mxu0 0
        %2591 = vmatpush1.bf16.xpose.msra.mxu0 0
        %2592 = vmatprep.subr.bf16.mxu0 0
        %2593 = vmatpush1.bf16.xpose.msra.mxu0 0
        %2594 = vmatprep.subr.bf16.mxu0 0
        %2595 = vmatpush1.bf16.xpose.msra.mxu0 0
        %2596 = vmatprep.subr.bf16.mxu0 0
        %2597 = vmatpush1.bf16.xpose.msra.mxu0 0
        %2598 = vmatprep.subr.bf16.mxu0 0
        %2599 = vmatpush1.bf16.xpose.msra.mxu0 %v2582
        %2600 = vmatprep.subr.bf16.mxu0 0
        %2601 = vmatpush2.bf16.xpose.msra.mxu0 0
        %2602 = vmatprep.subr.bf16.mxu0 0
        %2603 = vmatpush2.bf16.xpose.msra.mxu0 0
        %2604 = vmatprep.subr.bf16.mxu0 0
        %2605 = vmatpush2.bf16.xpose.msra.mxu0 0
        %2606 = vmatprep.subr.bf16.mxu0 0
        %2607 = vmatpush2.bf16.xpose.msra.mxu0 0
        %2608 = vmatprep.subr.bf16.mxu0 0
        %2609 = vmatpush2.bf16.xpose.msra.mxu0 0
        %2610 = vmatprep.subr.bf16.mxu0 0
        %2611 = vmatpush2.bf16.xpose.msra.mxu0 0
        %2612 = vmatprep.subr.bf16.mxu0 0
        %2613 = vmatpush2.bf16.xpose.msra.mxu0 0
        %2614 = vmatprep.subr.bf16.mxu0 0
        %2615 = vmatpush2.bf16.xpose.msra.mxu0 0
        %2616 = vmatprep.mubr.bf16.mxu0 0
        %2617 = vmatmul.mubr.bf16.gmra.mxu0 %v2579
        %v2618 = vpop.f32.mrf.mxu0
        %v2619 = vadd.f32 0.0, %v2618
        %v2620 = vpop.f32.mrf.mxu0
        %v2621 = vpop.f32.mrf.mxu0
        %v2622 = vpop.f32.mrf.mxu0
        %2623 = vdwg.mxu0
        %v2625 = vsel %vm2163, %v2141, 0
        %v2628 = vsel %vm2163, %v2157, 0
        %2630 = vmatprep.subr.bf16.mxu0 0
        %2631 = vmatpush1.bf16.xpose.msra.mxu0 0
        %2632 = vmatprep.subr.bf16.mxu0 0
        %2633 = vmatpush1.bf16.xpose.msra.mxu0 0
        %2634 = vmatprep.subr.bf16.mxu0 0
        %2635 = vmatpush1.bf16.xpose.msra.mxu0 0
        %2636 = vmatprep.subr.bf16.mxu0 0
        %2637 = vmatpush1.bf16.xpose.msra.mxu0 0
        %2638 = vmatprep.subr.bf16.mxu0 0
        %2639 = vmatpush1.bf16.xpose.msra.mxu0 0
        %2640 = vmatprep.subr.bf16.mxu0 0
        %2641 = vmatpush1.bf16.xpose.msra.mxu0 0
        %2642 = vmatprep.subr.bf16.mxu0 0
        %2643 = vmatpush1.bf16.xpose.msra.mxu0 0
        %2644 = vmatprep.subr.bf16.mxu0 0
        %2645 = vmatpush1.bf16.xpose.msra.mxu0 %v2628
        %2646 = vmatprep.subr.bf16.mxu0 0
        %2647 = vmatpush2.bf16.xpose.msra.mxu0 0
        %2648 = vmatprep.subr.bf16.mxu0 0
        %2649 = vmatpush2.bf16.xpose.msra.mxu0 0
        %2650 = vmatprep.subr.bf16.mxu0 0
        %2651 = vmatpush2.bf16.xpose.msra.mxu0 0
        %2652 = vmatprep.subr.bf16.mxu0 0
        %2653 = vmatpush2.bf16.xpose.msra.mxu0 0
        %2654 = vmatprep.subr.bf16.mxu0 0
        %2655 = vmatpush2.bf16.xpose.msra.mxu0 0
        %2656 = vmatprep.subr.bf16.mxu0 0
        %2657 = vmatpush2.bf16.xpose.msra.mxu0 0
        %2658 = vmatprep.subr.bf16.mxu0 0
        %2659 = vmatpush2.bf16.xpose.msra.mxu0 0
        %2660 = vmatprep.subr.bf16.mxu0 0
        %2661 = vmatpush2.bf16.xpose.msra.mxu0 0
        %2662 = vmatprep.mubr.bf16.mxu0 0
        %2663 = vmatmul.mubr.bf16.gmra.mxu0 %v2625
        %v2664 = vpop.f32.mrf.mxu0
        %v2665 = vadd.f32 0.0, %v2664
        %v2666 = vpop.f32.mrf.mxu0
        %v2667 = vpop.f32.mrf.mxu0
        %v2668 = vpop.f32.mrf.mxu0
        %2669 = vdwg.mxu0
        %v2671 = vsel %vm2163, %v2142, 0
        %v2674 = vsel %vm2163, %v2158, 0
        %2676 = vmatprep.subr.bf16.mxu0 0
        %2677 = vmatpush1.bf16.xpose.msra.mxu0 0
        %2678 = vmatprep.subr.bf16.mxu0 0
        %2679 = vmatpush1.bf16.xpose.msra.mxu0 0
        %2680 = vmatprep.subr.bf16.mxu0 0
        %2681 = vmatpush1.bf16.xpose.msra.mxu0 0
        %2682 = vmatprep.subr.bf16.mxu0 0
        %2683 = vmatpush1.bf16.xpose.msra.mxu0 0
        %2684 = vmatprep.subr.bf16.mxu0 0
        %2685 = vmatpush1.bf16.xpose.msra.mxu0 0
        %2686 = vmatprep.subr.bf16.mxu0 0
        %2687 = vmatpush1.bf16.xpose.msra.mxu0 0
        %2688 = vmatprep.subr.bf16.mxu0 0
        %2689 = vmatpush1.bf16.xpose.msra.mxu0 0
        %2690 = vmatprep.subr.bf16.mxu0 0
        %2691 = vmatpush1.bf16.xpose.msra.mxu0 %v2674
        %2692 = vmatprep.subr.bf16.mxu0 0
        %2693 = vmatpush2.bf16.xpose.msra.mxu0 0
        %2694 = vmatprep.subr.bf16.mxu0 0
        %2695 = vmatpush2.bf16.xpose.msra.mxu0 0
        %2696 = vmatprep.subr.bf16.mxu0 0
        %2697 = vmatpush2.bf16.xpose.msra.mxu0 0
        %2698 = vmatprep.subr.bf16.mxu0 0
        %2699 = vmatpush2.bf16.xpose.msra.mxu0 0
        %2700 = vmatprep.subr.bf16.mxu0 0
        %2701 = vmatpush2.bf16.xpose.msra.mxu0 0
        %2702 = vmatprep.subr.bf16.mxu0 0
        %2703 = vmatpush2.bf16.xpose.msra.mxu0 0
        %2704 = vmatprep.subr.bf16.mxu0 0
        %2705 = vmatpush2.bf16.xpose.msra.mxu0 0
        %2706 = vmatprep.subr.bf16.mxu0 0
        %2707 = vmatpush2.bf16.xpose.msra.mxu0 0
        %2708 = vmatprep.mubr.bf16.mxu0 0
        %2709 = vmatmul.mubr.bf16.gmra.mxu0 %v2671
        %v2710 = vpop.f32.mrf.mxu0
        %v2711 = vadd.f32 0.0, %v2710
        %v2712 = vpop.f32.mrf.mxu0
        %v2713 = vpop.f32.mrf.mxu0
        %v2714 = vpop.f32.mrf.mxu0
        %2715 = vdwg.mxu0
        %v2717 = vsel %vm2163, %v2143, 0
        %v2720 = vsel %vm2163, %v2159, 0
        %2722 = vmatprep.subr.bf16.mxu0 0
        %2723 = vmatpush1.bf16.xpose.msra.mxu0 0
        %2724 = vmatprep.subr.bf16.mxu0 0
        %2725 = vmatpush1.bf16.xpose.msra.mxu0 0
        %2726 = vmatprep.subr.bf16.mxu0 0
        %2727 = vmatpush1.bf16.xpose.msra.mxu0 0
        %2728 = vmatprep.subr.bf16.mxu0 0
        %2729 = vmatpush1.bf16.xpose.msra.mxu0 0
        %2730 = vmatprep.subr.bf16.mxu0 0
        %2731 = vmatpush1.bf16.xpose.msra.mxu0 0
        %2732 = vmatprep.subr.bf16.mxu0 0
        %2733 = vmatpush1.bf16.xpose.msra.mxu0 0
        %2734 = vmatprep.subr.bf16.mxu0 0
        %2735 = vmatpush1.bf16.xpose.msra.mxu0 0
        %2736 = vmatprep.subr.bf16.mxu0 0
        %2737 = vmatpush1.bf16.xpose.msra.mxu0 %v2720
        %2738 = vmatprep.subr.bf16.mxu0 0
        %2739 = vmatpush2.bf16.xpose.msra.mxu0 0
        %2740 = vmatprep.subr.bf16.mxu0 0
        %2741 = vmatpush2.bf16.xpose.msra.mxu0 0
        %2742 = vmatprep.subr.bf16.mxu0 0
        %2743 = vmatpush2.bf16.xpose.msra.mxu0 0
        %2744 = vmatprep.subr.bf16.mxu0 0
        %2745 = vmatpush2.bf16.xpose.msra.mxu0 0
        %2746 = vmatprep.subr.bf16.mxu0 0
        %2747 = vmatpush2.bf16.xpose.msra.mxu0 0
        %2748 = vmatprep.subr.bf16.mxu0 0
        %2749 = vmatpush2.bf16.xpose.msra.mxu0 0
        %2750 = vmatprep.subr.bf16.mxu0 0
        %2751 = vmatpush2.bf16.xpose.msra.mxu0 0
        %2752 = vmatprep.subr.bf16.mxu0 0
        %2753 = vmatpush2.bf16.xpose.msra.mxu0 0
        %2754 = vmatprep.mubr.bf16.mxu0 0
        %2755 = vmatmul.mubr.bf16.gmra.mxu0 %v2717
        %v2756 = vpop.f32.mrf.mxu0
        %v2757 = vadd.f32 0.0, %v2756
        %v2758 = vpop.f32.mrf.mxu0
        %v2759 = vpop.f32.mrf.mxu0
        %v2760 = vpop.f32.mrf.mxu0
        %2761 = vdwg.mxu0
        %v2763 = vsel %vm2163, %v2144, 0
        %v2766 = vsel %vm2163, %v2160, 0
        %2768 = vmatprep.subr.bf16.mxu0 0
        %2769 = vmatpush1.bf16.xpose.msra.mxu0 0
        %2770 = vmatprep.subr.bf16.mxu0 0
        %2771 = vmatpush1.bf16.xpose.msra.mxu0 0
        %2772 = vmatprep.subr.bf16.mxu0 0
        %2773 = vmatpush1.bf16.xpose.msra.mxu0 0
        %2774 = vmatprep.subr.bf16.mxu0 0
        %2775 = vmatpush1.bf16.xpose.msra.mxu0 0
        %2776 = vmatprep.subr.bf16.mxu0 0
        %2777 = vmatpush1.bf16.xpose.msra.mxu0 0
        %2778 = vmatprep.subr.bf16.mxu0 0
        %2779 = vmatpush1.bf16.xpose.msra.mxu0 0
        %2780 = vmatprep.subr.bf16.mxu0 0
        %2781 = vmatpush1.bf16.xpose.msra.mxu0 0
        %2782 = vmatprep.subr.bf16.mxu0 0
        %2783 = vmatpush1.bf16.xpose.msra.mxu0 %v2766
        %2784 = vmatprep.subr.bf16.mxu0 0
        %2785 = vmatpush2.bf16.xpose.msra.mxu0 0
        %2786 = vmatprep.subr.bf16.mxu0 0
        %2787 = vmatpush2.bf16.xpose.msra.mxu0 0
        %2788 = vmatprep.subr.bf16.mxu0 0
        %2789 = vmatpush2.bf16.xpose.msra.mxu0 0
        %2790 = vmatprep.subr.bf16.mxu0 0
        %2791 = vmatpush2.bf16.xpose.msra.mxu0 0
        %2792 = vmatprep.subr.bf16.mxu0 0
        %2793 = vmatpush2.bf16.xpose.msra.mxu0 0
        %2794 = vmatprep.subr.bf16.mxu0 0
        %2795 = vmatpush2.bf16.xpose.msra.mxu0 0
        %2796 = vmatprep.subr.bf16.mxu0 0
        %2797 = vmatpush2.bf16.xpose.msra.mxu0 0
        %2798 = vmatprep.subr.bf16.mxu0 0
        %2799 = vmatpush2.bf16.xpose.msra.mxu0 0
        %2800 = vmatprep.mubr.bf16.mxu0 0
        %2801 = vmatmul.mubr.bf16.gmra.mxu0 %v2763
        %v2802 = vpop.f32.mrf.mxu0
        %v2803 = vadd.f32 0.0, %v2802
        %v2804 = vpop.f32.mrf.mxu0
        %v2805 = vpop.f32.mrf.mxu0
        %v2806 = vpop.f32.mrf.mxu0
        %2807 = vdwg.mxu0
        %v2809 = vsel %vm2163, %v2145, 0
        %v2812 = vsel %vm2163, %v2161, 0
        %2814 = vmatprep.subr.bf16.mxu0 0
        %2815 = vmatpush1.bf16.xpose.msra.mxu0 0
        %2816 = vmatprep.subr.bf16.mxu0 0
        %2817 = vmatpush1.bf16.xpose.msra.mxu0 0
        %2818 = vmatprep.subr.bf16.mxu0 0
        %2819 = vmatpush1.bf16.xpose.msra.mxu0 0
        %2820 = vmatprep.subr.bf16.mxu0 0
        %2821 = vmatpush1.bf16.xpose.msra.mxu0 0
        %2822 = vmatprep.subr.bf16.mxu0 0
        %2823 = vmatpush1.bf16.xpose.msra.mxu0 0
        %2824 = vmatprep.subr.bf16.mxu0 0
        %2825 = vmatpush1.bf16.xpose.msra.mxu0 0
        %2826 = vmatprep.subr.bf16.mxu0 0
        %2827 = vmatpush1.bf16.xpose.msra.mxu0 0
        %2828 = vmatprep.subr.bf16.mxu0 0
        %2829 = vmatpush1.bf16.xpose.msra.mxu0 %v2812
        %2830 = vmatprep.subr.bf16.mxu0 0
        %2831 = vmatpush2.bf16.xpose.msra.mxu0 0
        %2832 = vmatprep.subr.bf16.mxu0 0
        %2833 = vmatpush2.bf16.xpose.msra.mxu0 0
        %2834 = vmatprep.subr.bf16.mxu0 0
        %2835 = vmatpush2.bf16.xpose.msra.mxu0 0
        %2836 = vmatprep.subr.bf16.mxu0 0
        %2837 = vmatpush2.bf16.xpose.msra.mxu0 0
        %2838 = vmatprep.subr.bf16.mxu0 0
        %2839 = vmatpush2.bf16.xpose.msra.mxu0 0
        %2840 = vmatprep.subr.bf16.mxu0 0
        %2841 = vmatpush2.bf16.xpose.msra.mxu0 0
        %2842 = vmatprep.subr.bf16.mxu0 0
        %2843 = vmatpush2.bf16.xpose.msra.mxu0 0
        %2844 = vmatprep.subr.bf16.mxu0 0
        %2845 = vmatpush2.bf16.xpose.msra.mxu0 0
        %2846 = vmatprep.mubr.bf16.mxu0 0
        %2847 = vmatmul.mubr.bf16.gmra.mxu0 %v2809
        %v2848 = vpop.f32.mrf.mxu0
        %v2849 = vadd.f32 0.0, %v2848
        %v2850 = vpop.f32.mrf.mxu0
        %v2851 = vpop.f32.mrf.mxu0
        %v2852 = vpop.f32.mrf.mxu0
        %2853 = vdwg.mxu0
        %v2855 = vsel %vm2163, %v2146, 0
        %v2858 = vsel %vm2163, %v2162, 0
        %2860 = vmatprep.subr.bf16.mxu0 0
        %2861 = vmatpush1.bf16.xpose.msra.mxu0 0
        %2862 = vmatprep.subr.bf16.mxu0 0
        %2863 = vmatpush1.bf16.xpose.msra.mxu0 0
        %2864 = vmatprep.subr.bf16.mxu0 0
        %2865 = vmatpush1.bf16.xpose.msra.mxu0 0
        %2866 = vmatprep.subr.bf16.mxu0 0
        %2867 = vmatpush1.bf16.xpose.msra.mxu0 0
        %2868 = vmatprep.subr.bf16.mxu0 0
        %2869 = vmatpush1.bf16.xpose.msra.mxu0 0
        %2870 = vmatprep.subr.bf16.mxu0 0
        %2871 = vmatpush1.bf16.xpose.msra.mxu0 0
        %2872 = vmatprep.subr.bf16.mxu0 0
        %2873 = vmatpush1.bf16.xpose.msra.mxu0 0
        %2874 = vmatprep.subr.bf16.mxu0 0
        %2875 = vmatpush1.bf16.xpose.msra.mxu0 %v2858
        %2876 = vmatprep.subr.bf16.mxu0 0
        %2877 = vmatpush2.bf16.xpose.msra.mxu0 0
        %2878 = vmatprep.subr.bf16.mxu0 0
        %2879 = vmatpush2.bf16.xpose.msra.mxu0 0
        %2880 = vmatprep.subr.bf16.mxu0 0
        %2881 = vmatpush2.bf16.xpose.msra.mxu0 0
        %2882 = vmatprep.subr.bf16.mxu0 0
        %2883 = vmatpush2.bf16.xpose.msra.mxu0 0
        %2884 = vmatprep.subr.bf16.mxu0 0
        %2885 = vmatpush2.bf16.xpose.msra.mxu0 0
        %2886 = vmatprep.subr.bf16.mxu0 0
        %2887 = vmatpush2.bf16.xpose.msra.mxu0 0
        %2888 = vmatprep.subr.bf16.mxu0 0
        %2889 = vmatpush2.bf16.xpose.msra.mxu0 0
        %2890 = vmatprep.subr.bf16.mxu0 0
        %2891 = vmatpush2.bf16.xpose.msra.mxu0 0
        %2892 = vmatprep.mubr.bf16.mxu0 0
        %2893 = vmatmul.mubr.bf16.gmra.mxu0 %v2855
        %v2894 = vpop.f32.mrf.mxu0
        %v2895 = vadd.f32 0.0, %v2894
        %v2896 = vpop.f32.mrf.mxu0
        %v2897 = vpop.f32.mrf.mxu0
        %v2898 = vpop.f32.mrf.mxu0
        %2899 = vdwg.mxu0
        %vm2900 = vcmp.gt.f32.partialorder %v280, 0.0
        %vm2901 = vcmp.gt.f32.partialorder %v281, 0.0
        %vm2902 = vcmp.gt.f32.partialorder %v282, 0.0
        %vm2903 = vcmp.gt.f32.partialorder %v283, 0.0
        %v2904 = vsel %vm2900, %v2205, -1e+30
        %v2905 = vsel %vm2901, %v2251, -1e+30
        %v2906 = vsel %vm2902, %v2297, -1e+30
        %v2907 = vsel %vm2903, %v2343, -1e+30
        %v2908 = vsel %vm2900, %v2389, -1e+30
        %v2909 = vsel %vm2901, %v2435, -1e+30
        %v2910 = vsel %vm2902, %v2481, -1e+30
        %v2911 = vsel %vm2903, %v2527, -1e+30
        %v2912 = vsel %vm2900, %v2573, -1e+30
        %v2913 = vsel %vm2901, %v2619, -1e+30
        %v2914 = vsel %vm2902, %v2665, -1e+30
        %v2915 = vsel %vm2903, %v2711, -1e+30
        %v2916 = vsel %vm2900, %v2757, -1e+30
        %v2917 = vsel %vm2901, %v2803, -1e+30
        %v2918 = vsel %vm2902, %v2849, -1e+30
        %v2919 = vsel %vm2903, %v2895, -1e+30
        %v2920 = vsel %vm2163, %v2904, -inf
        %2921 = vmax.xlane.f32.xlu0 %v2920
        %v2922 = vpop.xlane.xlu0 %2921
        %v2923 = vsel %vm2163, %v2905, -inf
        %2924 = vmax.xlane.f32.xlu0 %v2923
        %v2925 = vpop.xlane.xlu0 %2924
        %v2926 = vsel %vm2163, %v2906, -inf
        %2927 = vmax.xlane.f32.xlu0 %v2926
        %v2928 = vpop.xlane.xlu0 %2927
        %v2929 = vsel %vm2163, %v2907, -inf
        %2930 = vmax.xlane.f32.xlu0 %v2929
        %v2931 = vpop.xlane.xlu0 %2930
        %v2932 = vsel %vm2163, %v2908, -inf
        %2933 = vmax.xlane.f32.xlu0 %v2932
        %v2934 = vpop.xlane.xlu0 %2933
        %v2935 = vsel %vm2163, %v2909, -inf
        %2936 = vmax.xlane.f32.xlu0 %v2935
        %v2937 = vpop.xlane.xlu0 %2936
        %v2938 = vsel %vm2163, %v2910, -inf
        %2939 = vmax.xlane.f32.xlu0 %v2938
        %v2940 = vpop.xlane.xlu0 %2939
        %v2941 = vsel %vm2163, %v2911, -inf
        %2942 = vmax.xlane.f32.xlu0 %v2941
        %v2943 = vpop.xlane.xlu0 %2942
        %v2944 = vsel %vm2163, %v2912, -inf
        %2945 = vmax.xlane.f32.xlu0 %v2944
        %v2946 = vpop.xlane.xlu0 %2945
        %v2947 = vsel %vm2163, %v2913, -inf
        %2948 = vmax.xlane.f32.xlu0 %v2947
        %v2949 = vpop.xlane.xlu0 %2948
        %v2950 = vsel %vm2163, %v2914, -inf
        %2951 = vmax.xlane.f32.xlu0 %v2950
        %v2952 = vpop.xlane.xlu0 %2951
        %v2953 = vsel %vm2163, %v2915, -inf
        %2954 = vmax.xlane.f32.xlu0 %v2953
        %v2955 = vpop.xlane.xlu0 %2954
        %v2956 = vsel %vm2163, %v2916, -inf
        %2957 = vmax.xlane.f32.xlu0 %v2956
        %v2958 = vpop.xlane.xlu0 %2957
        %v2959 = vsel %vm2163, %v2917, -inf
        %2960 = vmax.xlane.f32.xlu0 %v2959
        %v2961 = vpop.xlane.xlu0 %2960
        %v2962 = vsel %vm2163, %v2918, -inf
        %2963 = vmax.xlane.f32.xlu0 %v2962
        %v2964 = vpop.xlane.xlu0 %2963
        %v2965 = vsel %vm2163, %v2919, -inf
        %2966 = vmax.xlane.f32.xlu0 %v2965
        %v2967 = vpop.xlane.xlu0 %2966
        %v2968 = vsub.f32 %v2904, %v2922
        %v2969 = vsub.f32 %v2905, %v2925
        %v2970 = vsub.f32 %v2906, %v2928
        %v2971 = vsub.f32 %v2907, %v2931
        %v2972 = vsub.f32 %v2908, %v2934
        %v2973 = vsub.f32 %v2909, %v2937
        %v2974 = vsub.f32 %v2910, %v2940
        %v2975 = vsub.f32 %v2911, %v2943
        %v2976 = vsub.f32 %v2912, %v2946
        %v2977 = vsub.f32 %v2913, %v2949
        %v2978 = vsub.f32 %v2914, %v2952
        %v2979 = vsub.f32 %v2915, %v2955
        %v2980 = vsub.f32 %v2916, %v2958
        %v2981 = vsub.f32 %v2917, %v2961
        %v2982 = vsub.f32 %v2918, %v2964
        %v2983 = vsub.f32 %v2919, %v2967
        %v2984 = vmul.f32 %v2968, 1.442695
        %v2985 = vpow.pop %v2984
        %v2986 = vmul.f32 %v2969, 1.442695
        %v2987 = vpow.pop %v2986
        %v2988 = vmul.f32 %v2970, 1.442695
        %v2989 = vpow.pop %v2988
        %v2990 = vmul.f32 %v2971, 1.442695
        %v2991 = vpow.pop %v2990
        %v2992 = vmul.f32 %v2972, 1.442695
        %v2993 = vpow.pop %v2992
        %v2994 = vmul.f32 %v2973, 1.442695
        %v2995 = vpow.pop %v2994
        %v2996 = vmul.f32 %v2974, 1.442695
        %v2997 = vpow.pop %v2996
        %v2998 = vmul.f32 %v2975, 1.442695
        %v2999 = vpow.pop %v2998
        %v3000 = vmul.f32 %v2976, 1.442695
        %v3001 = vpow.pop %v3000
        %v3002 = vmul.f32 %v2977, 1.442695
        %v3003 = vpow.pop %v3002
        %v3004 = vmul.f32 %v2978, 1.442695
        %v3005 = vpow.pop %v3004
        %v3006 = vmul.f32 %v2979, 1.442695
        %v3007 = vpow.pop %v3006
        %v3008 = vmul.f32 %v2980, 1.442695
        %v3009 = vpow.pop %v3008
        %v3010 = vmul.f32 %v2981, 1.442695
        %v3011 = vpow.pop %v3010
        %v3012 = vmul.f32 %v2982, 1.442695
        %v3013 = vpow.pop %v3012
        %v3014 = vmul.f32 %v2983, 1.442695
        %v3015 = vpow.pop %v3014
        %v3016 = vsel %vm2900, 1, 0
        %v3017 = vsel %vm2901, 1, 0
        %v3018 = vsel %vm2902, 1, 0
        %v3019 = vsel %vm2903, 1, 0
        %v3020 = vcvt.s32.f32 %v3016
        %v3021 = vcvt.s32.f32 %v3017
        %v3022 = vcvt.s32.f32 %v3018
        %v3023 = vcvt.s32.f32 %v3019
        %v3024 = vmul.f32 %v2985, %v3020
        %v3025 = vmul.f32 %v2987, %v3021
        %v3026 = vmul.f32 %v2989, %v3022
        %v3027 = vmul.f32 %v2991, %v3023
        %v3028 = vmul.f32 %v2993, %v3020
        %v3029 = vmul.f32 %v2995, %v3021
        %v3030 = vmul.f32 %v2997, %v3022
        %v3031 = vmul.f32 %v2999, %v3023
        %v3032 = vmul.f32 %v3001, %v3020
        %v3033 = vmul.f32 %v3003, %v3021
        %v3034 = vmul.f32 %v3005, %v3022
        %v3035 = vmul.f32 %v3007, %v3023
        %v3036 = vmul.f32 %v3009, %v3020
        %v3037 = vmul.f32 %v3011, %v3021
        %v3038 = vmul.f32 %v3013, %v3022
        %v3039 = vmul.f32 %v3015, %v3023
        %v3040 = vsel %vm2163, %v3024, 0.0
        %3041 = vadd.xlane.f32.xlu0 %v3040
        %v3042 = vpop.xlane.xlu0 %3041
        %v3043 = vsel %vm2163, %v3025, 0.0
        %3044 = vadd.xlane.f32.xlu0 %v3043
        %v3045 = vpop.xlane.xlu0 %3044
        %v3046 = vsel %vm2163, %v3026, 0.0
        %3047 = vadd.xlane.f32.xlu0 %v3046
        %v3048 = vpop.xlane.xlu0 %3047
        %v3049 = vsel %vm2163, %v3027, 0.0
        %3050 = vadd.xlane.f32.xlu0 %v3049
        %v3051 = vpop.xlane.xlu0 %3050
        %v3052 = vsel %vm2163, %v3028, 0.0
        %3053 = vadd.xlane.f32.xlu0 %v3052
        %v3054 = vpop.xlane.xlu0 %3053
        %v3055 = vsel %vm2163, %v3029, 0.0
        %3056 = vadd.xlane.f32.xlu0 %v3055
        %v3057 = vpop.xlane.xlu0 %3056
        %v3058 = vsel %vm2163, %v3030, 0.0
        %3059 = vadd.xlane.f32.xlu0 %v3058
        %v3060 = vpop.xlane.xlu0 %3059
        %v3061 = vsel %vm2163, %v3031, 0.0
        %3062 = vadd.xlane.f32.xlu0 %v3061
        %v3063 = vpop.xlane.xlu0 %3062
        %v3064 = vsel %vm2163, %v3032, 0.0
        %3065 = vadd.xlane.f32.xlu0 %v3064
        %v3066 = vpop.xlane.xlu0 %3065
        %v3067 = vsel %vm2163, %v3033, 0.0
        %3068 = vadd.xlane.f32.xlu0 %v3067
        %v3069 = vpop.xlane.xlu0 %3068
        %v3070 = vsel %vm2163, %v3034, 0.0
        %3071 = vadd.xlane.f32.xlu0 %v3070
        %v3072 = vpop.xlane.xlu0 %3071
        %v3073 = vsel %vm2163, %v3035, 0.0
        %3074 = vadd.xlane.f32.xlu0 %v3073
        %v3075 = vpop.xlane.xlu0 %3074
        %v3076 = vsel %vm2163, %v3036, 0.0
        %3077 = vadd.xlane.f32.xlu0 %v3076
        %v3078 = vpop.xlane.xlu0 %3077
        %v3079 = vsel %vm2163, %v3037, 0.0
        %3080 = vadd.xlane.f32.xlu0 %v3079
        %v3081 = vpop.xlane.xlu0 %3080
        %v3082 = vsel %vm2163, %v3038, 0.0
        %3083 = vadd.xlane.f32.xlu0 %v3082
        %v3084 = vpop.xlane.xlu0 %3083
        %v3085 = vsel %vm2163, %v3039, 0.0
        %3086 = vadd.xlane.f32.xlu0 %v3085
        %v3087 = vpop.xlane.xlu0 %3086
        %v3088 = vmax.f32 %v3042, 1e-30
        %v3089 = vmax.f32 %v3045, 1e-30
        %v3090 = vmax.f32 %v3048, 1e-30
        %v3091 = vmax.f32 %v3051, 1e-30
        %v3092 = vmax.f32 %v3054, 1e-30
        %v3093 = vmax.f32 %v3057, 1e-30
        %v3094 = vmax.f32 %v3060, 1e-30
        %v3095 = vmax.f32 %v3063, 1e-30
        %v3096 = vmax.f32 %v3066, 1e-30
        %v3097 = vmax.f32 %v3069, 1e-30
        %v3098 = vmax.f32 %v3072, 1e-30
        %v3099 = vmax.f32 %v3075, 1e-30
        %v3100 = vmax.f32 %v3078, 1e-30
        %v3101 = vmax.f32 %v3081, 1e-30
        %v3102 = vmax.f32 %v3084, 1e-30
        %v3103 = vmax.f32 %v3087, 1e-30
        %v3104 = vrcp.pop %v3088
        %v3105 = vmul.f32 %v3024, %v3104
        %v3106 = vrcp.pop %v3089
        %v3107 = vmul.f32 %v3025, %v3106
        %v3108 = vrcp.pop %v3090
        %v3109 = vmul.f32 %v3026, %v3108
        %v3110 = vrcp.pop %v3091
        %v3111 = vmul.f32 %v3027, %v3110
        %v3112 = vrcp.pop %v3092
        %v3113 = vmul.f32 %v3028, %v3112
        %v3114 = vrcp.pop %v3093
        %v3115 = vmul.f32 %v3029, %v3114
        %v3116 = vrcp.pop %v3094
        %v3117 = vmul.f32 %v3030, %v3116
        %v3118 = vrcp.pop %v3095
        %v3119 = vmul.f32 %v3031, %v3118
        %v3120 = vrcp.pop %v3096
        %v3121 = vmul.f32 %v3032, %v3120
        %v3122 = vrcp.pop %v3097
        %v3123 = vmul.f32 %v3033, %v3122
        %v3124 = vrcp.pop %v3098
        %v3125 = vmul.f32 %v3034, %v3124
        %v3126 = vrcp.pop %v3099
        %v3127 = vmul.f32 %v3035, %v3126
        %v3128 = vrcp.pop %v3100
        %v3129 = vmul.f32 %v3036, %v3128
        %v3130 = vrcp.pop %v3101
        %v3131 = vmul.f32 %v3037, %v3130
        %v3132 = vrcp.pop %v3102
        %v3133 = vmul.f32 %v3038, %v3132
        %v3134 = vrcp.pop %v3103
        %v3135 = vmul.f32 %v3039, %v3134
        %v3136 = vpack.c.bf16 %v3105, %v3105
        %v3137 = vpack.c.bf16 %v3107, %v3107
        %v3138 = vpack.c.bf16 %v3109, %v3109
        %v3139 = vpack.c.bf16 %v3111, %v3111
        %v3140 = vpack.c.bf16 %v3113, %v3113
        %v3141 = vpack.c.bf16 %v3115, %v3115
        %v3142 = vpack.c.bf16 %v3117, %v3117
        %v3143 = vpack.c.bf16 %v3119, %v3119
        %v3144 = vpack.c.bf16 %v3121, %v3121
        %v3145 = vpack.c.bf16 %v3123, %v3123
        %v3146 = vpack.c.bf16 %v3125, %v3125
        %v3147 = vpack.c.bf16 %v3127, %v3127
        %v3148 = vpack.c.bf16 %v3129, %v3129
        %v3149 = vpack.c.bf16 %v3131, %v3131
        %v3150 = vpack.c.bf16 %v3133, %v3133
        %v3151 = vpack.c.bf16 %v3135, %v3135
        %v3152 = vpack.c.bf16 %v1923, %v1923
        %v3153 = vpack.c.bf16 %v1991, %v1991
        %v3154 = vpack.c.bf16 %v2059, %v2059
        %v3155 = vpack.c.bf16 %v2127, %v2127
        %v3156 = vpack.c.bf16 %v1924, %v1924
        %v3157 = vpack.c.bf16 %v1992, %v1992
        %v3158 = vpack.c.bf16 %v2060, %v2060
        %v3159 = vpack.c.bf16 %v2128, %v2128
        %v3160 = vpack.c.bf16 %v1925, %v1925
        %v3161 = vpack.c.bf16 %v1993, %v1993
        %v3162 = vpack.c.bf16 %v2061, %v2061
        %v3163 = vpack.c.bf16 %v2129, %v2129
        %v3164 = vpack.c.bf16 %v1926, %v1926
        %v3165 = vpack.c.bf16 %v1994, %v1994
        %v3166 = vpack.c.bf16 %v2062, %v2062
        %v3167 = vpack.c.bf16 %v2130, %v2130
        %v3169 = vsel %vm2163, %v3136, 0
        %vm3171 = vcmask 1043456
        %v3173 = vsel %vm3171, %v3152, 0
        %3175 = vmatprep.subr.bf16.mxu0 0
        %3176 = vmatpush1.bf16.msra.mxu0 0
        %3177 = vmatprep.subr.bf16.mxu0 0
        %3178 = vmatpush1.bf16.msra.mxu0 0
        %3179 = vmatprep.subr.bf16.mxu0 0
        %3180 = vmatpush1.bf16.msra.mxu0 0
        %3181 = vmatprep.subr.bf16.mxu0 0
        %3182 = vmatpush1.bf16.msra.mxu0 0
        %3183 = vmatprep.subr.bf16.mxu0 0
        %3184 = vmatpush1.bf16.msra.mxu0 0
        %3185 = vmatprep.subr.bf16.mxu0 0
        %3186 = vmatpush1.bf16.msra.mxu0 0
        %3187 = vmatprep.subr.bf16.mxu0 0
        %3188 = vmatpush1.bf16.msra.mxu0 0
        %3189 = vmatprep.subr.bf16.mxu0 0
        %3190 = vmatpush1.bf16.msra.mxu0 %v3173
        %3191 = vmatprep.subr.bf16.mxu0 0
        %3192 = vmatpush2.bf16.msra.mxu0 0
        %3193 = vmatprep.subr.bf16.mxu0 0
        %3194 = vmatpush2.bf16.msra.mxu0 0
        %3195 = vmatprep.subr.bf16.mxu0 0
        %3196 = vmatpush2.bf16.msra.mxu0 0
        %3197 = vmatprep.subr.bf16.mxu0 0
        %3198 = vmatpush2.bf16.msra.mxu0 0
        %3199 = vmatprep.subr.bf16.mxu0 0
        %3200 = vmatpush2.bf16.msra.mxu0 0
        %3201 = vmatprep.subr.bf16.mxu0 0
        %3202 = vmatpush2.bf16.msra.mxu0 0
        %3203 = vmatprep.subr.bf16.mxu0 0
        %3204 = vmatpush2.bf16.msra.mxu0 0
        %3205 = vmatprep.subr.bf16.mxu0 0
        %3206 = vmatpush2.bf16.msra.mxu0 0
        %3207 = vmatprep.mubr.bf16.mxu0 0
        %3208 = vmatmul.mubr.bf16.gmra.mxu0 %v3169
        %v3209 = vpop.f32.mrf.mxu0
        %v3210 = vadd.f32 0.0, %v3209
        %v3211 = vpop.f32.mrf.mxu0
        %v3212 = vpop.f32.mrf.mxu0
        %v3213 = vpop.f32.mrf.mxu0
        %3214 = vdwg.mxu0
        %v3216 = vsel %vm2163, %v3137, 0
        %v3219 = vsel %vm3171, %v3153, 0
        %3221 = vmatprep.subr.bf16.mxu0 0
        %3222 = vmatpush1.bf16.msra.mxu0 0
        %3223 = vmatprep.subr.bf16.mxu0 0
        %3224 = vmatpush1.bf16.msra.mxu0 0
        %3225 = vmatprep.subr.bf16.mxu0 0
        %3226 = vmatpush1.bf16.msra.mxu0 0
        %3227 = vmatprep.subr.bf16.mxu0 0
        %3228 = vmatpush1.bf16.msra.mxu0 0
        %3229 = vmatprep.subr.bf16.mxu0 0
        %3230 = vmatpush1.bf16.msra.mxu0 0
        %3231 = vmatprep.subr.bf16.mxu0 0
        %3232 = vmatpush1.bf16.msra.mxu0 0
        %3233 = vmatprep.subr.bf16.mxu0 0
        %3234 = vmatpush1.bf16.msra.mxu0 0
        %3235 = vmatprep.subr.bf16.mxu0 0
        %3236 = vmatpush1.bf16.msra.mxu0 %v3219
        %3237 = vmatprep.subr.bf16.mxu0 0
        %3238 = vmatpush2.bf16.msra.mxu0 0
        %3239 = vmatprep.subr.bf16.mxu0 0
        %3240 = vmatpush2.bf16.msra.mxu0 0
        %3241 = vmatprep.subr.bf16.mxu0 0
        %3242 = vmatpush2.bf16.msra.mxu0 0
        %3243 = vmatprep.subr.bf16.mxu0 0
        %3244 = vmatpush2.bf16.msra.mxu0 0
        %3245 = vmatprep.subr.bf16.mxu0 0
        %3246 = vmatpush2.bf16.msra.mxu0 0
        %3247 = vmatprep.subr.bf16.mxu0 0
        %3248 = vmatpush2.bf16.msra.mxu0 0
        %3249 = vmatprep.subr.bf16.mxu0 0
        %3250 = vmatpush2.bf16.msra.mxu0 0
        %3251 = vmatprep.subr.bf16.mxu0 0
        %3252 = vmatpush2.bf16.msra.mxu0 0
        %3253 = vmatprep.mubr.bf16.mxu0 0
        %3254 = vmatmul.mubr.bf16.gmra.mxu0 %v3216
        %v3255 = vpop.f32.mrf.mxu0
        %v3256 = vadd.f32 0.0, %v3255
        %v3257 = vpop.f32.mrf.mxu0
        %v3258 = vpop.f32.mrf.mxu0
        %v3259 = vpop.f32.mrf.mxu0
        %3260 = vdwg.mxu0
        %v3262 = vsel %vm2163, %v3138, 0
        %v3265 = vsel %vm3171, %v3154, 0
        %3267 = vmatprep.subr.bf16.mxu0 0
        %3268 = vmatpush1.bf16.msra.mxu0 0
        %3269 = vmatprep.subr.bf16.mxu0 0
        %3270 = vmatpush1.bf16.msra.mxu0 0
        %3271 = vmatprep.subr.bf16.mxu0 0
        %3272 = vmatpush1.bf16.msra.mxu0 0
        %3273 = vmatprep.subr.bf16.mxu0 0
        %3274 = vmatpush1.bf16.msra.mxu0 0
        %3275 = vmatprep.subr.bf16.mxu0 0
        %3276 = vmatpush1.bf16.msra.mxu0 0
        %3277 = vmatprep.subr.bf16.mxu0 0
        %3278 = vmatpush1.bf16.msra.mxu0 0
        %3279 = vmatprep.subr.bf16.mxu0 0
        %3280 = vmatpush1.bf16.msra.mxu0 0
        %3281 = vmatprep.subr.bf16.mxu0 0
        %3282 = vmatpush1.bf16.msra.mxu0 %v3265
        %3283 = vmatprep.subr.bf16.mxu0 0
        %3284 = vmatpush2.bf16.msra.mxu0 0
        %3285 = vmatprep.subr.bf16.mxu0 0
        %3286 = vmatpush2.bf16.msra.mxu0 0
        %3287 = vmatprep.subr.bf16.mxu0 0
        %3288 = vmatpush2.bf16.msra.mxu0 0
        %3289 = vmatprep.subr.bf16.mxu0 0
        %3290 = vmatpush2.bf16.msra.mxu0 0
        %3291 = vmatprep.subr.bf16.mxu0 0
        %3292 = vmatpush2.bf16.msra.mxu0 0
        %3293 = vmatprep.subr.bf16.mxu0 0
        %3294 = vmatpush2.bf16.msra.mxu0 0
        %3295 = vmatprep.subr.bf16.mxu0 0
        %3296 = vmatpush2.bf16.msra.mxu0 0
        %3297 = vmatprep.subr.bf16.mxu0 0
        %3298 = vmatpush2.bf16.msra.mxu0 0
        %3299 = vmatprep.mubr.bf16.mxu0 0
        %3300 = vmatmul.mubr.bf16.gmra.mxu0 %v3262
        %v3301 = vpop.f32.mrf.mxu0
        %v3302 = vadd.f32 0.0, %v3301
        %v3303 = vpop.f32.mrf.mxu0
        %v3304 = vpop.f32.mrf.mxu0
        %v3305 = vpop.f32.mrf.mxu0
        %3306 = vdwg.mxu0
        %v3308 = vsel %vm2163, %v3139, 0
        %v3311 = vsel %vm3171, %v3155, 0
        %3313 = vmatprep.subr.bf16.mxu0 0
        %3314 = vmatpush1.bf16.msra.mxu0 0
        %3315 = vmatprep.subr.bf16.mxu0 0
        %3316 = vmatpush1.bf16.msra.mxu0 0
        %3317 = vmatprep.subr.bf16.mxu0 0
        %3318 = vmatpush1.bf16.msra.mxu0 0
        %3319 = vmatprep.subr.bf16.mxu0 0
        %3320 = vmatpush1.bf16.msra.mxu0 0
        %3321 = vmatprep.subr.bf16.mxu0 0
        %3322 = vmatpush1.bf16.msra.mxu0 0
        %3323 = vmatprep.subr.bf16.mxu0 0
        %3324 = vmatpush1.bf16.msra.mxu0 0
        %3325 = vmatprep.subr.bf16.mxu0 0
        %3326 = vmatpush1.bf16.msra.mxu0 0
        %3327 = vmatprep.subr.bf16.mxu0 0
        %3328 = vmatpush1.bf16.msra.mxu0 %v3311
        %3329 = vmatprep.subr.bf16.mxu0 0
        %3330 = vmatpush2.bf16.msra.mxu0 0
        %3331 = vmatprep.subr.bf16.mxu0 0
        %3332 = vmatpush2.bf16.msra.mxu0 0
        %3333 = vmatprep.subr.bf16.mxu0 0
        %3334 = vmatpush2.bf16.msra.mxu0 0
        %3335 = vmatprep.subr.bf16.mxu0 0
        %3336 = vmatpush2.bf16.msra.mxu0 0
        %3337 = vmatprep.subr.bf16.mxu0 0
        %3338 = vmatpush2.bf16.msra.mxu0 0
        %3339 = vmatprep.subr.bf16.mxu0 0
        %3340 = vmatpush2.bf16.msra.mxu0 0
        %3341 = vmatprep.subr.bf16.mxu0 0
        %3342 = vmatpush2.bf16.msra.mxu0 0
        %3343 = vmatprep.subr.bf16.mxu0 0
        %3344 = vmatpush2.bf16.msra.mxu0 0
        %3345 = vmatprep.mubr.bf16.mxu0 0
        %3346 = vmatmul.mubr.bf16.gmra.mxu0 %v3308
        %v3347 = vpop.f32.mrf.mxu0
        %v3348 = vadd.f32 0.0, %v3347
        %v3349 = vpop.f32.mrf.mxu0
        %v3350 = vpop.f32.mrf.mxu0
        %v3351 = vpop.f32.mrf.mxu0
        %3352 = vdwg.mxu0
        %v3354 = vsel %vm2163, %v3140, 0
        %v3357 = vsel %vm3171, %v3156, 0
        %3359 = vmatprep.subr.bf16.mxu0 0
        %3360 = vmatpush1.bf16.msra.mxu0 0
        %3361 = vmatprep.subr.bf16.mxu0 0
        %3362 = vmatpush1.bf16.msra.mxu0 0
        %3363 = vmatprep.subr.bf16.mxu0 0
        %3364 = vmatpush1.bf16.msra.mxu0 0
        %3365 = vmatprep.subr.bf16.mxu0 0
        %3366 = vmatpush1.bf16.msra.mxu0 0
        %3367 = vmatprep.subr.bf16.mxu0 0
        %3368 = vmatpush1.bf16.msra.mxu0 0
        %3369 = vmatprep.subr.bf16.mxu0 0
        %3370 = vmatpush1.bf16.msra.mxu0 0
        %3371 = vmatprep.subr.bf16.mxu0 0
        %3372 = vmatpush1.bf16.msra.mxu0 0
        %3373 = vmatprep.subr.bf16.mxu0 0
        %3374 = vmatpush1.bf16.msra.mxu0 %v3357
        %3375 = vmatprep.subr.bf16.mxu0 0
        %3376 = vmatpush2.bf16.msra.mxu0 0
        %3377 = vmatprep.subr.bf16.mxu0 0
        %3378 = vmatpush2.bf16.msra.mxu0 0
        %3379 = vmatprep.subr.bf16.mxu0 0
        %3380 = vmatpush2.bf16.msra.mxu0 0
        %3381 = vmatprep.subr.bf16.mxu0 0
        %3382 = vmatpush2.bf16.msra.mxu0 0
        %3383 = vmatprep.subr.bf16.mxu0 0
        %3384 = vmatpush2.bf16.msra.mxu0 0
        %3385 = vmatprep.subr.bf16.mxu0 0
        %3386 = vmatpush2.bf16.msra.mxu0 0
        %3387 = vmatprep.subr.bf16.mxu0 0
        %3388 = vmatpush2.bf16.msra.mxu0 0
        %3389 = vmatprep.subr.bf16.mxu0 0
        %3390 = vmatpush2.bf16.msra.mxu0 0
        %3391 = vmatprep.mubr.bf16.mxu0 0
        %3392 = vmatmul.mubr.bf16.gmra.mxu0 %v3354
        %v3393 = vpop.f32.mrf.mxu0
        %v3394 = vadd.f32 0.0, %v3393
        %v3395 = vpop.f32.mrf.mxu0
        %v3396 = vpop.f32.mrf.mxu0
        %v3397 = vpop.f32.mrf.mxu0
        %3398 = vdwg.mxu0
        %v3400 = vsel %vm2163, %v3141, 0
        %v3403 = vsel %vm3171, %v3157, 0
        %3405 = vmatprep.subr.bf16.mxu0 0
        %3406 = vmatpush1.bf16.msra.mxu0 0
        %3407 = vmatprep.subr.bf16.mxu0 0
        %3408 = vmatpush1.bf16.msra.mxu0 0
        %3409 = vmatprep.subr.bf16.mxu0 0
        %3410 = vmatpush1.bf16.msra.mxu0 0
        %3411 = vmatprep.subr.bf16.mxu0 0
        %3412 = vmatpush1.bf16.msra.mxu0 0
        %3413 = vmatprep.subr.bf16.mxu0 0
        %3414 = vmatpush1.bf16.msra.mxu0 0
        %3415 = vmatprep.subr.bf16.mxu0 0
        %3416 = vmatpush1.bf16.msra.mxu0 0
        %3417 = vmatprep.subr.bf16.mxu0 0
        %3418 = vmatpush1.bf16.msra.mxu0 0
        %3419 = vmatprep.subr.bf16.mxu0 0
        %3420 = vmatpush1.bf16.msra.mxu0 %v3403
        %3421 = vmatprep.subr.bf16.mxu0 0
        %3422 = vmatpush2.bf16.msra.mxu0 0
        %3423 = vmatprep.subr.bf16.mxu0 0
        %3424 = vmatpush2.bf16.msra.mxu0 0
        %3425 = vmatprep.subr.bf16.mxu0 0
        %3426 = vmatpush2.bf16.msra.mxu0 0
        %3427 = vmatprep.subr.bf16.mxu0 0
        %3428 = vmatpush2.bf16.msra.mxu0 0
        %3429 = vmatprep.subr.bf16.mxu0 0
        %3430 = vmatpush2.bf16.msra.mxu0 0
        %3431 = vmatprep.subr.bf16.mxu0 0
        %3432 = vmatpush2.bf16.msra.mxu0 0
        %3433 = vmatprep.subr.bf16.mxu0 0
        %3434 = vmatpush2.bf16.msra.mxu0 0
        %3435 = vmatprep.subr.bf16.mxu0 0
        %3436 = vmatpush2.bf16.msra.mxu0 0
        %3437 = vmatprep.mubr.bf16.mxu0 0
        %3438 = vmatmul.mubr.bf16.gmra.mxu0 %v3400
        %v3439 = vpop.f32.mrf.mxu0
        %v3440 = vadd.f32 0.0, %v3439
        %v3441 = vpop.f32.mrf.mxu0
        %v3442 = vpop.f32.mrf.mxu0
        %v3443 = vpop.f32.mrf.mxu0
        %3444 = vdwg.mxu0
        %v3446 = vsel %vm2163, %v3142, 0
        %v3449 = vsel %vm3171, %v3158, 0
        %3451 = vmatprep.subr.bf16.mxu0 0
        %3452 = vmatpush1.bf16.msra.mxu0 0
        %3453 = vmatprep.subr.bf16.mxu0 0
        %3454 = vmatpush1.bf16.msra.mxu0 0
        %3455 = vmatprep.subr.bf16.mxu0 0
        %3456 = vmatpush1.bf16.msra.mxu0 0
        %3457 = vmatprep.subr.bf16.mxu0 0
        %3458 = vmatpush1.bf16.msra.mxu0 0
        %3459 = vmatprep.subr.bf16.mxu0 0
        %3460 = vmatpush1.bf16.msra.mxu0 0
        %3461 = vmatprep.subr.bf16.mxu0 0
        %3462 = vmatpush1.bf16.msra.mxu0 0
        %3463 = vmatprep.subr.bf16.mxu0 0
        %3464 = vmatpush1.bf16.msra.mxu0 0
        %3465 = vmatprep.subr.bf16.mxu0 0
        %3466 = vmatpush1.bf16.msra.mxu0 %v3449
        %3467 = vmatprep.subr.bf16.mxu0 0
        %3468 = vmatpush2.bf16.msra.mxu0 0
        %3469 = vmatprep.subr.bf16.mxu0 0
        %3470 = vmatpush2.bf16.msra.mxu0 0
        %3471 = vmatprep.subr.bf16.mxu0 0
        %3472 = vmatpush2.bf16.msra.mxu0 0
        %3473 = vmatprep.subr.bf16.mxu0 0
        %3474 = vmatpush2.bf16.msra.mxu0 0
        %3475 = vmatprep.subr.bf16.mxu0 0
        %3476 = vmatpush2.bf16.msra.mxu0 0
        %3477 = vmatprep.subr.bf16.mxu0 0
        %3478 = vmatpush2.bf16.msra.mxu0 0
        %3479 = vmatprep.subr.bf16.mxu0 0
        %3480 = vmatpush2.bf16.msra.mxu0 0
        %3481 = vmatprep.subr.bf16.mxu0 0
        %3482 = vmatpush2.bf16.msra.mxu0 0
        %3483 = vmatprep.mubr.bf16.mxu0 0
        %3484 = vmatmul.mubr.bf16.gmra.mxu0 %v3446
        %v3485 = vpop.f32.mrf.mxu0
        %v3486 = vadd.f32 0.0, %v3485
        %v3487 = vpop.f32.mrf.mxu0
        %v3488 = vpop.f32.mrf.mxu0
        %v3489 = vpop.f32.mrf.mxu0
        %3490 = vdwg.mxu0
        %v3492 = vsel %vm2163, %v3143, 0
        %v3495 = vsel %vm3171, %v3159, 0
        %3497 = vmatprep.subr.bf16.mxu0 0
        %3498 = vmatpush1.bf16.msra.mxu0 0
        %3499 = vmatprep.subr.bf16.mxu0 0
        %3500 = vmatpush1.bf16.msra.mxu0 0
        %3501 = vmatprep.subr.bf16.mxu0 0
        %3502 = vmatpush1.bf16.msra.mxu0 0
        %3503 = vmatprep.subr.bf16.mxu0 0
        %3504 = vmatpush1.bf16.msra.mxu0 0
        %3505 = vmatprep.subr.bf16.mxu0 0
        %3506 = vmatpush1.bf16.msra.mxu0 0
        %3507 = vmatprep.subr.bf16.mxu0 0
        %3508 = vmatpush1.bf16.msra.mxu0 0
        %3509 = vmatprep.subr.bf16.mxu0 0
        %3510 = vmatpush1.bf16.msra.mxu0 0
        %3511 = vmatprep.subr.bf16.mxu0 0
        %3512 = vmatpush1.bf16.msra.mxu0 %v3495
        %3513 = vmatprep.subr.bf16.mxu0 0
        %3514 = vmatpush2.bf16.msra.mxu0 0
        %3515 = vmatprep.subr.bf16.mxu0 0
        %3516 = vmatpush2.bf16.msra.mxu0 0
        %3517 = vmatprep.subr.bf16.mxu0 0
        %3518 = vmatpush2.bf16.msra.mxu0 0
        %3519 = vmatprep.subr.bf16.mxu0 0
        %3520 = vmatpush2.bf16.msra.mxu0 0
        %3521 = vmatprep.subr.bf16.mxu0 0
        %3522 = vmatpush2.bf16.msra.mxu0 0
        %3523 = vmatprep.subr.bf16.mxu0 0
        %3524 = vmatpush2.bf16.msra.mxu0 0
        %3525 = vmatprep.subr.bf16.mxu0 0
        %3526 = vmatpush2.bf16.msra.mxu0 0
        %3527 = vmatprep.subr.bf16.mxu0 0
        %3528 = vmatpush2.bf16.msra.mxu0 0
        %3529 = vmatprep.mubr.bf16.mxu0 0
        %3530 = vmatmul.mubr.bf16.gmra.mxu0 %v3492
        %v3531 = vpop.f32.mrf.mxu0
        %v3532 = vadd.f32 0.0, %v3531
        %v3533 = vpop.f32.mrf.mxu0
        %v3534 = vpop.f32.mrf.mxu0
        %v3535 = vpop.f32.mrf.mxu0
        %3536 = vdwg.mxu0
        %v3538 = vsel %vm2163, %v3144, 0
        %v3541 = vsel %vm3171, %v3160, 0
        %3543 = vmatprep.subr.bf16.mxu0 0
        %3544 = vmatpush1.bf16.msra.mxu0 0
        %3545 = vmatprep.subr.bf16.mxu0 0
        %3546 = vmatpush1.bf16.msra.mxu0 0
        %3547 = vmatprep.subr.bf16.mxu0 0
        %3548 = vmatpush1.bf16.msra.mxu0 0
        %3549 = vmatprep.subr.bf16.mxu0 0
        %3550 = vmatpush1.bf16.msra.mxu0 0
        %3551 = vmatprep.subr.bf16.mxu0 0
        %3552 = vmatpush1.bf16.msra.mxu0 0
        %3553 = vmatprep.subr.bf16.mxu0 0
        %3554 = vmatpush1.bf16.msra.mxu0 0
        %3555 = vmatprep.subr.bf16.mxu0 0
        %3556 = vmatpush1.bf16.msra.mxu0 0
        %3557 = vmatprep.subr.bf16.mxu0 0
        %3558 = vmatpush1.bf16.msra.mxu0 %v3541
        %3559 = vmatprep.subr.bf16.mxu0 0
        %3560 = vmatpush2.bf16.msra.mxu0 0
        %3561 = vmatprep.subr.bf16.mxu0 0
        %3562 = vmatpush2.bf16.msra.mxu0 0
        %3563 = vmatprep.subr.bf16.mxu0 0
        %3564 = vmatpush2.bf16.msra.mxu0 0
        %3565 = vmatprep.subr.bf16.mxu0 0
        %3566 = vmatpush2.bf16.msra.mxu0 0
        %3567 = vmatprep.subr.bf16.mxu0 0
        %3568 = vmatpush2.bf16.msra.mxu0 0
        %3569 = vmatprep.subr.bf16.mxu0 0
        %3570 = vmatpush2.bf16.msra.mxu0 0
        %3571 = vmatprep.subr.bf16.mxu0 0
        %3572 = vmatpush2.bf16.msra.mxu0 0
        %3573 = vmatprep.subr.bf16.mxu0 0
        %3574 = vmatpush2.bf16.msra.mxu0 0
        %3575 = vmatprep.mubr.bf16.mxu0 0
        %3576 = vmatmul.mubr.bf16.gmra.mxu0 %v3538
        %v3577 = vpop.f32.mrf.mxu0
        %v3578 = vadd.f32 0.0, %v3577
        %v3579 = vpop.f32.mrf.mxu0
        %v3580 = vpop.f32.mrf.mxu0
        %v3581 = vpop.f32.mrf.mxu0
        %3582 = vdwg.mxu0
        %v3584 = vsel %vm2163, %v3145, 0
        %v3587 = vsel %vm3171, %v3161, 0
        %3589 = vmatprep.subr.bf16.mxu0 0
        %3590 = vmatpush1.bf16.msra.mxu0 0
        %3591 = vmatprep.subr.bf16.mxu0 0
        %3592 = vmatpush1.bf16.msra.mxu0 0
        %3593 = vmatprep.subr.bf16.mxu0 0
        %3594 = vmatpush1.bf16.msra.mxu0 0
        %3595 = vmatprep.subr.bf16.mxu0 0
        %3596 = vmatpush1.bf16.msra.mxu0 0
        %3597 = vmatprep.subr.bf16.mxu0 0
        %3598 = vmatpush1.bf16.msra.mxu0 0
        %3599 = vmatprep.subr.bf16.mxu0 0
        %3600 = vmatpush1.bf16.msra.mxu0 0
        %3601 = vmatprep.subr.bf16.mxu0 0
        %3602 = vmatpush1.bf16.msra.mxu0 0
        %3603 = vmatprep.subr.bf16.mxu0 0
        %3604 = vmatpush1.bf16.msra.mxu0 %v3587
        %3605 = vmatprep.subr.bf16.mxu0 0
        %3606 = vmatpush2.bf16.msra.mxu0 0
        %3607 = vmatprep.subr.bf16.mxu0 0
        %3608 = vmatpush2.bf16.msra.mxu0 0
        %3609 = vmatprep.subr.bf16.mxu0 0
        %3610 = vmatpush2.bf16.msra.mxu0 0
        %3611 = vmatprep.subr.bf16.mxu0 0
        %3612 = vmatpush2.bf16.msra.mxu0 0
        %3613 = vmatprep.subr.bf16.mxu0 0
        %3614 = vmatpush2.bf16.msra.mxu0 0
        %3615 = vmatprep.subr.bf16.mxu0 0
        %3616 = vmatpush2.bf16.msra.mxu0 0
        %3617 = vmatprep.subr.bf16.mxu0 0
        %3618 = vmatpush2.bf16.msra.mxu0 0
        %3619 = vmatprep.subr.bf16.mxu0 0
        %3620 = vmatpush2.bf16.msra.mxu0 0
        %3621 = vmatprep.mubr.bf16.mxu0 0
        %3622 = vmatmul.mubr.bf16.gmra.mxu0 %v3584
        %v3623 = vpop.f32.mrf.mxu0
        %v3624 = vadd.f32 0.0, %v3623
        %v3625 = vpop.f32.mrf.mxu0
        %v3626 = vpop.f32.mrf.mxu0
        %v3627 = vpop.f32.mrf.mxu0
        %3628 = vdwg.mxu0
        %v3630 = vsel %vm2163, %v3146, 0
        %v3633 = vsel %vm3171, %v3162, 0
        %3635 = vmatprep.subr.bf16.mxu0 0
        %3636 = vmatpush1.bf16.msra.mxu0 0
        %3637 = vmatprep.subr.bf16.mxu0 0
        %3638 = vmatpush1.bf16.msra.mxu0 0
        %3639 = vmatprep.subr.bf16.mxu0 0
        %3640 = vmatpush1.bf16.msra.mxu0 0
        %3641 = vmatprep.subr.bf16.mxu0 0
        %3642 = vmatpush1.bf16.msra.mxu0 0
        %3643 = vmatprep.subr.bf16.mxu0 0
        %3644 = vmatpush1.bf16.msra.mxu0 0
        %3645 = vmatprep.subr.bf16.mxu0 0
        %3646 = vmatpush1.bf16.msra.mxu0 0
        %3647 = vmatprep.subr.bf16.mxu0 0
        %3648 = vmatpush1.bf16.msra.mxu0 0
        %3649 = vmatprep.subr.bf16.mxu0 0
        %3650 = vmatpush1.bf16.msra.mxu0 %v3633
        %3651 = vmatprep.subr.bf16.mxu0 0
        %3652 = vmatpush2.bf16.msra.mxu0 0
        %3653 = vmatprep.subr.bf16.mxu0 0
        %3654 = vmatpush2.bf16.msra.mxu0 0
        %3655 = vmatprep.subr.bf16.mxu0 0
        %3656 = vmatpush2.bf16.msra.mxu0 0
        %3657 = vmatprep.subr.bf16.mxu0 0
        %3658 = vmatpush2.bf16.msra.mxu0 0
        %3659 = vmatprep.subr.bf16.mxu0 0
        %3660 = vmatpush2.bf16.msra.mxu0 0
        %3661 = vmatprep.subr.bf16.mxu0 0
        %3662 = vmatpush2.bf16.msra.mxu0 0
        %3663 = vmatprep.subr.bf16.mxu0 0
        %3664 = vmatpush2.bf16.msra.mxu0 0
        %3665 = vmatprep.subr.bf16.mxu0 0
        %3666 = vmatpush2.bf16.msra.mxu0 0
        %3667 = vmatprep.mubr.bf16.mxu0 0
        %3668 = vmatmul.mubr.bf16.gmra.mxu0 %v3630
        %v3669 = vpop.f32.mrf.mxu0
        %v3670 = vadd.f32 0.0, %v3669
        %v3671 = vpop.f32.mrf.mxu0
        %v3672 = vpop.f32.mrf.mxu0
        %v3673 = vpop.f32.mrf.mxu0
        %3674 = vdwg.mxu0
        %v3676 = vsel %vm2163, %v3147, 0
        %v3679 = vsel %vm3171, %v3163, 0
        %3681 = vmatprep.subr.bf16.mxu0 0
        %3682 = vmatpush1.bf16.msra.mxu0 0
        %3683 = vmatprep.subr.bf16.mxu0 0
        %3684 = vmatpush1.bf16.msra.mxu0 0
        %3685 = vmatprep.subr.bf16.mxu0 0
        %3686 = vmatpush1.bf16.msra.mxu0 0
        %3687 = vmatprep.subr.bf16.mxu0 0
        %3688 = vmatpush1.bf16.msra.mxu0 0
        %3689 = vmatprep.subr.bf16.mxu0 0
        %3690 = vmatpush1.bf16.msra.mxu0 0
        %3691 = vmatprep.subr.bf16.mxu0 0
        %3692 = vmatpush1.bf16.msra.mxu0 0
        %3693 = vmatprep.subr.bf16.mxu0 0
        %3694 = vmatpush1.bf16.msra.mxu0 0
        %3695 = vmatprep.subr.bf16.mxu0 0
        %3696 = vmatpush1.bf16.msra.mxu0 %v3679
        %3697 = vmatprep.subr.bf16.mxu0 0
        %3698 = vmatpush2.bf16.msra.mxu0 0
        %3699 = vmatprep.subr.bf16.mxu0 0
        %3700 = vmatpush2.bf16.msra.mxu0 0
        %3701 = vmatprep.subr.bf16.mxu0 0
        %3702 = vmatpush2.bf16.msra.mxu0 0
        %3703 = vmatprep.subr.bf16.mxu0 0
        %3704 = vmatpush2.bf16.msra.mxu0 0
        %3705 = vmatprep.subr.bf16.mxu0 0
        %3706 = vmatpush2.bf16.msra.mxu0 0
        %3707 = vmatprep.subr.bf16.mxu0 0
        %3708 = vmatpush2.bf16.msra.mxu0 0
        %3709 = vmatprep.subr.bf16.mxu0 0
        %3710 = vmatpush2.bf16.msra.mxu0 0
        %3711 = vmatprep.subr.bf16.mxu0 0
        %3712 = vmatpush2.bf16.msra.mxu0 0
        %3713 = vmatprep.mubr.bf16.mxu0 0
        %3714 = vmatmul.mubr.bf16.gmra.mxu0 %v3676
        %v3715 = vpop.f32.mrf.mxu0
        %v3716 = vadd.f32 0.0, %v3715
        %v3717 = vpop.f32.mrf.mxu0
        %v3718 = vpop.f32.mrf.mxu0
        %v3719 = vpop.f32.mrf.mxu0
        %3720 = vdwg.mxu0
        %v3722 = vsel %vm2163, %v3148, 0
        %v3725 = vsel %vm3171, %v3164, 0
        %3727 = vmatprep.subr.bf16.mxu0 0
        %3728 = vmatpush1.bf16.msra.mxu0 0
        %3729 = vmatprep.subr.bf16.mxu0 0
        %3730 = vmatpush1.bf16.msra.mxu0 0
        %3731 = vmatprep.subr.bf16.mxu0 0
        %3732 = vmatpush1.bf16.msra.mxu0 0
        %3733 = vmatprep.subr.bf16.mxu0 0
        %3734 = vmatpush1.bf16.msra.mxu0 0
        %3735 = vmatprep.subr.bf16.mxu0 0
        %3736 = vmatpush1.bf16.msra.mxu0 0
        %3737 = vmatprep.subr.bf16.mxu0 0
        %3738 = vmatpush1.bf16.msra.mxu0 0
        %3739 = vmatprep.subr.bf16.mxu0 0
        %3740 = vmatpush1.bf16.msra.mxu0 0
        %3741 = vmatprep.subr.bf16.mxu0 0
        %3742 = vmatpush1.bf16.msra.mxu0 %v3725
        %3743 = vmatprep.subr.bf16.mxu0 0
        %3744 = vmatpush2.bf16.msra.mxu0 0
        %3745 = vmatprep.subr.bf16.mxu0 0
        %3746 = vmatpush2.bf16.msra.mxu0 0
        %3747 = vmatprep.subr.bf16.mxu0 0
        %3748 = vmatpush2.bf16.msra.mxu0 0
        %3749 = vmatprep.subr.bf16.mxu0 0
        %3750 = vmatpush2.bf16.msra.mxu0 0
        %3751 = vmatprep.subr.bf16.mxu0 0
        %3752 = vmatpush2.bf16.msra.mxu0 0
        %3753 = vmatprep.subr.bf16.mxu0 0
        %3754 = vmatpush2.bf16.msra.mxu0 0
        %3755 = vmatprep.subr.bf16.mxu0 0
        %3756 = vmatpush2.bf16.msra.mxu0 0
        %3757 = vmatprep.subr.bf16.mxu0 0
        %3758 = vmatpush2.bf16.msra.mxu0 0
        %3759 = vmatprep.mubr.bf16.mxu0 0
        %3760 = vmatmul.mubr.bf16.gmra.mxu0 %v3722
        %v3761 = vpop.f32.mrf.mxu0
        %v3762 = vadd.f32 0.0, %v3761
        %v3763 = vpop.f32.mrf.mxu0
        %v3764 = vpop.f32.mrf.mxu0
        %v3765 = vpop.f32.mrf.mxu0
        %3766 = vdwg.mxu0
        %v3768 = vsel %vm2163, %v3149, 0
        %v3771 = vsel %vm3171, %v3165, 0
        %3773 = vmatprep.subr.bf16.mxu0 0
        %3774 = vmatpush1.bf16.msra.mxu0 0
        %3775 = vmatprep.subr.bf16.mxu0 0
        %3776 = vmatpush1.bf16.msra.mxu0 0
        %3777 = vmatprep.subr.bf16.mxu0 0
        %3778 = vmatpush1.bf16.msra.mxu0 0
        %3779 = vmatprep.subr.bf16.mxu0 0
        %3780 = vmatpush1.bf16.msra.mxu0 0
        %3781 = vmatprep.subr.bf16.mxu0 0
        %3782 = vmatpush1.bf16.msra.mxu0 0
        %3783 = vmatprep.subr.bf16.mxu0 0
        %3784 = vmatpush1.bf16.msra.mxu0 0
        %3785 = vmatprep.subr.bf16.mxu0 0
        %3786 = vmatpush1.bf16.msra.mxu0 0
        %3787 = vmatprep.subr.bf16.mxu0 0
        %3788 = vmatpush1.bf16.msra.mxu0 %v3771
        %3789 = vmatprep.subr.bf16.mxu0 0
        %3790 = vmatpush2.bf16.msra.mxu0 0
        %3791 = vmatprep.subr.bf16.mxu0 0
        %3792 = vmatpush2.bf16.msra.mxu0 0
        %3793 = vmatprep.subr.bf16.mxu0 0
        %3794 = vmatpush2.bf16.msra.mxu0 0
        %3795 = vmatprep.subr.bf16.mxu0 0
        %3796 = vmatpush2.bf16.msra.mxu0 0
        %3797 = vmatprep.subr.bf16.mxu0 0
        %3798 = vmatpush2.bf16.msra.mxu0 0
        %3799 = vmatprep.subr.bf16.mxu0 0
        %3800 = vmatpush2.bf16.msra.mxu0 0
        %3801 = vmatprep.subr.bf16.mxu0 0
        %3802 = vmatpush2.bf16.msra.mxu0 0
        %3803 = vmatprep.subr.bf16.mxu0 0
        %3804 = vmatpush2.bf16.msra.mxu0 0
        %3805 = vmatprep.mubr.bf16.mxu0 0
        %3806 = vmatmul.mubr.bf16.gmra.mxu0 %v3768
        %v3807 = vpop.f32.mrf.mxu0
        %v3808 = vadd.f32 0.0, %v3807
        %v3809 = vpop.f32.mrf.mxu0
        %v3810 = vpop.f32.mrf.mxu0
        %v3811 = vpop.f32.mrf.mxu0
        %3812 = vdwg.mxu0
        %v3814 = vsel %vm2163, %v3150, 0
        %v3817 = vsel %vm3171, %v3166, 0
        %3819 = vmatprep.subr.bf16.mxu0 0
        %3820 = vmatpush1.bf16.msra.mxu0 0
        %3821 = vmatprep.subr.bf16.mxu0 0
        %3822 = vmatpush1.bf16.msra.mxu0 0
        %3823 = vmatprep.subr.bf16.mxu0 0
        %3824 = vmatpush1.bf16.msra.mxu0 0
        %3825 = vmatprep.subr.bf16.mxu0 0
        %3826 = vmatpush1.bf16.msra.mxu0 0
        %3827 = vmatprep.subr.bf16.mxu0 0
        %3828 = vmatpush1.bf16.msra.mxu0 0
        %3829 = vmatprep.subr.bf16.mxu0 0
        %3830 = vmatpush1.bf16.msra.mxu0 0
        %3831 = vmatprep.subr.bf16.mxu0 0
        %3832 = vmatpush1.bf16.msra.mxu0 0
        %3833 = vmatprep.subr.bf16.mxu0 0
        %3834 = vmatpush1.bf16.msra.mxu0 %v3817
        %3835 = vmatprep.subr.bf16.mxu0 0
        %3836 = vmatpush2.bf16.msra.mxu0 0
        %3837 = vmatprep.subr.bf16.mxu0 0
        %3838 = vmatpush2.bf16.msra.mxu0 0
        %3839 = vmatprep.subr.bf16.mxu0 0
        %3840 = vmatpush2.bf16.msra.mxu0 0
        %3841 = vmatprep.subr.bf16.mxu0 0
        %3842 = vmatpush2.bf16.msra.mxu0 0
        %3843 = vmatprep.subr.bf16.mxu0 0
        %3844 = vmatpush2.bf16.msra.mxu0 0
        %3845 = vmatprep.subr.bf16.mxu0 0
        %3846 = vmatpush2.bf16.msra.mxu0 0
        %3847 = vmatprep.subr.bf16.mxu0 0
        %3848 = vmatpush2.bf16.msra.mxu0 0
        %3849 = vmatprep.subr.bf16.mxu0 0
        %3850 = vmatpush2.bf16.msra.mxu0 0
        %3851 = vmatprep.mubr.bf16.mxu0 0
        %3852 = vmatmul.mubr.bf16.gmra.mxu0 %v3814
        %v3853 = vpop.f32.mrf.mxu0
        %v3854 = vadd.f32 0.0, %v3853
        %v3855 = vpop.f32.mrf.mxu0
        %v3856 = vpop.f32.mrf.mxu0
        %v3857 = vpop.f32.mrf.mxu0
        %3858 = vdwg.mxu0
        %v3860 = vsel %vm2163, %v3151, 0
        %v3863 = vsel %vm3171, %v3167, 0
        %3865 = vmatprep.subr.bf16.mxu0 0
        %3866 = vmatpush1.bf16.msra.mxu0 0
        %3867 = vmatprep.subr.bf16.mxu0 0
        %3868 = vmatpush1.bf16.msra.mxu0 0
        %3869 = vmatprep.subr.bf16.mxu0 0
        %3870 = vmatpush1.bf16.msra.mxu0 0
        %3871 = vmatprep.subr.bf16.mxu0 0
        %3872 = vmatpush1.bf16.msra.mxu0 0
        %3873 = vmatprep.subr.bf16.mxu0 0
        %3874 = vmatpush1.bf16.msra.mxu0 0
        %3875 = vmatprep.subr.bf16.mxu0 0
        %3876 = vmatpush1.bf16.msra.mxu0 0
        %3877 = vmatprep.subr.bf16.mxu0 0
        %3878 = vmatpush1.bf16.msra.mxu0 0
        %3879 = vmatprep.subr.bf16.mxu0 0
        %3880 = vmatpush1.bf16.msra.mxu0 %v3863
        %3881 = vmatprep.subr.bf16.mxu0 0
        %3882 = vmatpush2.bf16.msra.mxu0 0
        %3883 = vmatprep.subr.bf16.mxu0 0
        %3884 = vmatpush2.bf16.msra.mxu0 0
        %3885 = vmatprep.subr.bf16.mxu0 0
        %3886 = vmatpush2.bf16.msra.mxu0 0
        %3887 = vmatprep.subr.bf16.mxu0 0
        %3888 = vmatpush2.bf16.msra.mxu0 0
        %3889 = vmatprep.subr.bf16.mxu0 0
        %3890 = vmatpush2.bf16.msra.mxu0 0
        %3891 = vmatprep.subr.bf16.mxu0 0
        %3892 = vmatpush2.bf16.msra.mxu0 0
        %3893 = vmatprep.subr.bf16.mxu0 0
        %3894 = vmatpush2.bf16.msra.mxu0 0
        %3895 = vmatprep.subr.bf16.mxu0 0
        %3896 = vmatpush2.bf16.msra.mxu0 0
        %3897 = vmatprep.mubr.bf16.mxu0 0
        %3898 = vmatmul.mubr.bf16.gmra.mxu0 %v3860
        %v3899 = vpop.f32.mrf.mxu0
        %v3900 = vadd.f32 0.0, %v3899
        %v3901 = vpop.f32.mrf.mxu0
        %v3902 = vpop.f32.mrf.mxu0
        %v3903 = vpop.f32.mrf.mxu0
        %3904 = vdwg.mxu0
        %v3905 = vld [vmem:[%s4] sm:$0xff]
        %v3906 = vld [vmem:[%s4 + $0x8] sm:$0xff]
        %v3907 = vld [vmem:[%s4 + $0x10] sm:$0xff]
        %v3908 = vld [vmem:[%s4 + $0x18] sm:$0xff]
        %v3909 = vpack.c.bf16 %v3906, %v3905
        %v3910 = vpack.c.bf16 %v3908, %v3907
        %v3911 = vld [vmem:[%s4 + $0x20] sm:$0xff]
        %v3912 = vld [vmem:[%s4 + $0x28] sm:$0xff]
        %v3913 = vld [vmem:[%s4 + $0x30] sm:$0xff]
        %v3914 = vld [vmem:[%s4 + $0x38] sm:$0xff]
        %v3915 = vpack.c.bf16 %v3911, %v3911
        %v3916 = vpack.c.bf16 %v3912, %v3912
        %v3917 = vpack.c.bf16 %v3913, %v3913
        %v3918 = vpack.c.bf16 %v3914, %v3914
        %v3919 = vpack.c.bf16 %v3256, %v3210
        %v3920 = vpack.c.bf16 %v3348, %v3302
        %v3921 = vpack.c.bf16 %v3440, %v3394
        %v3922 = vpack.c.bf16 %v3532, %v3486
        %v3923 = vpack.c.bf16 %v3624, %v3578
        %v3924 = vpack.c.bf16 %v3716, %v3670
        %v3925 = vpack.c.bf16 %v3808, %v3762
        %v3926 = vpack.c.bf16 %v3900, %v3854
        %v3928 = vsel %vm2163, %v3919, 0
        %v3931 = vsel %vm2163, %v3920, 0
        %v3934 = vsel %vm3171, %v3915, 0
        %3936 = vmatprep.subr.bf16.mxu0 0
        %3937 = vmatpush1.bf16.msra.mxu0 0
        %3938 = vmatprep.subr.bf16.mxu0 0
        %3939 = vmatpush1.bf16.msra.mxu0 0
        %3940 = vmatprep.subr.bf16.mxu0 0
        %3941 = vmatpush1.bf16.msra.mxu0 0
        %3942 = vmatprep.subr.bf16.mxu0 0
        %3943 = vmatpush1.bf16.msra.mxu0 0
        %3944 = vmatprep.subr.bf16.mxu0 0
        %3945 = vmatpush1.bf16.msra.mxu0 0
        %3946 = vmatprep.subr.bf16.mxu0 0
        %3947 = vmatpush1.bf16.msra.mxu0 0
        %3948 = vmatprep.subr.bf16.mxu0 0
        %3949 = vmatpush1.bf16.msra.mxu0 0
        %3950 = vmatprep.subr.bf16.mxu0 0
        %3951 = vmatpush1.bf16.msra.mxu0 %v3934
        %3952 = vmatprep.subr.bf16.mxu0 0
        %3953 = vmatpush2.bf16.msra.mxu0 0
        %3954 = vmatprep.subr.bf16.mxu0 0
        %3955 = vmatpush2.bf16.msra.mxu0 0
        %3956 = vmatprep.subr.bf16.mxu0 0
        %3957 = vmatpush2.bf16.msra.mxu0 0
        %3958 = vmatprep.subr.bf16.mxu0 0
        %3959 = vmatpush2.bf16.msra.mxu0 0
        %3960 = vmatprep.subr.bf16.mxu0 0
        %3961 = vmatpush2.bf16.msra.mxu0 0
        %3962 = vmatprep.subr.bf16.mxu0 0
        %3963 = vmatpush2.bf16.msra.mxu0 0
        %3964 = vmatprep.subr.bf16.mxu0 0
        %3965 = vmatpush2.bf16.msra.mxu0 0
        %3966 = vmatprep.subr.bf16.mxu0 0
        %3967 = vmatpush2.bf16.msra.mxu0 0
        %3968 = vmatprep.mubr.bf16.mxu0 0
        %3969 = vmatmul.mubr.bf16.gmra.mxu0 %v3928
        %v3970 = vpop.f32.mrf.mxu0
        %v3971 = vadd.f32 0.0, %v3970
        %v3972 = vpop.f32.mrf.mxu0
        %v3973 = vpop.f32.mrf.mxu0
        %v3974 = vadd.f32 0.0, %v3973
        %v3975 = vpop.f32.mrf.mxu0
        %3976 = vmatprep.mubr.bf16.mxu0 0
        %3977 = vmatmul.mubr.bf16.gmra.mxu0 %v3931
        %v3978 = vpop.f32.mrf.mxu0
        %v3979 = vadd.f32 0.0, %v3978
        %v3980 = vpop.f32.mrf.mxu0
        %v3981 = vpop.f32.mrf.mxu0
        %v3982 = vadd.f32 0.0, %v3981
        %v3983 = vpop.f32.mrf.mxu0
        %3984 = vdwg.mxu0
        %v3986 = vsel %vm2163, %v3921, 0
        %v3989 = vsel %vm2163, %v3922, 0
        %v3992 = vsel %vm3171, %v3916, 0
        %3994 = vmatprep.subr.bf16.mxu0 0
        %3995 = vmatpush1.bf16.msra.mxu0 0
        %3996 = vmatprep.subr.bf16.mxu0 0
        %3997 = vmatpush1.bf16.msra.mxu0 0
        %3998 = vmatprep.subr.bf16.mxu0 0
        %3999 = vmatpush1.bf16.msra.mxu0 0
        %4000 = vmatprep.subr.bf16.mxu0 0
        %4001 = vmatpush1.bf16.msra.mxu0 0
        %4002 = vmatprep.subr.bf16.mxu0 0
        %4003 = vmatpush1.bf16.msra.mxu0 0
        %4004 = vmatprep.subr.bf16.mxu0 0
        %4005 = vmatpush1.bf16.msra.mxu0 0
        %4006 = vmatprep.subr.bf16.mxu0 0
        %4007 = vmatpush1.bf16.msra.mxu0 0
        %4008 = vmatprep.subr.bf16.mxu0 0
        %4009 = vmatpush1.bf16.msra.mxu0 %v3992
        %4010 = vmatprep.subr.bf16.mxu0 0
        %4011 = vmatpush2.bf16.msra.mxu0 0
        %4012 = vmatprep.subr.bf16.mxu0 0
        %4013 = vmatpush2.bf16.msra.mxu0 0
        %4014 = vmatprep.subr.bf16.mxu0 0
        %4015 = vmatpush2.bf16.msra.mxu0 0
        %4016 = vmatprep.subr.bf16.mxu0 0
        %4017 = vmatpush2.bf16.msra.mxu0 0
        %4018 = vmatprep.subr.bf16.mxu0 0
        %4019 = vmatpush2.bf16.msra.mxu0 0
        %4020 = vmatprep.subr.bf16.mxu0 0
        %4021 = vmatpush2.bf16.msra.mxu0 0
        %4022 = vmatprep.subr.bf16.mxu0 0
        %4023 = vmatpush2.bf16.msra.mxu0 0
        %4024 = vmatprep.subr.bf16.mxu0 0
        %4025 = vmatpush2.bf16.msra.mxu0 0
        %4026 = vmatprep.mubr.bf16.mxu0 0
        %4027 = vmatmul.mubr.bf16.gmra.mxu0 %v3986
        %v4028 = vpop.f32.mrf.mxu0
        %v4029 = vadd.f32 0.0, %v4028
        %v4030 = vpop.f32.mrf.mxu0
        %v4031 = vpop.f32.mrf.mxu0
        %v4032 = vadd.f32 0.0, %v4031
        %v4033 = vpop.f32.mrf.mxu0
        %4034 = vmatprep.mubr.bf16.mxu0 0
        %4035 = vmatmul.mubr.bf16.gmra.mxu0 %v3989
        %v4036 = vpop.f32.mrf.mxu0
        %v4037 = vadd.f32 0.0, %v4036
        %v4038 = vpop.f32.mrf.mxu0
        %v4039 = vpop.f32.mrf.mxu0
        %v4040 = vadd.f32 0.0, %v4039
        %v4041 = vpop.f32.mrf.mxu0
        %4042 = vdwg.mxu0
        %v4044 = vsel %vm2163, %v3923, 0
        %v4047 = vsel %vm2163, %v3924, 0
        %v4050 = vsel %vm3171, %v3917, 0
        %4052 = vmatprep.subr.bf16.mxu0 0
        %4053 = vmatpush1.bf16.msra.mxu0 0
        %4054 = vmatprep.subr.bf16.mxu0 0
        %4055 = vmatpush1.bf16.msra.mxu0 0
        %4056 = vmatprep.subr.bf16.mxu0 0
        %4057 = vmatpush1.bf16.msra.mxu0 0
        %4058 = vmatprep.subr.bf16.mxu0 0
        %4059 = vmatpush1.bf16.msra.mxu0 0
        %4060 = vmatprep.subr.bf16.mxu0 0
        %4061 = vmatpush1.bf16.msra.mxu0 0
        %4062 = vmatprep.subr.bf16.mxu0 0
        %4063 = vmatpush1.bf16.msra.mxu0 0
        %4064 = vmatprep.subr.bf16.mxu0 0
        %4065 = vmatpush1.bf16.msra.mxu0 0
        %4066 = vmatprep.subr.bf16.mxu0 0
        %4067 = vmatpush1.bf16.msra.mxu0 %v4050
        %4068 = vmatprep.subr.bf16.mxu0 0
        %4069 = vmatpush2.bf16.msra.mxu0 0
        %4070 = vmatprep.subr.bf16.mxu0 0
        %4071 = vmatpush2.bf16.msra.mxu0 0
        %4072 = vmatprep.subr.bf16.mxu0 0
        %4073 = vmatpush2.bf16.msra.mxu0 0
        %4074 = vmatprep.subr.bf16.mxu0 0
        %4075 = vmatpush2.bf16.msra.mxu0 0
        %4076 = vmatprep.subr.bf16.mxu0 0
        %4077 = vmatpush2.bf16.msra.mxu0 0
        %4078 = vmatprep.subr.bf16.mxu0 0
        %4079 = vmatpush2.bf16.msra.mxu0 0
        %4080 = vmatprep.subr.bf16.mxu0 0
        %4081 = vmatpush2.bf16.msra.mxu0 0
        %4082 = vmatprep.subr.bf16.mxu0 0
        %4083 = vmatpush2.bf16.msra.mxu0 0
        %4084 = vmatprep.mubr.bf16.mxu0 0
        %4085 = vmatmul.mubr.bf16.gmra.mxu0 %v4044
        %v4086 = vpop.f32.mrf.mxu0
        %v4087 = vadd.f32 0.0, %v4086
        %v4088 = vpop.f32.mrf.mxu0
        %v4089 = vpop.f32.mrf.mxu0
        %v4090 = vadd.f32 0.0, %v4089
        %v4091 = vpop.f32.mrf.mxu0
        %4092 = vmatprep.mubr.bf16.mxu0 0
        %4093 = vmatmul.mubr.bf16.gmra.mxu0 %v4047
        %v4094 = vpop.f32.mrf.mxu0
        %v4095 = vadd.f32 0.0, %v4094
        %v4096 = vpop.f32.mrf.mxu0
        %v4097 = vpop.f32.mrf.mxu0
        %v4098 = vadd.f32 0.0, %v4097
        %v4099 = vpop.f32.mrf.mxu0
        %4100 = vdwg.mxu0
        %v4102 = vsel %vm2163, %v3925, 0
        %v4105 = vsel %vm2163, %v3926, 0
        %v4108 = vsel %vm3171, %v3918, 0
        %4110 = vmatprep.subr.bf16.mxu0 0
        %4111 = vmatpush1.bf16.msra.mxu0 0
        %4112 = vmatprep.subr.bf16.mxu0 0
        %4113 = vmatpush1.bf16.msra.mxu0 0
        %4114 = vmatprep.subr.bf16.mxu0 0
        %4115 = vmatpush1.bf16.msra.mxu0 0
        %4116 = vmatprep.subr.bf16.mxu0 0
        %4117 = vmatpush1.bf16.msra.mxu0 0
        %4118 = vmatprep.subr.bf16.mxu0 0
        %4119 = vmatpush1.bf16.msra.mxu0 0
        %4120 = vmatprep.subr.bf16.mxu0 0
        %4121 = vmatpush1.bf16.msra.mxu0 0
        %4122 = vmatprep.subr.bf16.mxu0 0
        %4123 = vmatpush1.bf16.msra.mxu0 0
        %4124 = vmatprep.subr.bf16.mxu0 0
        %4125 = vmatpush1.bf16.msra.mxu0 %v4108
        %4126 = vmatprep.subr.bf16.mxu0 0
        %4127 = vmatpush2.bf16.msra.mxu0 0
        %4128 = vmatprep.subr.bf16.mxu0 0
        %4129 = vmatpush2.bf16.msra.mxu0 0
        %4130 = vmatprep.subr.bf16.mxu0 0
        %4131 = vmatpush2.bf16.msra.mxu0 0
        %4132 = vmatprep.subr.bf16.mxu0 0
        %4133 = vmatpush2.bf16.msra.mxu0 0
        %4134 = vmatprep.subr.bf16.mxu0 0
        %4135 = vmatpush2.bf16.msra.mxu0 0
        %4136 = vmatprep.subr.bf16.mxu0 0
        %4137 = vmatpush2.bf16.msra.mxu0 0
        %4138 = vmatprep.subr.bf16.mxu0 0
        %4139 = vmatpush2.bf16.msra.mxu0 0
        %4140 = vmatprep.subr.bf16.mxu0 0
        %4141 = vmatpush2.bf16.msra.mxu0 0
        %4142 = vmatprep.mubr.bf16.mxu0 0
        %4143 = vmatmul.mubr.bf16.gmra.mxu0 %v4102
        %v4144 = vpop.f32.mrf.mxu0
        %v4145 = vadd.f32 0.0, %v4144
        %v4146 = vpop.f32.mrf.mxu0
        %v4147 = vpop.f32.mrf.mxu0
        %v4148 = vadd.f32 0.0, %v4147
        %v4149 = vpop.f32.mrf.mxu0
        %4150 = vmatprep.mubr.bf16.mxu0 0
        %4151 = vmatmul.mubr.bf16.gmra.mxu0 %v4105
        %v4152 = vpop.f32.mrf.mxu0
        %v4153 = vadd.f32 0.0, %v4152
        %v4154 = vpop.f32.mrf.mxu0
        %v4155 = vpop.f32.mrf.mxu0
        %v4156 = vadd.f32 0.0, %v4155
        %v4157 = vpop.f32.mrf.mxu0
        %4158 = vdwg.mxu0
        %v4159 = vsel %vm307, %v3971, 0.0
        %v4160 = vsel %vm307, %v4029, 0.0
        %v4161 = vadd.f32 %v4159, %v4160
        %v4162 = vsel %vm307, %v4087, 0.0
        %v4163 = vadd.f32 %v4161, %v4162
        %v4164 = vsel %vm307, %v4145, 0.0
        %v4165 = vadd.f32 %v4163, %v4164
        %v4166 = vsel %vm307, %v3974, 0.0
        %v4167 = vsel %vm307, %v4032, 0.0
        %v4168 = vadd.f32 %v4166, %v4167
        %v4169 = vsel %vm307, %v4090, 0.0
        %v4170 = vadd.f32 %v4168, %v4169
        %v4171 = vsel %vm307, %v4148, 0.0
        %v4172 = vadd.f32 %v4170, %v4171
        %v4173 = vsel %vm307, %v3979, 0.0
        %v4174 = vsel %vm307, %v4037, 0.0
        %v4175 = vadd.f32 %v4173, %v4174
        %v4176 = vsel %vm307, %v4095, 0.0
        %v4177 = vadd.f32 %v4175, %v4176
        %v4178 = vsel %vm307, %v4153, 0.0
        %v4179 = vadd.f32 %v4177, %v4178
        %v4180 = vsel %vm307, %v3982, 0.0
        %v4181 = vsel %vm307, %v4040, 0.0
        %v4182 = vadd.f32 %v4180, %v4181
        %v4183 = vsel %vm307, %v4098, 0.0
        %v4184 = vadd.f32 %v4182, %v4183
        %v4185 = vsel %vm307, %v4156, 0.0
        %v4186 = vadd.f32 %v4184, %v4185
        %4187 = vmatprep.subr.bf16.mxu0 0
        %4188 = vmatpush1.bf16.msra.mxu0 0
        %4189 = vmatprep.subr.bf16.mxu0 0
        %4190 = vmatpush1.bf16.msra.mxu0 0
        %4191 = vmatprep.subr.bf16.mxu0 0
        %4192 = vmatpush1.bf16.msra.mxu0 0
        %4193 = vmatprep.subr.bf16.mxu0 0
        %4194 = vmatpush1.bf16.msra.mxu0 0
        %4195 = vmatprep.subr.bf16.mxu0 0
        %4196 = vmatpush1.bf16.msra.mxu0 0
        %4197 = vmatprep.subr.bf16.mxu0 0
        %4198 = vmatpush1.bf16.msra.mxu0 0
        %4199 = vmatprep.subr.bf16.mxu0 0
        %4200 = vmatpush1.bf16.msra.mxu0 %v3910
        %4201 = vmatprep.subr.bf16.mxu0 0
        %4202 = vmatpush1.bf16.msra.mxu0 %v3909
        %4203 = vmatprep.subr.bf16.mxu0 0
        %4204 = vmatpush2.bf16.msra.mxu0 0
        %4205 = vmatprep.subr.bf16.mxu0 0
        %4206 = vmatpush2.bf16.msra.mxu0 0
        %4207 = vmatprep.subr.bf16.mxu0 0
        %4208 = vmatpush2.bf16.msra.mxu0 0
        %4209 = vmatprep.subr.bf16.mxu0 0
        %4210 = vmatpush2.bf16.msra.mxu0 0
        %4211 = vmatprep.subr.bf16.mxu0 0
        %4212 = vmatpush2.bf16.msra.mxu0 0
        %4213 = vmatprep.subr.bf16.mxu0 0
        %4214 = vmatpush2.bf16.msra.mxu0 0
        %4215 = vmatprep.subr.bf16.mxu0 0
        %4216 = vmatpush2.bf16.msra.mxu0 0
        %4217 = vmatprep.subr.bf16.mxu0 0
        %4218 = vmatpush2.bf16.msra.mxu0 0
        %4219 = vmatprep.mubr.bf16.mxu0 0
        %4220 = vmatmul.mubr.bf16.gmra.mxu0 %v309
        %v4221 = vpop.f32.mrf.mxu0
        %v4222 = vadd.f32 %v4165, %v4221
        %v4223 = vpop.f32.mrf.mxu0
        %v4224 = vpop.f32.mrf.mxu0
        %v4225 = vadd.f32 %v4172, %v4224
        %v4226 = vpop.f32.mrf.mxu0
        %4227 = vmatprep.mubr.bf16.mxu0 0
        %4228 = vmatmul.mubr.bf16.gmra.mxu0 %v312
        %v4229 = vpop.f32.mrf.mxu0
        %v4230 = vadd.f32 %v4179, %v4229
        %v4231 = vpop.f32.mrf.mxu0
        %v4232 = vpop.f32.mrf.mxu0
        %v4233 = vadd.f32 %v4186, %v4232
        %v4234 = vpop.f32.mrf.mxu0
        %4235 = vdwg.mxu0
        %v4236 = vld [vmem:[%s5] sm:$0x1]
        %v4238 = vlaneseq
        %v4239 = vshrl.u32 %v4238, 7
        %v4240 = vsub.s32 0, %v4239
        %v4241 = vrot.slane %v4236, %v4240
        %v4243 = vadd.f32 %v4222, %v4241
        %v4244 = vadd.f32 %v4225, %v4241
        %v4245 = vadd.f32 %v4230, %v4241
        %v4246 = vadd.f32 %v4233, %v4241
        %4247 = vst.msk [vmem:[%s261] sm:$0xff] %vm307, %v4243
        %4248 = vst.msk [vmem:[%s261 + $0x8] sm:$0xff] %vm307, %v4244
        %4249 = vst.msk [vmem:[%s261 + $0x10] sm:$0xff] %vm307, %v4245
        %4250 = vst.msk [vmem:[%s261 + $0x18] sm:$0xff] %vm307, %v4246
        %s4251 = sand.u32 %s164, 1
        %s4252 = scalar_lea.sflag [#allocation3], %s4251
        %s4253 = sand.u32 %s164, 1
        %s4254 = smul.addr %s4253, 32
        %s4255 = scalar_lea.vmem [#allocation2], %s4254
        // Predicated region
        $region45: #{transformer_attention_sep.1} parent=43 // pred_check
          %p4256 = pneg %p174
        $region46: #{transformer_attention_sep.1} parent=43 // pred_check_branch
          %4258 = sbr.rel (%p4256) target = $region48
        $region47: #{transformer_attention_sep.1} parent=43 // pred_region
          %s4259 = smul.u32 4, %s20
          %s4261 = ssub.s32 512, 512
          %4262 = vsyncadd %s4252, %s4261
          %s4263 = smul.addr %s4259, 128
          %s4264 = scalar_lea.hbm %s6, %s4263
          %s4265 = sshll.u32 %s4255, 4
          %s4266 = int_to_ptr.vmem [resolvable:$true] %s4265
          %4271 = dma.vmem_to_hbm [thread:$0]  %s4266, 512, %s4264, %s4252, 128, 128, 8
        $region48: #{transformer_attention_sep.1} parent=43 // pred_fallthru
          _
      $region44: #{transformer_attention_sep.1} parent=5 // pred_fallthru
        _
      %p4272 = scmp.le.s32.totalorder 2, %s15
      // Predicated region
      $region49: #{transformer_attention_sep.1} parent=5 // pred_check
        %p4273 = pneg %p4272
      $region50: #{transformer_attention_sep.1} parent=5 // pred_check_branch
        %4275 = sbr.rel (%p4273) target = $region52
      $region51: #{transformer_attention_sep.1} parent=5 // pred_region
        %s4276 = ssub.s32 %s15, 2
        // Predicated region
        $region53: #{transformer_attention_sep.1} parent=51 // pred_check
          %p4277 = pneg %p180
        $region54: #{transformer_attention_sep.1} parent=51 // pred_check_branch
          %4279 = sbr.rel (%p4277) target = $region56
        $region55: #{transformer_attention_sep.1} parent=51 // pred_region
          %s4280 = sand.u32 %s165, 1
          %s4281 = scalar_lea.sflag [#allocation3], %s4280
          %s4282 = sand.u32 %s165, 1
          %s4283 = smul.addr %s4282, 32
          %s4284 = scalar_lea.vmem [#allocation2], %s4283
          %4285 = dma.done %s4281, 512
        $region56: #{transformer_attention_sep.1} parent=51 // pred_fallthru
          _
      $region52: #{transformer_attention_sep.1} parent=5 // pred_fallthru
        _
    $region6: #{transformer_attention_sep.1} parent=1 // loop_footer
      %s19 = sadd.s32 1, %s15
    $region7: #{transformer_attention_sep.1} parent=1 // loop_footer_branch
      %14 = sbr.rel target = $region3
    $region8: #{transformer_attention_sep.1} parent=1 // loop_exit
      _
    %4286 = vsyncpa [#allocation3], 1
    %s4287 = scalar_lea.sflag [#allocation3], 1
    %4288 = vsyncpa %s4287, 1

</llo_original>
